<compile_context>
chip_gen: v6e
topology: v6e:2x2x1
jax: 0.10.0
libtpu: 0.0.40
codegen_flags: <defaults>
</compile_context>

<pallas_src>
import functools

import jax
import jax.numpy as jnp
from jax.experimental import pallas as pl
from jax.experimental.pallas import tpu as pltpu

H = 32                      # hidden_dim
T = 8                       # target_dim
FOURIER = 4                 # fourier_encodings
EDGE_IN = 2 * FOURIER + 1   # 9
EDGE_IN_PAD = 16            # zero-padded contraction dim (lane friendliness)
PROP_DEPTH = 4
EPS = 1e-5                  # BatchNorm1d eps

# MXU operand dtype.  bf16 is ~2x MXU throughput and half the VMEM footprint on
# v6e/v7x and is also legal on v5e (only MXU operands are bf16; all elementwise
# / BN math stays f32).  Set to jnp.float32 for bit-closer-to-torch numerics.
MXU_DT = jnp.bfloat16


# ---------------------------------------------------------------- kernel math
def _relu(x):
    return jnp.maximum(x, 0.0)


def _silu(x):
    return x * jax.nn.sigmoid(x)


def _bn(x, gamma, beta):
    # torch BatchNorm1d, train-mode forward: batch stats, biased variance (f32).
    mu = jnp.mean(x, axis=0, keepdims=True)
    var = jnp.mean((x - mu) ** 2, axis=0, keepdims=True)
    return (x - mu) * jax.lax.rsqrt(var + EPS) * gamma + beta


def _mm(a, b):
    # MXU matmul: operands in MXU_DT, accumulation in f32.
    return jnp.dot(a.astype(MXU_DT), b.astype(MXU_DT),
                   preferred_element_type=jnp.float32)


# ------------------------------------------------------------- fused kernel
def _net3d_kernel(
        # graph data
        fenc_ref,                 # (E, 16) f32   fourier-encoded distances (padded)
        idx_ref,                  # (E, 2)  i32   [src, dst]
        dstT_ref,                 # (1, E)  i32
        feat0_ref,                # (N, H)  f32   broadcast node embedding
        # edge-input MLP weights
        ei_w1_ref, ei_w2_ref,     # (16,H), (H,H)   MXU_DT
        # message-passing layers (stacked, leading dim = PROP_DEPTH)
        mp_w_ref,                 # (L, 6, H, H) MXU_DT  [w1s, w1d, w1e, w2, uw1, uw2]
        mp_vec_ref,               # (L, 10, H)  f32      [b1,g1,be1,b2,sw,sb,ub1,ug1,ube1,ub2]
        # node-wise output / readout-output MLP weights
        no_w1_ref, no_w2_ref,     # (H,H), (H,H)   MXU_DT
        o_w1_ref, o_w2_ref,       # (2H,H), (H,T)  MXU_DT
        misc_ref,                 # (10, H) f32  [eb1,eg1,ebe1,eb2, nb1,ng1,nbe1,nb2, ob1, ob2(pad)]
        # output
        out_ref):                 # (1, T)  f32
    e = fenc_ref.shape[0]
    n = feat0_ref.shape[0]

    misc = misc_ref[...]                                        # (10, H) f32
    feat = feat0_ref[...]                                       # (N, H)  f32

    # ---- edge input network: MLP(9->H->H) with BN, relu after each Linear,
    #      then SiLU (Sequential) and SiLU again (F.silu in input_edge_func).
    h = _relu(_mm(fenc_ref[...], ei_w1_ref[...]) + misc[0:1])
    h = _bn(h, misc[1:2], misc[2:3])
    h = _relu(_mm(h, ei_w2_ref[...]) + misc[3:4])
    edge_d = _silu(_silu(h))                                    # (E, H) f32

    # ---- selection matrices (built once, reused by every layer), bf16 (0/1 exact)
    #      combined src/dst gather: column j==src[e] hits the feat_s block,
    #      column j==dst[e]+N hits the feat_d block of the stacked (2N,H) operand.
    idx = idx_ref[...]                                          # (E, 2) i32
    col = jax.lax.broadcasted_iota(jnp.int32, (e, 2 * n), 1)
    oh_sd = jnp.where((col == idx[:, 0:1]) | (col == idx[:, 1:2] + n),
                      1.0, 0.0).astype(MXU_DT)                  # (E, 2N)
    row = jax.lax.broadcasted_iota(jnp.int32, (n, e), 0)
    oh_dst_t = jnp.where(dstT_ref[...] == row, 1.0, 0.0).astype(MXU_DT)  # (N, E)

    # ---- propagation layers (static unroll; weights indexed on leading axis)
    for l in range(PROP_DEPTH):
        mw = mp_w_ref[l]                                        # (6, H, H) MXU_DT
        vec = mp_vec_ref[l]                                     # (10, H)   f32

        # W1 reassociated into node space BEFORE the gather (exact up to FP order)
        feat_s = _mm(feat, mw[0])                               # (N, H)
        feat_d = _mm(feat, mw[1])                               # (N, H)
        feat_sd = jnp.concatenate([feat_s, feat_d], axis=0)     # (2N, H)

        # message_input = cat([src, dst, d]) @ W1  ==  one fused gather + edge matmul
        x = _mm(oh_sd, feat_sd) + _mm(edge_d, mw[2]) + vec[0:1]
        h = _relu(x)
        h = _bn(h, vec[1:2], vec[2:3])
        h = _relu(_mm(h, mw[3]) + vec[3:4])
        message = _silu(h)                                      # Sequential SiLU
        edge_d = edge_d + message                               # edges.data['d'] +=

        # soft-edge gate: VPU/XLU lane reduction (no N=1 MXU matmul)
        gate = jax.nn.sigmoid(
            jnp.sum(message * vec[4:5], axis=-1, keepdims=True) + vec[5:6, 0:1])
        gated = message * gate                                  # (E, H)

        # scatter-add onto destination nodes: (N,E) @ (E,H) on the MXU
        m_sum = _mm(oh_dst_t, gated)                            # (N, H)
        xn = m_sum + feat
        hn = _relu(_mm(xn, mw[4]) + vec[6:7])
        hn = _bn(hn, vec[7:8], vec[8:9])
        hn = _relu(_mm(hn, mw[5]) + vec[9:10])
        feat = hn + feat                                        # residual

    # ---- node-wise output network
    h = _relu(_mm(feat, no_w1_ref[...]) + misc[4:5])
    h = _bn(h, misc[5:6], misc[6:7])
    feat = _relu(_mm(h, no_w2_ref[...]) + misc[7:8])

    # ---- readout ['sum', 'mean'] + output MLP (no BN): lane-concat -> K=2H matmul
    s = jnp.sum(feat, axis=0, keepdims=True)                    # (1, H)
    mean = s * (1.0 / n)                                        # (1, H)
    sm = jnp.concatenate([s, mean], axis=-1)                    # (1, 2H)
    h = _relu(_mm(sm, o_w1_ref[...]) + misc[8:9])
    out_ref[...] = _relu(_mm(h, o_w2_ref[...]) + misc[9:10, 0:T])

    # TODO(synk): for realistic graph sizes (E >~ 2k, N >~ 512) replace the
    # one-hot gather/scatter with a PrefetchScalarGridSpec(num_scalar_prefetch=2)
    # E-tiled "parallel" grid (src/dst in SMEM, dynamic-row gathers, BlockSpec
    # auto-pipelined edge streams, two-pass BN in scratch) to bound VMEM on
    # v7x's 64 MiB parts and use its second TensorCore; at these toy sizes the
    # fully-fused single invocation is launch-bound and the one-hot path wins.


# ------------------------------------------------------------------ glue JAX
def fourier_encode_dist(d, num_encodings=FOURIER):
    # TODO(synk): sin/cos could move in-kernel onto the EUP; kept in the thin
    # XLA wrapper (tiny (E,9) tensor) and fused with input staging.
    d = d[:, None].astype(jnp.float32)                          # (E, 1)
    scales = 2.0 ** jnp.arange(num_encodings, dtype=jnp.float32)
    x = d / scales                                              # (E, F)
    return jnp.concatenate([jnp.sin(x), jnp.cos(x), d], axis=-1)  # (E, 2F+1)


def net3d_forward(params, src, dst, d, num_nodes):
    n = int(num_nodes)

    feat0 = jnp.broadcast_to(
        params["node_embedding"].astype(jnp.float32)[None, :], (n, H))

    fenc = fourier_encode_dist(d)                               # (E, 9)
    fenc = jnp.pad(fenc, ((0, 0), (0, EDGE_IN_PAD - EDGE_IN)))  # (E, 16)

    idx = jnp.stack([src.astype(jnp.int32), dst.astype(jnp.int32)], axis=1)  # (E,2)
    dstT = dst.astype(jnp.int32)[None, :]                       # (1, E)

    w = lambda a: a.astype(MXU_DT)
    args = [
        fenc, idx, dstT, feat0,
        w(params["ei_w1"]), w(params["ei_w2"]),
        w(params["mp_w"]), params["mp_vec"],
        w(params["no_w1"]), w(params["no_w2"]),
        w(params["o_w1"]), w(params["o_w2"]),
        params["misc_vec"],
    ]
    vmem = pl.BlockSpec(memory_space=pltpu.MemorySpace.VMEM)
    out = pl.pallas_call(
        _net3d_kernel,
        out_shape=jax.ShapeDtypeStruct((1, T), jnp.float32),
        in_specs=[vmem] * len(args),
        out_specs=vmem,
        compiler_params=pltpu.CompilerParams(
            vmem_limit_bytes=32 * 1024 * 1024),   # raise v5e's 16 MiB default,
                                                  # stay inside v7x's 64 MiB part
    )(*args)
    return out[0]                                   # (target_dim,)  (.squeeze())


# -------------------------------------------------------------- param init
def _init_linear(key, d_in, d_out):
    kw, kb = jax.random.split(key)
    bound = 1.0 / (d_in ** 0.5)        # torch.nn.Linear default uniform bound
    w = jax.random.uniform(kw, (d_in, d_out), jnp.float32, -bound, bound)
    b = jax.random.uniform(kb, (1, d_out), jnp.float32, -bound, bound)
    return w, b


def init_params(key):
    keys = iter(jax.random.split(key, 64))
    ones = jnp.ones((1, H), jnp.float32)
    zeros = jnp.zeros((1, H), jnp.float32)
    p = {}

    p["node_embedding"] = jax.random.normal(next(keys), (H,), jnp.float32)

    # edge-input MLP
    ew1, eb1 = _init_linear(next(keys), EDGE_IN, H)
    ew1 = jnp.pad(ew1, ((0, EDGE_IN_PAD - EDGE_IN), (0, 0)))  # matches input pad
    ew2, eb2 = _init_linear(next(keys), H, H)
    p["ei_w1"], p["ei_w2"] = ew1, ew2

    # message-passing layers: pack weights (L,6,H,H) and small vectors (L,10,H)
    mp_w, mp_vec = [], []
    for _ in range(PROP_DEPTH):
        mw1, mb1 = _init_linear(next(keys), 3 * H, H)
        mw2, mb2 = _init_linear(next(keys), H, H)
        sw, sb = _init_linear(next(keys), H, 1)
        uw1, ub1 = _init_linear(next(keys), H, H)
        uw2, ub2 = _init_linear(next(keys), H, H)
        mp_w.append(jnp.stack(
            [mw1[0:H], mw1[H:2 * H], mw1[2 * H:3 * H], mw2, uw1, uw2], axis=0))
        mp_vec.append(jnp.concatenate(
            [mb1, ones, zeros, mb2,
             sw.T, jnp.full((1, H), sb[0, 0], jnp.float32),
             ub1, ones, zeros, ub2], axis=0))
    p["mp_w"] = jnp.stack(mp_w, axis=0)       # (L, 6, H, H)
    p["mp_vec"] = jnp.stack(mp_vec, axis=0)   # (L, 10, H)

    # node-wise output MLP
    nw1, nb1 = _init_linear(next(keys), H, H)
    nw2, nb2 = _init_linear(next(keys), H, H)
    p["no_w1"], p["no_w2"] = nw1, nw2

    # readout output MLP (readout_hidden_dim = H, no BN)
    ow1, ob1 = _init_linear(next(keys), 2 * H, H)
    ow2, ob2 = _init_linear(next(keys), H, T)
    p["o_w1"], p["o_w2"] = ow1, ow2

    # pack all remaining (1,H)/(1,T) biases / BN params into one (10,H) array
    p["misc_vec"] = jnp.concatenate(
        [eb1, ones, zeros, eb2,
         nb1, ones, zeros, nb2,
         ob1, jnp.pad(ob2, ((0, 0), (0, H - T)))], axis=0)
    return p


# --------------------------------------------------------------------- main
if __name__ == "__main__":
    key = jax.random.PRNGKey(0)
    k_src, k_dst, k_d, k_p = jax.random.split(key, 4)

    N_NODES, N_EDGES = 8, 16
    src = jax.random.randint(k_src, (N_EDGES,), 0, N_NODES, dtype=jnp.int32)
    dst = jax.random.randint(k_dst, (N_EDGES,), 0, N_NODES, dtype=jnp.int32)
    dist = jax.random.uniform(k_d, (N_EDGES,), jnp.float32, 0.5, 3.0)

    params = init_params(k_p)
    fwd = jax.jit(functools.partial(net3d_forward, num_nodes=N_NODES))
    out = jax.block_until_ready(fwd(params, src, dst, dist))

    assert out.shape == (T,), out.shape
    assert bool(jnp.all(jnp.isfinite(out)))
    print("KERNEL_OK")
</pallas_src>

<mosaic_0001>
module attributes {stable_mosaic.version = 11 : i64} {
  func.func @_net3d_kernel(%arg0: memref<16x16xf32, #tpu.memory_space<vmem>>, %arg1: memref<16x2xi32, #tpu.memory_space<vmem>>, %arg2: memref<1x16xi32, #tpu.memory_space<vmem>>, %arg3: memref<8x32xf32, #tpu.memory_space<vmem>>, %arg4: memref<16x32xbf16, #tpu.memory_space<vmem>>, %arg5: memref<32x32xbf16, #tpu.memory_space<vmem>>, %arg6: memref<4x6x32x32xbf16, #tpu.memory_space<vmem>>, %arg7: memref<4x10x32xf32, #tpu.memory_space<vmem>>, %arg8: memref<32x32xbf16, #tpu.memory_space<vmem>>, %arg9: memref<32x32xbf16, #tpu.memory_space<vmem>>, %arg10: memref<64x32xbf16, #tpu.memory_space<vmem>>, %arg11: memref<32x8xbf16, #tpu.memory_space<vmem>>, %arg12: memref<10x32xf32, #tpu.memory_space<vmem>>, %arg13: memref<1x8xf32, #tpu.memory_space<vmem>>) attributes {dimension_semantics = [], scalar_prefetch = 0 : i64, scratch_operands = 0 : i64, tpu.core_type = #tpu.core_type<tc>} {
    %c0 = arith.constant 0 : index
    %c0_0 = arith.constant 0 : index
    %0 = vector.load %arg12[%c0, %c0_0] : memref<10x32xf32, #tpu.memory_space<vmem>>, vector<10x32xf32>
    %c0_1 = arith.constant 0 : index
    %c0_2 = arith.constant 0 : index
    %1 = vector.load %arg3[%c0_1, %c0_2] : memref<8x32xf32, #tpu.memory_space<vmem>>, vector<8x32xf32>
    %c0_3 = arith.constant 0 : index
    %c0_4 = arith.constant 0 : index
    %2 = vector.load %arg0[%c0_3, %c0_4] : memref<16x16xf32, #tpu.memory_space<vmem>>, vector<16x16xf32>
    %c0_5 = arith.constant 0 : index
    %c0_6 = arith.constant 0 : index
    %3 = vector.load %arg4[%c0_5, %c0_6] : memref<16x32xbf16, #tpu.memory_space<vmem>>, vector<16x32xbf16>
    %4 = arith.truncf %2 : vector<16x16xf32> to vector<16x16xbf16>
    %cst = arith.constant dense<0.000000e+00> : vector<16x32xf32>
    %5 = tpu.matmul %4, %3, %cst {dimension_numbers = #tpu.dot_dimension_numbers<[1], [0], [0], [1], [0, 0, 1, 1], [], []>} : vector<16x16xbf16>, vector<16x32xbf16>, vector<16x32xf32> -> vector<16x32xf32>
    %6 = vector.extract_strided_slice %0 {offsets = [0, 0], sizes = [1, 32], strides = [1, 1]} : vector<10x32xf32> to vector<1x32xf32>
    %7 = vector.broadcast %6 : vector<1x32xf32> to vector<16x32xf32>
    %8 = arith.addf %5, %7 : vector<16x32xf32>
    %cst_7 = arith.constant 0.000000e+00 : f32
    %9 = vector.broadcast %cst_7 : f32 to vector<16x32xf32>
    %10 = arith.maximumf %8, %9 : vector<16x32xf32>
    %11 = vector.extract_strided_slice %0 {offsets = [1, 0], sizes = [1, 32], strides = [1, 1]} : vector<10x32xf32> to vector<1x32xf32>
    %12 = vector.extract_strided_slice %0 {offsets = [2, 0], sizes = [1, 32], strides = [1, 1]} : vector<10x32xf32> to vector<1x32xf32>
    %cst_8 = arith.constant dense<0.000000e+00> : vector<32xf32>
    %13 = vector.multi_reduction <add>, %10, %cst_8 [0] : vector<16x32xf32> to vector<32xf32>
    %14 = vector.shape_cast %13 : vector<32xf32> to vector<1x32xf32>
    %cst_9 = arith.constant 1.600000e+01 : f32
    %15 = vector.broadcast %cst_9 : f32 to vector<1x32xf32>
    %16 = arith.divf %14, %15 : vector<1x32xf32>
    %17 = vector.broadcast %16 : vector<1x32xf32> to vector<16x32xf32>
    %18 = arith.subf %10, %17 : vector<16x32xf32>
    %19 = arith.mulf %18, %18 : vector<16x32xf32>
    %cst_10 = arith.constant dense<0.000000e+00> : vector<32xf32>
    %20 = vector.multi_reduction <add>, %19, %cst_10 [0] : vector<16x32xf32> to vector<32xf32>
    %21 = vector.shape_cast %20 : vector<32xf32> to vector<1x32xf32>
    %cst_11 = arith.constant 1.600000e+01 : f32
    %22 = vector.broadcast %cst_11 : f32 to vector<1x32xf32>
    %23 = arith.divf %21, %22 : vector<1x32xf32>
    %24 = vector.broadcast %16 : vector<1x32xf32> to vector<16x32xf32>
    %25 = arith.subf %10, %24 : vector<16x32xf32>
    %cst_12 = arith.constant 9.99999974E-6 : f32
    %26 = vector.broadcast %cst_12 : f32 to vector<1x32xf32>
    %27 = arith.addf %23, %26 : vector<1x32xf32>
    %28 = math.rsqrt %27 : vector<1x32xf32>
    %29 = vector.broadcast %28 : vector<1x32xf32> to vector<16x32xf32>
    %30 = arith.mulf %25, %29 : vector<16x32xf32>
    %31 = vector.broadcast %11 : vector<1x32xf32> to vector<16x32xf32>
    %32 = arith.mulf %30, %31 : vector<16x32xf32>
    %33 = vector.broadcast %12 : vector<1x32xf32> to vector<16x32xf32>
    %34 = arith.addf %32, %33 : vector<16x32xf32>
    %c0_13 = arith.constant 0 : index
    %c0_14 = arith.constant 0 : index
    %35 = vector.load %arg5[%c0_13, %c0_14] : memref<32x32xbf16, #tpu.memory_space<vmem>>, vector<32x32xbf16>
    %36 = arith.truncf %34 : vector<16x32xf32> to vector<16x32xbf16>
    %cst_15 = arith.constant dense<0.000000e+00> : vector<16x32xf32>
    %37 = tpu.matmul %36, %35, %cst_15 {dimension_numbers = #tpu.dot_dimension_numbers<[1], [0], [0], [1], [0, 0, 1, 1], [], []>} : vector<16x32xbf16>, vector<32x32xbf16>, vector<16x32xf32> -> vector<16x32xf32>
    %38 = vector.extract_strided_slice %0 {offsets = [3, 0], sizes = [1, 32], strides = [1, 1]} : vector<10x32xf32> to vector<1x32xf32>
    %39 = vector.broadcast %38 : vector<1x32xf32> to vector<16x32xf32>
    %40 = arith.addf %37, %39 : vector<16x32xf32>
    %cst_16 = arith.constant 0.000000e+00 : f32
    %41 = vector.broadcast %cst_16 : f32 to vector<16x32xf32>
    %42 = arith.maximumf %40, %41 : vector<16x32xf32>
    %43 = arith.negf %42 : vector<16x32xf32>
    %44 = math.exp %43 : vector<16x32xf32>
    %cst_17 = arith.constant 1.000000e+00 : f32
    %45 = vector.broadcast %cst_17 : f32 to vector<16x32xf32>
    %46 = arith.addf %45, %44 : vector<16x32xf32>
    %47 = arith.divf %45, %46 : vector<16x32xf32>
    %48 = arith.mulf %42, %47 : vector<16x32xf32>
    %49 = arith.negf %48 : vector<16x32xf32>
    %50 = math.exp %49 : vector<16x32xf32>
    %cst_18 = arith.constant 1.000000e+00 : f32
    %51 = vector.broadcast %cst_18 : f32 to vector<16x32xf32>
    %52 = arith.addf %51, %50 : vector<16x32xf32>
    %53 = arith.divf %51, %52 : vector<16x32xf32>
    %54 = arith.mulf %48, %53 : vector<16x32xf32>
    %c0_19 = arith.constant 0 : index
    %c0_20 = arith.constant 0 : index
    %55 = vector.load %arg1[%c0_19, %c0_20] : memref<16x2xi32, #tpu.memory_space<vmem>>, vector<16x2xi32>
    %56 = tpu.iota {dimensions = array<i32: 1>} : vector<16x16xi32>
    %57 = vector.extract_strided_slice %55 {offsets = [0, 0], sizes = [16, 1], strides = [1, 1]} : vector<16x2xi32> to vector<16x1xi32>
    %58 = vector.broadcast %57 : vector<16x1xi32> to vector<16x16xi32>
    %59 = arith.cmpi eq, %56, %58 : vector<16x16xi32>
    %60 = vector.extract_strided_slice %55 {offsets = [0, 1], sizes = [16, 1], strides = [1, 1]} : vector<16x2xi32> to vector<16x1xi32>
    %c8_i32 = arith.constant 8 : i32
    %61 = vector.broadcast %c8_i32 : i32 to vector<16x1xi32>
    %62 = arith.addi %60, %61 : vector<16x1xi32>
    %63 = vector.broadcast %62 : vector<16x1xi32> to vector<16x16xi32>
    %64 = arith.cmpi eq, %56, %63 : vector<16x16xi32>
    %65 = arith.ori %59, %64 : vector<16x16xi1>
    %cst_21 = arith.constant 1.000000e+00 : f32
    %cst_22 = arith.constant 0.000000e+00 : f32
    %66 = vector.broadcast %cst_21 : f32 to vector<16x16xf32>
    %67 = vector.broadcast %cst_22 : f32 to vector<16x16xf32>
    %68 = arith.select %65, %66, %67 : vector<16x16xi1>, vector<16x16xf32>
    %69 = arith.truncf %68 : vector<16x16xf32> to vector<16x16xbf16>
    %70 = tpu.iota {dimensions = array<i32: 0>} : vector<8x16xi32>
    %c0_23 = arith.constant 0 : index
    %c0_24 = arith.constant 0 : index
    %71 = vector.load %arg2[%c0_23, %c0_24] : memref<1x16xi32, #tpu.memory_space<vmem>>, vector<1x16xi32>
    %72 = vector.broadcast %71 : vector<1x16xi32> to vector<8x16xi32>
    %73 = arith.cmpi eq, %72, %70 : vector<8x16xi32>
    %cst_25 = arith.constant 1.000000e+00 : f32
    %cst_26 = arith.constant 0.000000e+00 : f32
    %74 = vector.broadcast %cst_25 : f32 to vector<8x16xf32>
    %75 = vector.broadcast %cst_26 : f32 to vector<8x16xf32>
    %76 = arith.select %73, %74, %75 : vector<8x16xi1>, vector<8x16xf32>
    %77 = arith.truncf %76 : vector<8x16xf32> to vector<8x16xbf16>
    %c0_27 = arith.constant 0 : index
    %c0_28 = arith.constant 0 : index
    %c0_29 = arith.constant 0 : index
    %c0_30 = arith.constant 0 : index
    %78 = vector.load %arg6[%c0_27, %c0_28, %c0_29, %c0_30] : memref<4x6x32x32xbf16, #tpu.memory_space<vmem>>, vector<1x6x32x32xbf16>
    %79 = vector.shape_cast %78 : vector<1x6x32x32xbf16> to vector<6x32x32xbf16>
    %c0_31 = arith.constant 0 : index
    %c0_32 = arith.constant 0 : index
    %c0_33 = arith.constant 0 : index
    %80 = vector.load %arg7[%c0_31, %c0_32, %c0_33] : memref<4x10x32xf32, #tpu.memory_space<vmem>>, vector<1x10x32xf32>
    %81 = vector.shape_cast %80 : vector<1x10x32xf32> to vector<10x32xf32>
    %82 = vector.extract_strided_slice %79 {offsets = [0, 0, 0], sizes = [1, 32, 32], strides = [1, 1, 1]} : vector<6x32x32xbf16> to vector<1x32x32xbf16>
    %83 = vector.shape_cast %82 : vector<1x32x32xbf16> to vector<32x32xbf16>
    %84 = arith.truncf %1 : vector<8x32xf32> to vector<8x32xbf16>
    %cst_34 = arith.constant dense<0.000000e+00> : vector<8x32xf32>
    %85 = tpu.matmul %84, %83, %cst_34 {dimension_numbers = #tpu.dot_dimension_numbers<[1], [0], [0], [1], [0, 0, 1, 1], [], []>} : vector<8x32xbf16>, vector<32x32xbf16>, vector<8x32xf32> -> vector<8x32xf32>
    %86 = vector.extract_strided_slice %79 {offsets = [1, 0, 0], sizes = [1, 32, 32], strides = [1, 1, 1]} : vector<6x32x32xbf16> to vector<1x32x32xbf16>
    %87 = vector.shape_cast %86 : vector<1x32x32xbf16> to vector<32x32xbf16>
    %88 = arith.truncf %1 : vector<8x32xf32> to vector<8x32xbf16>
    %cst_35 = arith.constant dense<0.000000e+00> : vector<8x32xf32>
    %89 = tpu.matmul %88, %87, %cst_35 {dimension_numbers = #tpu.dot_dimension_numbers<[1], [0], [0], [1], [0, 0, 1, 1], [], []>} : vector<8x32xbf16>, vector<32x32xbf16>, vector<8x32xf32> -> vector<8x32xf32>
    %90 = tpu.concatenate %85, %89 in 0 : vector<8x32xf32>, vector<8x32xf32> -> vector<16x32xf32>
    %91 = arith.truncf %90 : vector<16x32xf32> to vector<16x32xbf16>
    %cst_36 = arith.constant dense<0.000000e+00> : vector<16x32xf32>
    %92 = tpu.matmul %69, %91, %cst_36 {dimension_numbers = #tpu.dot_dimension_numbers<[1], [0], [0], [1], [0, 0, 1, 1], [], []>} : vector<16x16xbf16>, vector<16x32xbf16>, vector<16x32xf32> -> vector<16x32xf32>
    %93 = vector.extract_strided_slice %79 {offsets = [2, 0, 0], sizes = [1, 32, 32], strides = [1, 1, 1]} : vector<6x32x32xbf16> to vector<1x32x32xbf16>
    %94 = vector.shape_cast %93 : vector<1x32x32xbf16> to vector<32x32xbf16>
    %95 = arith.truncf %54 : vector<16x32xf32> to vector<16x32xbf16>
    %cst_37 = arith.constant dense<0.000000e+00> : vector<16x32xf32>
    %96 = tpu.matmul %95, %94, %cst_37 {dimension_numbers = #tpu.dot_dimension_numbers<[1], [0], [0], [1], [0, 0, 1, 1], [], []>} : vector<16x32xbf16>, vector<32x32xbf16>, vector<16x32xf32> -> vector<16x32xf32>
    %97 = arith.addf %92, %96 : vector<16x32xf32>
    %98 = vector.extract_strided_slice %81 {offsets = [0, 0], sizes = [1, 32], strides = [1, 1]} : vector<10x32xf32> to vector<1x32xf32>
    %99 = vector.broadcast %98 : vector<1x32xf32> to vector<16x32xf32>
    %100 = arith.addf %97, %99 : vector<16x32xf32>
    %cst_38 = arith.constant 0.000000e+00 : f32
    %101 = vector.broadcast %cst_38 : f32 to vector<16x32xf32>
    %102 = arith.maximumf %100, %101 : vector<16x32xf32>
    %103 = vector.extract_strided_slice %81 {offsets = [1, 0], sizes = [1, 32], strides = [1, 1]} : vector<10x32xf32> to vector<1x32xf32>
    %104 = vector.extract_strided_slice %81 {offsets = [2, 0], sizes = [1, 32], strides = [1, 1]} : vector<10x32xf32> to vector<1x32xf32>
    %cst_39 = arith.constant dense<0.000000e+00> : vector<32xf32>
    %105 = vector.multi_reduction <add>, %102, %cst_39 [0] : vector<16x32xf32> to vector<32xf32>
    %106 = vector.shape_cast %105 : vector<32xf32> to vector<1x32xf32>
    %cst_40 = arith.constant 1.600000e+01 : f32
    %107 = vector.broadcast %cst_40 : f32 to vector<1x32xf32>
    %108 = arith.divf %106, %107 : vector<1x32xf32>
    %109 = vector.broadcast %108 : vector<1x32xf32> to vector<16x32xf32>
    %110 = arith.subf %102, %109 : vector<16x32xf32>
    %111 = arith.mulf %110, %110 : vector<16x32xf32>
    %cst_41 = arith.constant dense<0.000000e+00> : vector<32xf32>
    %112 = vector.multi_reduction <add>, %111, %cst_41 [0] : vector<16x32xf32> to vector<32xf32>
    %113 = vector.shape_cast %112 : vector<32xf32> to vector<1x32xf32>
    %cst_42 = arith.constant 1.600000e+01 : f32
    %114 = vector.broadcast %cst_42 : f32 to vector<1x32xf32>
    %115 = arith.divf %113, %114 : vector<1x32xf32>
    %116 = vector.broadcast %108 : vector<1x32xf32> to vector<16x32xf32>
    %117 = arith.subf %102, %116 : vector<16x32xf32>
    %cst_43 = arith.constant 9.99999974E-6 : f32
    %118 = vector.broadcast %cst_43 : f32 to vector<1x32xf32>
    %119 = arith.addf %115, %118 : vector<1x32xf32>
    %120 = math.rsqrt %119 : vector<1x32xf32>
    %121 = vector.broadcast %120 : vector<1x32xf32> to vector<16x32xf32>
    %122 = arith.mulf %117, %121 : vector<16x32xf32>
    %123 = vector.broadcast %103 : vector<1x32xf32> to vector<16x32xf32>
    %124 = arith.mulf %122, %123 : vector<16x32xf32>
    %125 = vector.broadcast %104 : vector<1x32xf32> to vector<16x32xf32>
    %126 = arith.addf %124, %125 : vector<16x32xf32>
    %127 = vector.extract_strided_slice %79 {offsets = [3, 0, 0], sizes = [1, 32, 32], strides = [1, 1, 1]} : vector<6x32x32xbf16> to vector<1x32x32xbf16>
    %128 = vector.shape_cast %127 : vector<1x32x32xbf16> to vector<32x32xbf16>
    %129 = arith.truncf %126 : vector<16x32xf32> to vector<16x32xbf16>
    %cst_44 = arith.constant dense<0.000000e+00> : vector<16x32xf32>
    %130 = tpu.matmul %129, %128, %cst_44 {dimension_numbers = #tpu.dot_dimension_numbers<[1], [0], [0], [1], [0, 0, 1, 1], [], []>} : vector<16x32xbf16>, vector<32x32xbf16>, vector<16x32xf32> -> vector<16x32xf32>
    %131 = vector.extract_strided_slice %81 {offsets = [3, 0], sizes = [1, 32], strides = [1, 1]} : vector<10x32xf32> to vector<1x32xf32>
    %132 = vector.broadcast %131 : vector<1x32xf32> to vector<16x32xf32>
    %133 = arith.addf %130, %132 : vector<16x32xf32>
    %cst_45 = arith.constant 0.000000e+00 : f32
    %134 = vector.broadcast %cst_45 : f32 to vector<16x32xf32>
    %135 = arith.maximumf %133, %134 : vector<16x32xf32>
    %136 = arith.negf %135 : vector<16x32xf32>
    %137 = math.exp %136 : vector<16x32xf32>
    %cst_46 = arith.constant 1.000000e+00 : f32
    %138 = vector.broadcast %cst_46 : f32 to vector<16x32xf32>
    %139 = arith.addf %138, %137 : vector<16x32xf32>
    %140 = arith.divf %138, %139 : vector<16x32xf32>
    %141 = arith.mulf %135, %140 : vector<16x32xf32>
    %142 = arith.addf %54, %141 : vector<16x32xf32>
    %143 = vector.extract_strided_slice %81 {offsets = [4, 0], sizes = [1, 32], strides = [1, 1]} : vector<10x32xf32> to vector<1x32xf32>
    %144 = vector.broadcast %143 : vector<1x32xf32> to vector<16x32xf32>
    %145 = arith.mulf %141, %144 : vector<16x32xf32>
    %cst_47 = arith.constant dense<0.000000e+00> : vector<16xf32>
    %146 = vector.multi_reduction <add>, %145, %cst_47 [1] : vector<16x32xf32> to vector<16xf32>
    %147 = vector.shape_cast %146 : vector<16xf32> to vector<16x1xf32>
    %148 = vector.extract_strided_slice %81 {offsets = [5, 0], sizes = [1, 1], strides = [1, 1]} : vector<10x32xf32> to vector<1x1xf32>
    %149 = vector.broadcast %148 : vector<1x1xf32> to vector<16x1xf32>
    %150 = arith.addf %147, %149 : vector<16x1xf32>
    %151 = arith.negf %150 : vector<16x1xf32>
    %152 = math.exp %151 : vector<16x1xf32>
    %cst_48 = arith.constant 1.000000e+00 : f32
    %153 = vector.broadcast %cst_48 : f32 to vector<16x1xf32>
    %154 = arith.addf %153, %152 : vector<16x1xf32>
    %155 = arith.divf %153, %154 : vector<16x1xf32>
    %156 = vector.broadcast %155 : vector<16x1xf32> to vector<16x32xf32>
    %157 = arith.mulf %141, %156 : vector<16x32xf32>
    %158 = arith.truncf %157 : vector<16x32xf32> to vector<16x32xbf16>
    %cst_49 = arith.constant dense<0.000000e+00> : vector<8x32xf32>
    %159 = tpu.matmul %77, %158, %cst_49 {dimension_numbers = #tpu.dot_dimension_numbers<[1], [0], [0], [1], [0, 0, 1, 1], [], []>} : vector<8x16xbf16>, vector<16x32xbf16>, vector<8x32xf32> -> vector<8x32xf32>
    %160 = arith.addf %159, %1 : vector<8x32xf32>
    %161 = vector.extract_strided_slice %79 {offsets = [4, 0, 0], sizes = [1, 32, 32], strides = [1, 1, 1]} : vector<6x32x32xbf16> to vector<1x32x32xbf16>
    %162 = vector.shape_cast %161 : vector<1x32x32xbf16> to vector<32x32xbf16>
    %163 = arith.truncf %160 : vector<8x32xf32> to vector<8x32xbf16>
    %cst_50 = arith.constant dense<0.000000e+00> : vector<8x32xf32>
    %164 = tpu.matmul %163, %162, %cst_50 {dimension_numbers = #tpu.dot_dimension_numbers<[1], [0], [0], [1], [0, 0, 1, 1], [], []>} : vector<8x32xbf16>, vector<32x32xbf16>, vector<8x32xf32> -> vector<8x32xf32>
    %165 = vector.extract_strided_slice %81 {offsets = [6, 0], sizes = [1, 32], strides = [1, 1]} : vector<10x32xf32> to vector<1x32xf32>
    %166 = vector.broadcast %165 : vector<1x32xf32> to vector<8x32xf32>
    %167 = arith.addf %164, %166 : vector<8x32xf32>
    %cst_51 = arith.constant 0.000000e+00 : f32
    %168 = vector.broadcast %cst_51 : f32 to vector<8x32xf32>
    %169 = arith.maximumf %167, %168 : vector<8x32xf32>
    %170 = vector.extract_strided_slice %81 {offsets = [7, 0], sizes = [1, 32], strides = [1, 1]} : vector<10x32xf32> to vector<1x32xf32>
    %171 = vector.extract_strided_slice %81 {offsets = [8, 0], sizes = [1, 32], strides = [1, 1]} : vector<10x32xf32> to vector<1x32xf32>
    %cst_52 = arith.constant dense<0.000000e+00> : vector<32xf32>
    %172 = vector.multi_reduction <add>, %169, %cst_52 [0] : vector<8x32xf32> to vector<32xf32>
    %173 = vector.shape_cast %172 : vector<32xf32> to vector<1x32xf32>
    %cst_53 = arith.constant 8.000000e+00 : f32
    %174 = vector.broadcast %cst_53 : f32 to vector<1x32xf32>
    %175 = arith.divf %173, %174 : vector<1x32xf32>
    %176 = vector.broadcast %175 : vector<1x32xf32> to vector<8x32xf32>
    %177 = arith.subf %169, %176 : vector<8x32xf32>
    %178 = arith.mulf %177, %177 : vector<8x32xf32>
    %cst_54 = arith.constant dense<0.000000e+00> : vector<32xf32>
    %179 = vector.multi_reduction <add>, %178, %cst_54 [0] : vector<8x32xf32> to vector<32xf32>
    %180 = vector.shape_cast %179 : vector<32xf32> to vector<1x32xf32>
    %cst_55 = arith.constant 8.000000e+00 : f32
    %181 = vector.broadcast %cst_55 : f32 to vector<1x32xf32>
    %182 = arith.divf %180, %181 : vector<1x32xf32>
    %183 = vector.broadcast %175 : vector<1x32xf32> to vector<8x32xf32>
    %184 = arith.subf %169, %183 : vector<8x32xf32>
    %cst_56 = arith.constant 9.99999974E-6 : f32
    %185 = vector.broadcast %cst_56 : f32 to vector<1x32xf32>
    %186 = arith.addf %182, %185 : vector<1x32xf32>
    %187 = math.rsqrt %186 : vector<1x32xf32>
    %188 = vector.broadcast %187 : vector<1x32xf32> to vector<8x32xf32>
    %189 = arith.mulf %184, %188 : vector<8x32xf32>
    %190 = vector.broadcast %170 : vector<1x32xf32> to vector<8x32xf32>
    %191 = arith.mulf %189, %190 : vector<8x32xf32>
    %192 = vector.broadcast %171 : vector<1x32xf32> to vector<8x32xf32>
    %193 = arith.addf %191, %192 : vector<8x32xf32>
    %194 = vector.extract_strided_slice %79 {offsets = [5, 0, 0], sizes = [1, 32, 32], strides = [1, 1, 1]} : vector<6x32x32xbf16> to vector<1x32x32xbf16>
    %195 = vector.shape_cast %194 : vector<1x32x32xbf16> to vector<32x32xbf16>
    %196 = arith.truncf %193 : vector<8x32xf32> to vector<8x32xbf16>
    %cst_57 = arith.constant dense<0.000000e+00> : vector<8x32xf32>
    %197 = tpu.matmul %196, %195, %cst_57 {dimension_numbers = #tpu.dot_dimension_numbers<[1], [0], [0], [1], [0, 0, 1, 1], [], []>} : vector<8x32xbf16>, vector<32x32xbf16>, vector<8x32xf32> -> vector<8x32xf32>
    %198 = vector.extract_strided_slice %81 {offsets = [9, 0], sizes = [1, 32], strides = [1, 1]} : vector<10x32xf32> to vector<1x32xf32>
    %199 = vector.broadcast %198 : vector<1x32xf32> to vector<8x32xf32>
    %200 = arith.addf %197, %199 : vector<8x32xf32>
    %cst_58 = arith.constant 0.000000e+00 : f32
    %201 = vector.broadcast %cst_58 : f32 to vector<8x32xf32>
    %202 = arith.maximumf %200, %201 : vector<8x32xf32>
    %203 = arith.addf %202, %1 : vector<8x32xf32>
    %c1 = arith.constant 1 : index
    %c0_59 = arith.constant 0 : index
    %c0_60 = arith.constant 0 : index
    %c0_61 = arith.constant 0 : index
    %204 = vector.load %arg6[%c1, %c0_59, %c0_60, %c0_61] : memref<4x6x32x32xbf16, #tpu.memory_space<vmem>>, vector<1x6x32x32xbf16>
    %205 = vector.shape_cast %204 : vector<1x6x32x32xbf16> to vector<6x32x32xbf16>
    %c1_62 = arith.constant 1 : index
    %c0_63 = arith.constant 0 : index
    %c0_64 = arith.constant 0 : index
    %206 = vector.load %arg7[%c1_62, %c0_63, %c0_64] : memref<4x10x32xf32, #tpu.memory_space<vmem>>, vector<1x10x32xf32>
    %207 = vector.shape_cast %206 : vector<1x10x32xf32> to vector<10x32xf32>
    %208 = vector.extract_strided_slice %205 {offsets = [0, 0, 0], sizes = [1, 32, 32], strides = [1, 1, 1]} : vector<6x32x32xbf16> to vector<1x32x32xbf16>
    %209 = vector.shape_cast %208 : vector<1x32x32xbf16> to vector<32x32xbf16>
    %210 = arith.truncf %203 : vector<8x32xf32> to vector<8x32xbf16>
    %cst_65 = arith.constant dense<0.000000e+00> : vector<8x32xf32>
    %211 = tpu.matmul %210, %209, %cst_65 {dimension_numbers = #tpu.dot_dimension_numbers<[1], [0], [0], [1], [0, 0, 1, 1], [], []>} : vector<8x32xbf16>, vector<32x32xbf16>, vector<8x32xf32> -> vector<8x32xf32>
    %212 = vector.extract_strided_slice %205 {offsets = [1, 0, 0], sizes = [1, 32, 32], strides = [1, 1, 1]} : vector<6x32x32xbf16> to vector<1x32x32xbf16>
    %213 = vector.shape_cast %212 : vector<1x32x32xbf16> to vector<32x32xbf16>
    %214 = arith.truncf %203 : vector<8x32xf32> to vector<8x32xbf16>
    %cst_66 = arith.constant dense<0.000000e+00> : vector<8x32xf32>
    %215 = tpu.matmul %214, %213, %cst_66 {dimension_numbers = #tpu.dot_dimension_numbers<[1], [0], [0], [1], [0, 0, 1, 1], [], []>} : vector<8x32xbf16>, vector<32x32xbf16>, vector<8x32xf32> -> vector<8x32xf32>
    %216 = tpu.concatenate %211, %215 in 0 : vector<8x32xf32>, vector<8x32xf32> -> vector<16x32xf32>
    %217 = arith.truncf %216 : vector<16x32xf32> to vector<16x32xbf16>
    %cst_67 = arith.constant dense<0.000000e+00> : vector<16x32xf32>
    %218 = tpu.matmul %69, %217, %cst_67 {dimension_numbers = #tpu.dot_dimension_numbers<[1], [0], [0], [1], [0, 0, 1, 1], [], []>} : vector<16x16xbf16>, vector<16x32xbf16>, vector<16x32xf32> -> vector<16x32xf32>
    %219 = vector.extract_strided_slice %205 {offsets = [2, 0, 0], sizes = [1, 32, 32], strides = [1, 1, 1]} : vector<6x32x32xbf16> to vector<1x32x32xbf16>
    %220 = vector.shape_cast %219 : vector<1x32x32xbf16> to vector<32x32xbf16>
    %221 = arith.truncf %142 : vector<16x32xf32> to vector<16x32xbf16>
    %cst_68 = arith.constant dense<0.000000e+00> : vector<16x32xf32>
    %222 = tpu.matmul %221, %220, %cst_68 {dimension_numbers = #tpu.dot_dimension_numbers<[1], [0], [0], [1], [0, 0, 1, 1], [], []>} : vector<16x32xbf16>, vector<32x32xbf16>, vector<16x32xf32> -> vector<16x32xf32>
    %223 = arith.addf %218, %222 : vector<16x32xf32>
    %224 = vector.extract_strided_slice %207 {offsets = [0, 0], sizes = [1, 32], strides = [1, 1]} : vector<10x32xf32> to vector<1x32xf32>
    %225 = vector.broadcast %224 : vector<1x32xf32> to vector<16x32xf32>
    %226 = arith.addf %223, %225 : vector<16x32xf32>
    %cst_69 = arith.constant 0.000000e+00 : f32
    %227 = vector.broadcast %cst_69 : f32 to vector<16x32xf32>
    %228 = arith.maximumf %226, %227 : vector<16x32xf32>
    %229 = vector.extract_strided_slice %207 {offsets = [1, 0], sizes = [1, 32], strides = [1, 1]} : vector<10x32xf32> to vector<1x32xf32>
    %230 = vector.extract_strided_slice %207 {offsets = [2, 0], sizes = [1, 32], strides = [1, 1]} : vector<10x32xf32> to vector<1x32xf32>
    %cst_70 = arith.constant dense<0.000000e+00> : vector<32xf32>
    %231 = vector.multi_reduction <add>, %228, %cst_70 [0] : vector<16x32xf32> to vector<32xf32>
    %232 = vector.shape_cast %231 : vector<32xf32> to vector<1x32xf32>
    %cst_71 = arith.constant 1.600000e+01 : f32
    %233 = vector.broadcast %cst_71 : f32 to vector<1x32xf32>
    %234 = arith.divf %232, %233 : vector<1x32xf32>
    %235 = vector.broadcast %234 : vector<1x32xf32> to vector<16x32xf32>
    %236 = arith.subf %228, %235 : vector<16x32xf32>
    %237 = arith.mulf %236, %236 : vector<16x32xf32>
    %cst_72 = arith.constant dense<0.000000e+00> : vector<32xf32>
    %238 = vector.multi_reduction <add>, %237, %cst_72 [0] : vector<16x32xf32> to vector<32xf32>
    %239 = vector.shape_cast %238 : vector<32xf32> to vector<1x32xf32>
    %cst_73 = arith.constant 1.600000e+01 : f32
    %240 = vector.broadcast %cst_73 : f32 to vector<1x32xf32>
    %241 = arith.divf %239, %240 : vector<1x32xf32>
    %242 = vector.broadcast %234 : vector<1x32xf32> to vector<16x32xf32>
    %243 = arith.subf %228, %242 : vector<16x32xf32>
    %cst_74 = arith.constant 9.99999974E-6 : f32
    %244 = vector.broadcast %cst_74 : f32 to vector<1x32xf32>
    %245 = arith.addf %241, %244 : vector<1x32xf32>
    %246 = math.rsqrt %245 : vector<1x32xf32>
    %247 = vector.broadcast %246 : vector<1x32xf32> to vector<16x32xf32>
    %248 = arith.mulf %243, %247 : vector<16x32xf32>
    %249 = vector.broadcast %229 : vector<1x32xf32> to vector<16x32xf32>
    %250 = arith.mulf %248, %249 : vector<16x32xf32>
    %251 = vector.broadcast %230 : vector<1x32xf32> to vector<16x32xf32>
    %252 = arith.addf %250, %251 : vector<16x32xf32>
    %253 = vector.extract_strided_slice %205 {offsets = [3, 0, 0], sizes = [1, 32, 32], strides = [1, 1, 1]} : vector<6x32x32xbf16> to vector<1x32x32xbf16>
    %254 = vector.shape_cast %253 : vector<1x32x32xbf16> to vector<32x32xbf16>
    %255 = arith.truncf %252 : vector<16x32xf32> to vector<16x32xbf16>
    %cst_75 = arith.constant dense<0.000000e+00> : vector<16x32xf32>
    %256 = tpu.matmul %255, %254, %cst_75 {dimension_numbers = #tpu.dot_dimension_numbers<[1], [0], [0], [1], [0, 0, 1, 1], [], []>} : vector<16x32xbf16>, vector<32x32xbf16>, vector<16x32xf32> -> vector<16x32xf32>
    %257 = vector.extract_strided_slice %207 {offsets = [3, 0], sizes = [1, 32], strides = [1, 1]} : vector<10x32xf32> to vector<1x32xf32>
    %258 = vector.broadcast %257 : vector<1x32xf32> to vector<16x32xf32>
    %259 = arith.addf %256, %258 : vector<16x32xf32>
    %cst_76 = arith.constant 0.000000e+00 : f32
    %260 = vector.broadcast %cst_76 : f32 to vector<16x32xf32>
    %261 = arith.maximumf %259, %260 : vector<16x32xf32>
    %262 = arith.negf %261 : vector<16x32xf32>
    %263 = math.exp %262 : vector<16x32xf32>
    %cst_77 = arith.constant 1.000000e+00 : f32
    %264 = vector.broadcast %cst_77 : f32 to vector<16x32xf32>
    %265 = arith.addf %264, %263 : vector<16x32xf32>
    %266 = arith.divf %264, %265 : vector<16x32xf32>
    %267 = arith.mulf %261, %266 : vector<16x32xf32>
    %268 = arith.addf %142, %267 : vector<16x32xf32>
    %269 = vector.extract_strided_slice %207 {offsets = [4, 0], sizes = [1, 32], strides = [1, 1]} : vector<10x32xf32> to vector<1x32xf32>
    %270 = vector.broadcast %269 : vector<1x32xf32> to vector<16x32xf32>
    %271 = arith.mulf %267, %270 : vector<16x32xf32>
    %cst_78 = arith.constant dense<0.000000e+00> : vector<16xf32>
    %272 = vector.multi_reduction <add>, %271, %cst_78 [1] : vector<16x32xf32> to vector<16xf32>
    %273 = vector.shape_cast %272 : vector<16xf32> to vector<16x1xf32>
    %274 = vector.extract_strided_slice %207 {offsets = [5, 0], sizes = [1, 1], strides = [1, 1]} : vector<10x32xf32> to vector<1x1xf32>
    %275 = vector.broadcast %274 : vector<1x1xf32> to vector<16x1xf32>
    %276 = arith.addf %273, %275 : vector<16x1xf32>
    %277 = arith.negf %276 : vector<16x1xf32>
    %278 = math.exp %277 : vector<16x1xf32>
    %cst_79 = arith.constant 1.000000e+00 : f32
    %279 = vector.broadcast %cst_79 : f32 to vector<16x1xf32>
    %280 = arith.addf %279, %278 : vector<16x1xf32>
    %281 = arith.divf %279, %280 : vector<16x1xf32>
    %282 = vector.broadcast %281 : vector<16x1xf32> to vector<16x32xf32>
    %283 = arith.mulf %267, %282 : vector<16x32xf32>
    %284 = arith.truncf %283 : vector<16x32xf32> to vector<16x32xbf16>
    %cst_80 = arith.constant dense<0.000000e+00> : vector<8x32xf32>
    %285 = tpu.matmul %77, %284, %cst_80 {dimension_numbers = #tpu.dot_dimension_numbers<[1], [0], [0], [1], [0, 0, 1, 1], [], []>} : vector<8x16xbf16>, vector<16x32xbf16>, vector<8x32xf32> -> vector<8x32xf32>
    %286 = arith.addf %285, %203 : vector<8x32xf32>
    %287 = vector.extract_strided_slice %205 {offsets = [4, 0, 0], sizes = [1, 32, 32], strides = [1, 1, 1]} : vector<6x32x32xbf16> to vector<1x32x32xbf16>
    %288 = vector.shape_cast %287 : vector<1x32x32xbf16> to vector<32x32xbf16>
    %289 = arith.truncf %286 : vector<8x32xf32> to vector<8x32xbf16>
    %cst_81 = arith.constant dense<0.000000e+00> : vector<8x32xf32>
    %290 = tpu.matmul %289, %288, %cst_81 {dimension_numbers = #tpu.dot_dimension_numbers<[1], [0], [0], [1], [0, 0, 1, 1], [], []>} : vector<8x32xbf16>, vector<32x32xbf16>, vector<8x32xf32> -> vector<8x32xf32>
    %291 = vector.extract_strided_slice %207 {offsets = [6, 0], sizes = [1, 32], strides = [1, 1]} : vector<10x32xf32> to vector<1x32xf32>
    %292 = vector.broadcast %291 : vector<1x32xf32> to vector<8x32xf32>
    %293 = arith.addf %290, %292 : vector<8x32xf32>
    %cst_82 = arith.constant 0.000000e+00 : f32
    %294 = vector.broadcast %cst_82 : f32 to vector<8x32xf32>
    %295 = arith.maximumf %293, %294 : vector<8x32xf32>
    %296 = vector.extract_strided_slice %207 {offsets = [7, 0], sizes = [1, 32], strides = [1, 1]} : vector<10x32xf32> to vector<1x32xf32>
    %297 = vector.extract_strided_slice %207 {offsets = [8, 0], sizes = [1, 32], strides = [1, 1]} : vector<10x32xf32> to vector<1x32xf32>
    %cst_83 = arith.constant dense<0.000000e+00> : vector<32xf32>
    %298 = vector.multi_reduction <add>, %295, %cst_83 [0] : vector<8x32xf32> to vector<32xf32>
    %299 = vector.shape_cast %298 : vector<32xf32> to vector<1x32xf32>
    %cst_84 = arith.constant 8.000000e+00 : f32
    %300 = vector.broadcast %cst_84 : f32 to vector<1x32xf32>
    %301 = arith.divf %299, %300 : vector<1x32xf32>
    %302 = vector.broadcast %301 : vector<1x32xf32> to vector<8x32xf32>
    %303 = arith.subf %295, %302 : vector<8x32xf32>
    %304 = arith.mulf %303, %303 : vector<8x32xf32>
    %cst_85 = arith.constant dense<0.000000e+00> : vector<32xf32>
    %305 = vector.multi_reduction <add>, %304, %cst_85 [0] : vector<8x32xf32> to vector<32xf32>
    %306 = vector.shape_cast %305 : vector<32xf32> to vector<1x32xf32>
    %cst_86 = arith.constant 8.000000e+00 : f32
    %307 = vector.broadcast %cst_86 : f32 to vector<1x32xf32>
    %308 = arith.divf %306, %307 : vector<1x32xf32>
    %309 = vector.broadcast %301 : vector<1x32xf32> to vector<8x32xf32>
    %310 = arith.subf %295, %309 : vector<8x32xf32>
    %cst_87 = arith.constant 9.99999974E-6 : f32
    %311 = vector.broadcast %cst_87 : f32 to vector<1x32xf32>
    %312 = arith.addf %308, %311 : vector<1x32xf32>
    %313 = math.rsqrt %312 : vector<1x32xf32>
    %314 = vector.broadcast %313 : vector<1x32xf32> to vector<8x32xf32>
    %315 = arith.mulf %310, %314 : vector<8x32xf32>
    %316 = vector.broadcast %296 : vector<1x32xf32> to vector<8x32xf32>
    %317 = arith.mulf %315, %316 : vector<8x32xf32>
    %318 = vector.broadcast %297 : vector<1x32xf32> to vector<8x32xf32>
    %319 = arith.addf %317, %318 : vector<8x32xf32>
    %320 = vector.extract_strided_slice %205 {offsets = [5, 0, 0], sizes = [1, 32, 32], strides = [1, 1, 1]} : vector<6x32x32xbf16> to vector<1x32x32xbf16>
    %321 = vector.shape_cast %320 : vector<1x32x32xbf16> to vector<32x32xbf16>
    %322 = arith.truncf %319 : vector<8x32xf32> to vector<8x32xbf16>
    %cst_88 = arith.constant dense<0.000000e+00> : vector<8x32xf32>
    %323 = tpu.matmul %322, %321, %cst_88 {dimension_numbers = #tpu.dot_dimension_numbers<[1], [0], [0], [1], [0, 0, 1, 1], [], []>} : vector<8x32xbf16>, vector<32x32xbf16>, vector<8x32xf32> -> vector<8x32xf32>
    %324 = vector.extract_strided_slice %207 {offsets = [9, 0], sizes = [1, 32], strides = [1, 1]} : vector<10x32xf32> to vector<1x32xf32>
    %325 = vector.broadcast %324 : vector<1x32xf32> to vector<8x32xf32>
    %326 = arith.addf %323, %325 : vector<8x32xf32>
    %cst_89 = arith.constant 0.000000e+00 : f32
    %327 = vector.broadcast %cst_89 : f32 to vector<8x32xf32>
    %328 = arith.maximumf %326, %327 : vector<8x32xf32>
    %329 = arith.addf %328, %203 : vector<8x32xf32>
    %c2 = arith.constant 2 : index
    %c0_90 = arith.constant 0 : index
    %c0_91 = arith.constant 0 : index
    %c0_92 = arith.constant 0 : index
    %330 = vector.load %arg6[%c2, %c0_90, %c0_91, %c0_92] : memref<4x6x32x32xbf16, #tpu.memory_space<vmem>>, vector<1x6x32x32xbf16>
    %331 = vector.shape_cast %330 : vector<1x6x32x32xbf16> to vector<6x32x32xbf16>
    %c2_93 = arith.constant 2 : index
    %c0_94 = arith.constant 0 : index
    %c0_95 = arith.constant 0 : index
    %332 = vector.load %arg7[%c2_93, %c0_94, %c0_95] : memref<4x10x32xf32, #tpu.memory_space<vmem>>, vector<1x10x32xf32>
    %333 = vector.shape_cast %332 : vector<1x10x32xf32> to vector<10x32xf32>
    %334 = vector.extract_strided_slice %331 {offsets = [0, 0, 0], sizes = [1, 32, 32], strides = [1, 1, 1]} : vector<6x32x32xbf16> to vector<1x32x32xbf16>
    %335 = vector.shape_cast %334 : vector<1x32x32xbf16> to vector<32x32xbf16>
    %336 = arith.truncf %329 : vector<8x32xf32> to vector<8x32xbf16>
    %cst_96 = arith.constant dense<0.000000e+00> : vector<8x32xf32>
    %337 = tpu.matmul %336, %335, %cst_96 {dimension_numbers = #tpu.dot_dimension_numbers<[1], [0], [0], [1], [0, 0, 1, 1], [], []>} : vector<8x32xbf16>, vector<32x32xbf16>, vector<8x32xf32> -> vector<8x32xf32>
    %338 = vector.extract_strided_slice %331 {offsets = [1, 0, 0], sizes = [1, 32, 32], strides = [1, 1, 1]} : vector<6x32x32xbf16> to vector<1x32x32xbf16>
    %339 = vector.shape_cast %338 : vector<1x32x32xbf16> to vector<32x32xbf16>
    %340 = arith.truncf %329 : vector<8x32xf32> to vector<8x32xbf16>
    %cst_97 = arith.constant dense<0.000000e+00> : vector<8x32xf32>
    %341 = tpu.matmul %340, %339, %cst_97 {dimension_numbers = #tpu.dot_dimension_numbers<[1], [0], [0], [1], [0, 0, 1, 1], [], []>} : vector<8x32xbf16>, vector<32x32xbf16>, vector<8x32xf32> -> vector<8x32xf32>
    %342 = tpu.concatenate %337, %341 in 0 : vector<8x32xf32>, vector<8x32xf32> -> vector<16x32xf32>
    %343 = arith.truncf %342 : vector<16x32xf32> to vector<16x32xbf16>
    %cst_98 = arith.constant dense<0.000000e+00> : vector<16x32xf32>
    %344 = tpu.matmul %69, %343, %cst_98 {dimension_numbers = #tpu.dot_dimension_numbers<[1], [0], [0], [1], [0, 0, 1, 1], [], []>} : vector<16x16xbf16>, vector<16x32xbf16>, vector<16x32xf32> -> vector<16x32xf32>
    %345 = vector.extract_strided_slice %331 {offsets = [2, 0, 0], sizes = [1, 32, 32], strides = [1, 1, 1]} : vector<6x32x32xbf16> to vector<1x32x32xbf16>
    %346 = vector.shape_cast %345 : vector<1x32x32xbf16> to vector<32x32xbf16>
    %347 = arith.truncf %268 : vector<16x32xf32> to vector<16x32xbf16>
    %cst_99 = arith.constant dense<0.000000e+00> : vector<16x32xf32>
    %348 = tpu.matmul %347, %346, %cst_99 {dimension_numbers = #tpu.dot_dimension_numbers<[1], [0], [0], [1], [0, 0, 1, 1], [], []>} : vector<16x32xbf16>, vector<32x32xbf16>, vector<16x32xf32> -> vector<16x32xf32>
    %349 = arith.addf %344, %348 : vector<16x32xf32>
    %350 = vector.extract_strided_slice %333 {offsets = [0, 0], sizes = [1, 32], strides = [1, 1]} : vector<10x32xf32> to vector<1x32xf32>
    %351 = vector.broadcast %350 : vector<1x32xf32> to vector<16x32xf32>
    %352 = arith.addf %349, %351 : vector<16x32xf32>
    %cst_100 = arith.constant 0.000000e+00 : f32
    %353 = vector.broadcast %cst_100 : f32 to vector<16x32xf32>
    %354 = arith.maximumf %352, %353 : vector<16x32xf32>
    %355 = vector.extract_strided_slice %333 {offsets = [1, 0], sizes = [1, 32], strides = [1, 1]} : vector<10x32xf32> to vector<1x32xf32>
    %356 = vector.extract_strided_slice %333 {offsets = [2, 0], sizes = [1, 32], strides = [1, 1]} : vector<10x32xf32> to vector<1x32xf32>
    %cst_101 = arith.constant dense<0.000000e+00> : vector<32xf32>
    %357 = vector.multi_reduction <add>, %354, %cst_101 [0] : vector<16x32xf32> to vector<32xf32>
    %358 = vector.shape_cast %357 : vector<32xf32> to vector<1x32xf32>
    %cst_102 = arith.constant 1.600000e+01 : f32
    %359 = vector.broadcast %cst_102 : f32 to vector<1x32xf32>
    %360 = arith.divf %358, %359 : vector<1x32xf32>
    %361 = vector.broadcast %360 : vector<1x32xf32> to vector<16x32xf32>
    %362 = arith.subf %354, %361 : vector<16x32xf32>
    %363 = arith.mulf %362, %362 : vector<16x32xf32>
    %cst_103 = arith.constant dense<0.000000e+00> : vector<32xf32>
    %364 = vector.multi_reduction <add>, %363, %cst_103 [0] : vector<16x32xf32> to vector<32xf32>
    %365 = vector.shape_cast %364 : vector<32xf32> to vector<1x32xf32>
    %cst_104 = arith.constant 1.600000e+01 : f32
    %366 = vector.broadcast %cst_104 : f32 to vector<1x32xf32>
    %367 = arith.divf %365, %366 : vector<1x32xf32>
    %368 = vector.broadcast %360 : vector<1x32xf32> to vector<16x32xf32>
    %369 = arith.subf %354, %368 : vector<16x32xf32>
    %cst_105 = arith.constant 9.99999974E-6 : f32
    %370 = vector.broadcast %cst_105 : f32 to vector<1x32xf32>
    %371 = arith.addf %367, %370 : vector<1x32xf32>
    %372 = math.rsqrt %371 : vector<1x32xf32>
    %373 = vector.broadcast %372 : vector<1x32xf32> to vector<16x32xf32>
    %374 = arith.mulf %369, %373 : vector<16x32xf32>
    %375 = vector.broadcast %355 : vector<1x32xf32> to vector<16x32xf32>
    %376 = arith.mulf %374, %375 : vector<16x32xf32>
    %377 = vector.broadcast %356 : vector<1x32xf32> to vector<16x32xf32>
    %378 = arith.addf %376, %377 : vector<16x32xf32>
    %379 = vector.extract_strided_slice %331 {offsets = [3, 0, 0], sizes = [1, 32, 32], strides = [1, 1, 1]} : vector<6x32x32xbf16> to vector<1x32x32xbf16>
    %380 = vector.shape_cast %379 : vector<1x32x32xbf16> to vector<32x32xbf16>
    %381 = arith.truncf %378 : vector<16x32xf32> to vector<16x32xbf16>
    %cst_106 = arith.constant dense<0.000000e+00> : vector<16x32xf32>
    %382 = tpu.matmul %381, %380, %cst_106 {dimension_numbers = #tpu.dot_dimension_numbers<[1], [0], [0], [1], [0, 0, 1, 1], [], []>} : vector<16x32xbf16>, vector<32x32xbf16>, vector<16x32xf32> -> vector<16x32xf32>
    %383 = vector.extract_strided_slice %333 {offsets = [3, 0], sizes = [1, 32], strides = [1, 1]} : vector<10x32xf32> to vector<1x32xf32>
    %384 = vector.broadcast %383 : vector<1x32xf32> to vector<16x32xf32>
    %385 = arith.addf %382, %384 : vector<16x32xf32>
    %cst_107 = arith.constant 0.000000e+00 : f32
    %386 = vector.broadcast %cst_107 : f32 to vector<16x32xf32>
    %387 = arith.maximumf %385, %386 : vector<16x32xf32>
    %388 = arith.negf %387 : vector<16x32xf32>
    %389 = math.exp %388 : vector<16x32xf32>
    %cst_108 = arith.constant 1.000000e+00 : f32
    %390 = vector.broadcast %cst_108 : f32 to vector<16x32xf32>
    %391 = arith.addf %390, %389 : vector<16x32xf32>
    %392 = arith.divf %390, %391 : vector<16x32xf32>
    %393 = arith.mulf %387, %392 : vector<16x32xf32>
    %394 = arith.addf %268, %393 : vector<16x32xf32>
    %395 = vector.extract_strided_slice %333 {offsets = [4, 0], sizes = [1, 32], strides = [1, 1]} : vector<10x32xf32> to vector<1x32xf32>
    %396 = vector.broadcast %395 : vector<1x32xf32> to vector<16x32xf32>
    %397 = arith.mulf %393, %396 : vector<16x32xf32>
    %cst_109 = arith.constant dense<0.000000e+00> : vector<16xf32>
    %398 = vector.multi_reduction <add>, %397, %cst_109 [1] : vector<16x32xf32> to vector<16xf32>
    %399 = vector.shape_cast %398 : vector<16xf32> to vector<16x1xf32>
    %400 = vector.extract_strided_slice %333 {offsets = [5, 0], sizes = [1, 1], strides = [1, 1]} : vector<10x32xf32> to vector<1x1xf32>
    %401 = vector.broadcast %400 : vector<1x1xf32> to vector<16x1xf32>
    %402 = arith.addf %399, %401 : vector<16x1xf32>
    %403 = arith.negf %402 : vector<16x1xf32>
    %404 = math.exp %403 : vector<16x1xf32>
    %cst_110 = arith.constant 1.000000e+00 : f32
    %405 = vector.broadcast %cst_110 : f32 to vector<16x1xf32>
    %406 = arith.addf %405, %404 : vector<16x1xf32>
    %407 = arith.divf %405, %406 : vector<16x1xf32>
    %408 = vector.broadcast %407 : vector<16x1xf32> to vector<16x32xf32>
    %409 = arith.mulf %393, %408 : vector<16x32xf32>
    %410 = arith.truncf %409 : vector<16x32xf32> to vector<16x32xbf16>
    %cst_111 = arith.constant dense<0.000000e+00> : vector<8x32xf32>
    %411 = tpu.matmul %77, %410, %cst_111 {dimension_numbers = #tpu.dot_dimension_numbers<[1], [0], [0], [1], [0, 0, 1, 1], [], []>} : vector<8x16xbf16>, vector<16x32xbf16>, vector<8x32xf32> -> vector<8x32xf32>
    %412 = arith.addf %411, %329 : vector<8x32xf32>
    %413 = vector.extract_strided_slice %331 {offsets = [4, 0, 0], sizes = [1, 32, 32], strides = [1, 1, 1]} : vector<6x32x32xbf16> to vector<1x32x32xbf16>
    %414 = vector.shape_cast %413 : vector<1x32x32xbf16> to vector<32x32xbf16>
    %415 = arith.truncf %412 : vector<8x32xf32> to vector<8x32xbf16>
    %cst_112 = arith.constant dense<0.000000e+00> : vector<8x32xf32>
    %416 = tpu.matmul %415, %414, %cst_112 {dimension_numbers = #tpu.dot_dimension_numbers<[1], [0], [0], [1], [0, 0, 1, 1], [], []>} : vector<8x32xbf16>, vector<32x32xbf16>, vector<8x32xf32> -> vector<8x32xf32>
    %417 = vector.extract_strided_slice %333 {offsets = [6, 0], sizes = [1, 32], strides = [1, 1]} : vector<10x32xf32> to vector<1x32xf32>
    %418 = vector.broadcast %417 : vector<1x32xf32> to vector<8x32xf32>
    %419 = arith.addf %416, %418 : vector<8x32xf32>
    %cst_113 = arith.constant 0.000000e+00 : f32
    %420 = vector.broadcast %cst_113 : f32 to vector<8x32xf32>
    %421 = arith.maximumf %419, %420 : vector<8x32xf32>
    %422 = vector.extract_strided_slice %333 {offsets = [7, 0], sizes = [1, 32], strides = [1, 1]} : vector<10x32xf32> to vector<1x32xf32>
    %423 = vector.extract_strided_slice %333 {offsets = [8, 0], sizes = [1, 32], strides = [1, 1]} : vector<10x32xf32> to vector<1x32xf32>
    %cst_114 = arith.constant dense<0.000000e+00> : vector<32xf32>
    %424 = vector.multi_reduction <add>, %421, %cst_114 [0] : vector<8x32xf32> to vector<32xf32>
    %425 = vector.shape_cast %424 : vector<32xf32> to vector<1x32xf32>
    %cst_115 = arith.constant 8.000000e+00 : f32
    %426 = vector.broadcast %cst_115 : f32 to vector<1x32xf32>
    %427 = arith.divf %425, %426 : vector<1x32xf32>
    %428 = vector.broadcast %427 : vector<1x32xf32> to vector<8x32xf32>
    %429 = arith.subf %421, %428 : vector<8x32xf32>
    %430 = arith.mulf %429, %429 : vector<8x32xf32>
    %cst_116 = arith.constant dense<0.000000e+00> : vector<32xf32>
    %431 = vector.multi_reduction <add>, %430, %cst_116 [0] : vector<8x32xf32> to vector<32xf32>
    %432 = vector.shape_cast %431 : vector<32xf32> to vector<1x32xf32>
    %cst_117 = arith.constant 8.000000e+00 : f32
    %433 = vector.broadcast %cst_117 : f32 to vector<1x32xf32>
    %434 = arith.divf %432, %433 : vector<1x32xf32>
    %435 = vector.broadcast %427 : vector<1x32xf32> to vector<8x32xf32>
    %436 = arith.subf %421, %435 : vector<8x32xf32>
    %cst_118 = arith.constant 9.99999974E-6 : f32
    %437 = vector.broadcast %cst_118 : f32 to vector<1x32xf32>
    %438 = arith.addf %434, %437 : vector<1x32xf32>
    %439 = math.rsqrt %438 : vector<1x32xf32>
    %440 = vector.broadcast %439 : vector<1x32xf32> to vector<8x32xf32>
    %441 = arith.mulf %436, %440 : vector<8x32xf32>
    %442 = vector.broadcast %422 : vector<1x32xf32> to vector<8x32xf32>
    %443 = arith.mulf %441, %442 : vector<8x32xf32>
    %444 = vector.broadcast %423 : vector<1x32xf32> to vector<8x32xf32>
    %445 = arith.addf %443, %444 : vector<8x32xf32>
    %446 = vector.extract_strided_slice %331 {offsets = [5, 0, 0], sizes = [1, 32, 32], strides = [1, 1, 1]} : vector<6x32x32xbf16> to vector<1x32x32xbf16>
    %447 = vector.shape_cast %446 : vector<1x32x32xbf16> to vector<32x32xbf16>
    %448 = arith.truncf %445 : vector<8x32xf32> to vector<8x32xbf16>
    %cst_119 = arith.constant dense<0.000000e+00> : vector<8x32xf32>
    %449 = tpu.matmul %448, %447, %cst_119 {dimension_numbers = #tpu.dot_dimension_numbers<[1], [0], [0], [1], [0, 0, 1, 1], [], []>} : vector<8x32xbf16>, vector<32x32xbf16>, vector<8x32xf32> -> vector<8x32xf32>
    %450 = vector.extract_strided_slice %333 {offsets = [9, 0], sizes = [1, 32], strides = [1, 1]} : vector<10x32xf32> to vector<1x32xf32>
    %451 = vector.broadcast %450 : vector<1x32xf32> to vector<8x32xf32>
    %452 = arith.addf %449, %451 : vector<8x32xf32>
    %cst_120 = arith.constant 0.000000e+00 : f32
    %453 = vector.broadcast %cst_120 : f32 to vector<8x32xf32>
    %454 = arith.maximumf %452, %453 : vector<8x32xf32>
    %455 = arith.addf %454, %329 : vector<8x32xf32>
    %c3 = arith.constant 3 : index
    %c0_121 = arith.constant 0 : index
    %c0_122 = arith.constant 0 : index
    %c0_123 = arith.constant 0 : index
    %456 = vector.load %arg6[%c3, %c0_121, %c0_122, %c0_123] : memref<4x6x32x32xbf16, #tpu.memory_space<vmem>>, vector<1x6x32x32xbf16>
    %457 = vector.shape_cast %456 : vector<1x6x32x32xbf16> to vector<6x32x32xbf16>
    %c3_124 = arith.constant 3 : index
    %c0_125 = arith.constant 0 : index
    %c0_126 = arith.constant 0 : index
    %458 = vector.load %arg7[%c3_124, %c0_125, %c0_126] : memref<4x10x32xf32, #tpu.memory_space<vmem>>, vector<1x10x32xf32>
    %459 = vector.shape_cast %458 : vector<1x10x32xf32> to vector<10x32xf32>
    %460 = vector.extract_strided_slice %457 {offsets = [0, 0, 0], sizes = [1, 32, 32], strides = [1, 1, 1]} : vector<6x32x32xbf16> to vector<1x32x32xbf16>
    %461 = vector.shape_cast %460 : vector<1x32x32xbf16> to vector<32x32xbf16>
    %462 = arith.truncf %455 : vector<8x32xf32> to vector<8x32xbf16>
    %cst_127 = arith.constant dense<0.000000e+00> : vector<8x32xf32>
    %463 = tpu.matmul %462, %461, %cst_127 {dimension_numbers = #tpu.dot_dimension_numbers<[1], [0], [0], [1], [0, 0, 1, 1], [], []>} : vector<8x32xbf16>, vector<32x32xbf16>, vector<8x32xf32> -> vector<8x32xf32>
    %464 = vector.extract_strided_slice %457 {offsets = [1, 0, 0], sizes = [1, 32, 32], strides = [1, 1, 1]} : vector<6x32x32xbf16> to vector<1x32x32xbf16>
    %465 = vector.shape_cast %464 : vector<1x32x32xbf16> to vector<32x32xbf16>
    %466 = arith.truncf %455 : vector<8x32xf32> to vector<8x32xbf16>
    %cst_128 = arith.constant dense<0.000000e+00> : vector<8x32xf32>
    %467 = tpu.matmul %466, %465, %cst_128 {dimension_numbers = #tpu.dot_dimension_numbers<[1], [0], [0], [1], [0, 0, 1, 1], [], []>} : vector<8x32xbf16>, vector<32x32xbf16>, vector<8x32xf32> -> vector<8x32xf32>
    %468 = tpu.concatenate %463, %467 in 0 : vector<8x32xf32>, vector<8x32xf32> -> vector<16x32xf32>
    %469 = arith.truncf %468 : vector<16x32xf32> to vector<16x32xbf16>
    %cst_129 = arith.constant dense<0.000000e+00> : vector<16x32xf32>
    %470 = tpu.matmul %69, %469, %cst_129 {dimension_numbers = #tpu.dot_dimension_numbers<[1], [0], [0], [1], [0, 0, 1, 1], [], []>} : vector<16x16xbf16>, vector<16x32xbf16>, vector<16x32xf32> -> vector<16x32xf32>
    %471 = vector.extract_strided_slice %457 {offsets = [2, 0, 0], sizes = [1, 32, 32], strides = [1, 1, 1]} : vector<6x32x32xbf16> to vector<1x32x32xbf16>
    %472 = vector.shape_cast %471 : vector<1x32x32xbf16> to vector<32x32xbf16>
    %473 = arith.truncf %394 : vector<16x32xf32> to vector<16x32xbf16>
    %cst_130 = arith.constant dense<0.000000e+00> : vector<16x32xf32>
    %474 = tpu.matmul %473, %472, %cst_130 {dimension_numbers = #tpu.dot_dimension_numbers<[1], [0], [0], [1], [0, 0, 1, 1], [], []>} : vector<16x32xbf16>, vector<32x32xbf16>, vector<16x32xf32> -> vector<16x32xf32>
    %475 = arith.addf %470, %474 : vector<16x32xf32>
    %476 = vector.extract_strided_slice %459 {offsets = [0, 0], sizes = [1, 32], strides = [1, 1]} : vector<10x32xf32> to vector<1x32xf32>
    %477 = vector.broadcast %476 : vector<1x32xf32> to vector<16x32xf32>
    %478 = arith.addf %475, %477 : vector<16x32xf32>
    %cst_131 = arith.constant 0.000000e+00 : f32
    %479 = vector.broadcast %cst_131 : f32 to vector<16x32xf32>
    %480 = arith.maximumf %478, %479 : vector<16x32xf32>
    %481 = vector.extract_strided_slice %459 {offsets = [1, 0], sizes = [1, 32], strides = [1, 1]} : vector<10x32xf32> to vector<1x32xf32>
    %482 = vector.extract_strided_slice %459 {offsets = [2, 0], sizes = [1, 32], strides = [1, 1]} : vector<10x32xf32> to vector<1x32xf32>
    %cst_132 = arith.constant dense<0.000000e+00> : vector<32xf32>
    %483 = vector.multi_reduction <add>, %480, %cst_132 [0] : vector<16x32xf32> to vector<32xf32>
    %484 = vector.shape_cast %483 : vector<32xf32> to vector<1x32xf32>
    %cst_133 = arith.constant 1.600000e+01 : f32
    %485 = vector.broadcast %cst_133 : f32 to vector<1x32xf32>
    %486 = arith.divf %484, %485 : vector<1x32xf32>
    %487 = vector.broadcast %486 : vector<1x32xf32> to vector<16x32xf32>
    %488 = arith.subf %480, %487 : vector<16x32xf32>
    %489 = arith.mulf %488, %488 : vector<16x32xf32>
    %cst_134 = arith.constant dense<0.000000e+00> : vector<32xf32>
    %490 = vector.multi_reduction <add>, %489, %cst_134 [0] : vector<16x32xf32> to vector<32xf32>
    %491 = vector.shape_cast %490 : vector<32xf32> to vector<1x32xf32>
    %cst_135 = arith.constant 1.600000e+01 : f32
    %492 = vector.broadcast %cst_135 : f32 to vector<1x32xf32>
    %493 = arith.divf %491, %492 : vector<1x32xf32>
    %494 = vector.broadcast %486 : vector<1x32xf32> to vector<16x32xf32>
    %495 = arith.subf %480, %494 : vector<16x32xf32>
    %cst_136 = arith.constant 9.99999974E-6 : f32
    %496 = vector.broadcast %cst_136 : f32 to vector<1x32xf32>
    %497 = arith.addf %493, %496 : vector<1x32xf32>
    %498 = math.rsqrt %497 : vector<1x32xf32>
    %499 = vector.broadcast %498 : vector<1x32xf32> to vector<16x32xf32>
    %500 = arith.mulf %495, %499 : vector<16x32xf32>
    %501 = vector.broadcast %481 : vector<1x32xf32> to vector<16x32xf32>
    %502 = arith.mulf %500, %501 : vector<16x32xf32>
    %503 = vector.broadcast %482 : vector<1x32xf32> to vector<16x32xf32>
    %504 = arith.addf %502, %503 : vector<16x32xf32>
    %505 = vector.extract_strided_slice %457 {offsets = [3, 0, 0], sizes = [1, 32, 32], strides = [1, 1, 1]} : vector<6x32x32xbf16> to vector<1x32x32xbf16>
    %506 = vector.shape_cast %505 : vector<1x32x32xbf16> to vector<32x32xbf16>
    %507 = arith.truncf %504 : vector<16x32xf32> to vector<16x32xbf16>
    %cst_137 = arith.constant dense<0.000000e+00> : vector<16x32xf32>
    %508 = tpu.matmul %507, %506, %cst_137 {dimension_numbers = #tpu.dot_dimension_numbers<[1], [0], [0], [1], [0, 0, 1, 1], [], []>} : vector<16x32xbf16>, vector<32x32xbf16>, vector<16x32xf32> -> vector<16x32xf32>
    %509 = vector.extract_strided_slice %459 {offsets = [3, 0], sizes = [1, 32], strides = [1, 1]} : vector<10x32xf32> to vector<1x32xf32>
    %510 = vector.broadcast %509 : vector<1x32xf32> to vector<16x32xf32>
    %511 = arith.addf %508, %510 : vector<16x32xf32>
    %cst_138 = arith.constant 0.000000e+00 : f32
    %512 = vector.broadcast %cst_138 : f32 to vector<16x32xf32>
    %513 = arith.maximumf %511, %512 : vector<16x32xf32>
    %514 = arith.negf %513 : vector<16x32xf32>
    %515 = math.exp %514 : vector<16x32xf32>
    %cst_139 = arith.constant 1.000000e+00 : f32
    %516 = vector.broadcast %cst_139 : f32 to vector<16x32xf32>
    %517 = arith.addf %516, %515 : vector<16x32xf32>
    %518 = arith.divf %516, %517 : vector<16x32xf32>
    %519 = arith.mulf %513, %518 : vector<16x32xf32>
    %520 = vector.extract_strided_slice %459 {offsets = [4, 0], sizes = [1, 32], strides = [1, 1]} : vector<10x32xf32> to vector<1x32xf32>
    %521 = vector.broadcast %520 : vector<1x32xf32> to vector<16x32xf32>
    %522 = arith.mulf %519, %521 : vector<16x32xf32>
    %cst_140 = arith.constant dense<0.000000e+00> : vector<16xf32>
    %523 = vector.multi_reduction <add>, %522, %cst_140 [1] : vector<16x32xf32> to vector<16xf32>
    %524 = vector.shape_cast %523 : vector<16xf32> to vector<16x1xf32>
    %525 = vector.extract_strided_slice %459 {offsets = [5, 0], sizes = [1, 1], strides = [1, 1]} : vector<10x32xf32> to vector<1x1xf32>
    %526 = vector.broadcast %525 : vector<1x1xf32> to vector<16x1xf32>
    %527 = arith.addf %524, %526 : vector<16x1xf32>
    %528 = arith.negf %527 : vector<16x1xf32>
    %529 = math.exp %528 : vector<16x1xf32>
    %cst_141 = arith.constant 1.000000e+00 : f32
    %530 = vector.broadcast %cst_141 : f32 to vector<16x1xf32>
    %531 = arith.addf %530, %529 : vector<16x1xf32>
    %532 = arith.divf %530, %531 : vector<16x1xf32>
    %533 = vector.broadcast %532 : vector<16x1xf32> to vector<16x32xf32>
    %534 = arith.mulf %519, %533 : vector<16x32xf32>
    %535 = arith.truncf %534 : vector<16x32xf32> to vector<16x32xbf16>
    %cst_142 = arith.constant dense<0.000000e+00> : vector<8x32xf32>
    %536 = tpu.matmul %77, %535, %cst_142 {dimension_numbers = #tpu.dot_dimension_numbers<[1], [0], [0], [1], [0, 0, 1, 1], [], []>} : vector<8x16xbf16>, vector<16x32xbf16>, vector<8x32xf32> -> vector<8x32xf32>
    %537 = arith.addf %536, %455 : vector<8x32xf32>
    %538 = vector.extract_strided_slice %457 {offsets = [4, 0, 0], sizes = [1, 32, 32], strides = [1, 1, 1]} : vector<6x32x32xbf16> to vector<1x32x32xbf16>
    %539 = vector.shape_cast %538 : vector<1x32x32xbf16> to vector<32x32xbf16>
    %540 = arith.truncf %537 : vector<8x32xf32> to vector<8x32xbf16>
    %cst_143 = arith.constant dense<0.000000e+00> : vector<8x32xf32>
    %541 = tpu.matmul %540, %539, %cst_143 {dimension_numbers = #tpu.dot_dimension_numbers<[1], [0], [0], [1], [0, 0, 1, 1], [], []>} : vector<8x32xbf16>, vector<32x32xbf16>, vector<8x32xf32> -> vector<8x32xf32>
    %542 = vector.extract_strided_slice %459 {offsets = [6, 0], sizes = [1, 32], strides = [1, 1]} : vector<10x32xf32> to vector<1x32xf32>
    %543 = vector.broadcast %542 : vector<1x32xf32> to vector<8x32xf32>
    %544 = arith.addf %541, %543 : vector<8x32xf32>
    %cst_144 = arith.constant 0.000000e+00 : f32
    %545 = vector.broadcast %cst_144 : f32 to vector<8x32xf32>
    %546 = arith.maximumf %544, %545 : vector<8x32xf32>
    %547 = vector.extract_strided_slice %459 {offsets = [7, 0], sizes = [1, 32], strides = [1, 1]} : vector<10x32xf32> to vector<1x32xf32>
    %548 = vector.extract_strided_slice %459 {offsets = [8, 0], sizes = [1, 32], strides = [1, 1]} : vector<10x32xf32> to vector<1x32xf32>
    %cst_145 = arith.constant dense<0.000000e+00> : vector<32xf32>
    %549 = vector.multi_reduction <add>, %546, %cst_145 [0] : vector<8x32xf32> to vector<32xf32>
    %550 = vector.shape_cast %549 : vector<32xf32> to vector<1x32xf32>
    %cst_146 = arith.constant 8.000000e+00 : f32
    %551 = vector.broadcast %cst_146 : f32 to vector<1x32xf32>
    %552 = arith.divf %550, %551 : vector<1x32xf32>
    %553 = vector.broadcast %552 : vector<1x32xf32> to vector<8x32xf32>
    %554 = arith.subf %546, %553 : vector<8x32xf32>
    %555 = arith.mulf %554, %554 : vector<8x32xf32>
    %cst_147 = arith.constant dense<0.000000e+00> : vector<32xf32>
    %556 = vector.multi_reduction <add>, %555, %cst_147 [0] : vector<8x32xf32> to vector<32xf32>
    %557 = vector.shape_cast %556 : vector<32xf32> to vector<1x32xf32>
    %cst_148 = arith.constant 8.000000e+00 : f32
    %558 = vector.broadcast %cst_148 : f32 to vector<1x32xf32>
    %559 = arith.divf %557, %558 : vector<1x32xf32>
    %560 = vector.broadcast %552 : vector<1x32xf32> to vector<8x32xf32>
    %561 = arith.subf %546, %560 : vector<8x32xf32>
    %cst_149 = arith.constant 9.99999974E-6 : f32
    %562 = vector.broadcast %cst_149 : f32 to vector<1x32xf32>
    %563 = arith.addf %559, %562 : vector<1x32xf32>
    %564 = math.rsqrt %563 : vector<1x32xf32>
    %565 = vector.broadcast %564 : vector<1x32xf32> to vector<8x32xf32>
    %566 = arith.mulf %561, %565 : vector<8x32xf32>
    %567 = vector.broadcast %547 : vector<1x32xf32> to vector<8x32xf32>
    %568 = arith.mulf %566, %567 : vector<8x32xf32>
    %569 = vector.broadcast %548 : vector<1x32xf32> to vector<8x32xf32>
    %570 = arith.addf %568, %569 : vector<8x32xf32>
    %571 = vector.extract_strided_slice %457 {offsets = [5, 0, 0], sizes = [1, 32, 32], strides = [1, 1, 1]} : vector<6x32x32xbf16> to vector<1x32x32xbf16>
    %572 = vector.shape_cast %571 : vector<1x32x32xbf16> to vector<32x32xbf16>
    %573 = arith.truncf %570 : vector<8x32xf32> to vector<8x32xbf16>
    %cst_150 = arith.constant dense<0.000000e+00> : vector<8x32xf32>
    %574 = tpu.matmul %573, %572, %cst_150 {dimension_numbers = #tpu.dot_dimension_numbers<[1], [0], [0], [1], [0, 0, 1, 1], [], []>} : vector<8x32xbf16>, vector<32x32xbf16>, vector<8x32xf32> -> vector<8x32xf32>
    %575 = vector.extract_strided_slice %459 {offsets = [9, 0], sizes = [1, 32], strides = [1, 1]} : vector<10x32xf32> to vector<1x32xf32>
    %576 = vector.broadcast %575 : vector<1x32xf32> to vector<8x32xf32>
    %577 = arith.addf %574, %576 : vector<8x32xf32>
    %cst_151 = arith.constant 0.000000e+00 : f32
    %578 = vector.broadcast %cst_151 : f32 to vector<8x32xf32>
    %579 = arith.maximumf %577, %578 : vector<8x32xf32>
    %580 = arith.addf %579, %455 : vector<8x32xf32>
    %c0_152 = arith.constant 0 : index
    %c0_153 = arith.constant 0 : index
    %581 = vector.load %arg8[%c0_152, %c0_153] : memref<32x32xbf16, #tpu.memory_space<vmem>>, vector<32x32xbf16>
    %582 = arith.truncf %580 : vector<8x32xf32> to vector<8x32xbf16>
    %cst_154 = arith.constant dense<0.000000e+00> : vector<8x32xf32>
    %583 = tpu.matmul %582, %581, %cst_154 {dimension_numbers = #tpu.dot_dimension_numbers<[1], [0], [0], [1], [0, 0, 1, 1], [], []>} : vector<8x32xbf16>, vector<32x32xbf16>, vector<8x32xf32> -> vector<8x32xf32>
    %584 = vector.extract_strided_slice %0 {offsets = [4, 0], sizes = [1, 32], strides = [1, 1]} : vector<10x32xf32> to vector<1x32xf32>
    %585 = vector.broadcast %584 : vector<1x32xf32> to vector<8x32xf32>
    %586 = arith.addf %583, %585 : vector<8x32xf32>
    %cst_155 = arith.constant 0.000000e+00 : f32
    %587 = vector.broadcast %cst_155 : f32 to vector<8x32xf32>
    %588 = arith.maximumf %586, %587 : vector<8x32xf32>
    %589 = vector.extract_strided_slice %0 {offsets = [5, 0], sizes = [1, 32], strides = [1, 1]} : vector<10x32xf32> to vector<1x32xf32>
    %590 = vector.extract_strided_slice %0 {offsets = [6, 0], sizes = [1, 32], strides = [1, 1]} : vector<10x32xf32> to vector<1x32xf32>
    %cst_156 = arith.constant dense<0.000000e+00> : vector<32xf32>
    %591 = vector.multi_reduction <add>, %588, %cst_156 [0] : vector<8x32xf32> to vector<32xf32>
    %592 = vector.shape_cast %591 : vector<32xf32> to vector<1x32xf32>
    %cst_157 = arith.constant 8.000000e+00 : f32
    %593 = vector.broadcast %cst_157 : f32 to vector<1x32xf32>
    %594 = arith.divf %592, %593 : vector<1x32xf32>
    %595 = vector.broadcast %594 : vector<1x32xf32> to vector<8x32xf32>
    %596 = arith.subf %588, %595 : vector<8x32xf32>
    %597 = arith.mulf %596, %596 : vector<8x32xf32>
    %cst_158 = arith.constant dense<0.000000e+00> : vector<32xf32>
    %598 = vector.multi_reduction <add>, %597, %cst_158 [0] : vector<8x32xf32> to vector<32xf32>
    %599 = vector.shape_cast %598 : vector<32xf32> to vector<1x32xf32>
    %cst_159 = arith.constant 8.000000e+00 : f32
    %600 = vector.broadcast %cst_159 : f32 to vector<1x32xf32>
    %601 = arith.divf %599, %600 : vector<1x32xf32>
    %602 = vector.broadcast %594 : vector<1x32xf32> to vector<8x32xf32>
    %603 = arith.subf %588, %602 : vector<8x32xf32>
    %cst_160 = arith.constant 9.99999974E-6 : f32
    %604 = vector.broadcast %cst_160 : f32 to vector<1x32xf32>
    %605 = arith.addf %601, %604 : vector<1x32xf32>
    %606 = math.rsqrt %605 : vector<1x32xf32>
    %607 = vector.broadcast %606 : vector<1x32xf32> to vector<8x32xf32>
    %608 = arith.mulf %603, %607 : vector<8x32xf32>
    %609 = vector.broadcast %589 : vector<1x32xf32> to vector<8x32xf32>
    %610 = arith.mulf %608, %609 : vector<8x32xf32>
    %611 = vector.broadcast %590 : vector<1x32xf32> to vector<8x32xf32>
    %612 = arith.addf %610, %611 : vector<8x32xf32>
    %c0_161 = arith.constant 0 : index
    %c0_162 = arith.constant 0 : index
    %613 = vector.load %arg9[%c0_161, %c0_162] : memref<32x32xbf16, #tpu.memory_space<vmem>>, vector<32x32xbf16>
    %614 = arith.truncf %612 : vector<8x32xf32> to vector<8x32xbf16>
    %cst_163 = arith.constant dense<0.000000e+00> : vector<8x32xf32>
    %615 = tpu.matmul %614, %613, %cst_163 {dimension_numbers = #tpu.dot_dimension_numbers<[1], [0], [0], [1], [0, 0, 1, 1], [], []>} : vector<8x32xbf16>, vector<32x32xbf16>, vector<8x32xf32> -> vector<8x32xf32>
    %616 = vector.extract_strided_slice %0 {offsets = [7, 0], sizes = [1, 32], strides = [1, 1]} : vector<10x32xf32> to vector<1x32xf32>
    %617 = vector.broadcast %616 : vector<1x32xf32> to vector<8x32xf32>
    %618 = arith.addf %615, %617 : vector<8x32xf32>
    %cst_164 = arith.constant 0.000000e+00 : f32
    %619 = vector.broadcast %cst_164 : f32 to vector<8x32xf32>
    %620 = arith.maximumf %618, %619 : vector<8x32xf32>
    %cst_165 = arith.constant dense<0.000000e+00> : vector<32xf32>
    %621 = vector.multi_reduction <add>, %620, %cst_165 [0] : vector<8x32xf32> to vector<32xf32>
    %622 = vector.shape_cast %621 : vector<32xf32> to vector<1x32xf32>
    %cst_166 = arith.constant 1.250000e-01 : f32
    %623 = vector.broadcast %cst_166 : f32 to vector<1x32xf32>
    %624 = arith.mulf %622, %623 : vector<1x32xf32>
    %625 = tpu.concatenate %622, %624 in 1 : vector<1x32xf32>, vector<1x32xf32> -> vector<1x64xf32>
    %c0_167 = arith.constant 0 : index
    %c0_168 = arith.constant 0 : index
    %626 = vector.load %arg10[%c0_167, %c0_168] : memref<64x32xbf16, #tpu.memory_space<vmem>>, vector<64x32xbf16>
    %627 = arith.truncf %625 : vector<1x64xf32> to vector<1x64xbf16>
    %cst_169 = arith.constant dense<0.000000e+00> : vector<1x32xf32>
    %628 = tpu.matmul %627, %626, %cst_169 {dimension_numbers = #tpu.dot_dimension_numbers<[1], [0], [0], [1], [0, 0, 1, 1], [], []>} : vector<1x64xbf16>, vector<64x32xbf16>, vector<1x32xf32> -> vector<1x32xf32>
    %629 = vector.extract_strided_slice %0 {offsets = [8, 0], sizes = [1, 32], strides = [1, 1]} : vector<10x32xf32> to vector<1x32xf32>
    %630 = arith.addf %628, %629 : vector<1x32xf32>
    %cst_170 = arith.constant 0.000000e+00 : f32
    %631 = vector.broadcast %cst_170 : f32 to vector<1x32xf32>
    %632 = arith.maximumf %630, %631 : vector<1x32xf32>
    %c0_171 = arith.constant 0 : index
    %c0_172 = arith.constant 0 : index
    %633 = vector.load %arg11[%c0_171, %c0_172] : memref<32x8xbf16, #tpu.memory_space<vmem>>, vector<32x8xbf16>
    %634 = arith.truncf %632 : vector<1x32xf32> to vector<1x32xbf16>
    %cst_173 = arith.constant dense<0.000000e+00> : vector<1x8xf32>
    %635 = tpu.matmul %634, %633, %cst_173 {dimension_numbers = #tpu.dot_dimension_numbers<[1], [0], [0], [1], [0, 0, 1, 1], [], []>} : vector<1x32xbf16>, vector<32x8xbf16>, vector<1x8xf32> -> vector<1x8xf32>
    %636 = vector.extract_strided_slice %0 {offsets = [9, 0], sizes = [1, 8], strides = [1, 1]} : vector<10x32xf32> to vector<1x8xf32>
    %637 = arith.addf %635, %636 : vector<1x8xf32>
    %cst_174 = arith.constant 0.000000e+00 : f32
    %638 = vector.broadcast %cst_174 : f32 to vector<1x8xf32>
    %639 = arith.maximumf %637, %638 : vector<1x8xf32>
    %c0_175 = arith.constant 0 : index
    %c0_176 = arith.constant 0 : index
    %640 = vector.load %arg13[%c0_175, %c0_176] : memref<1x8xf32, #tpu.memory_space<vmem>>, vector<1x8xf32>
    tpu.vector_store %arg13[%c0_175, %c0_176], %639 {strides = array<i32>} : memref<1x8xf32, #tpu.memory_space<vmem>>, vector<1x8xf32>,
    return
  }
}

</mosaic_0001>

<llo_original>
// kernel: net3d_forward.1
$region0: #{net3d_forward.1}
  #allocation0 [shape = 'u32[]', space=smem, size = 0x4, offset = 0x4, fixed_abs, tag = 'smem constant byte address 0x4 - core index']
  #allocation1 [shape = 'u32[144,128]{1,0:T(1,128)}', space=vmem, size = 0x12000, scoped, tag = 'internal scratch']
  %s0 = inlined_call_operand.vmem [shape: f32[16,16], index: 0, kind: input, shape index: {}]
  %s1 = inlined_call_operand.vmem [shape: s32[16,2], index: 1, kind: input, shape index: {}]
  %s2 = inlined_call_operand.vmem [shape: s32[1,16], index: 2, kind: input, shape index: {}]
  %s3 = inlined_call_operand.vmem [shape: f32[8,32], index: 3, kind: input, shape index: {}]
  %s4 = inlined_call_operand.vmem [shape: bf16[16,32], index: 4, kind: input, shape index: {}]
  %s5 = inlined_call_operand.vmem [shape: bf16[32,32], index: 5, kind: input, shape index: {}]
  %s6 = inlined_call_operand.vmem [shape: bf16[4,6,32,32], index: 6, kind: input, shape index: {}]
  %s7 = inlined_call_operand.vmem [shape: f32[4,10,32], index: 7, kind: input, shape index: {}]
  %s8 = inlined_call_operand.vmem [shape: bf16[32,32], index: 8, kind: input, shape index: {}]
  %s9 = inlined_call_operand.vmem [shape: bf16[32,32], index: 9, kind: input, shape index: {}]
  %s10 = inlined_call_operand.vmem [shape: bf16[64,32], index: 10, kind: input, shape index: {}]
  %s11 = inlined_call_operand.vmem [shape: bf16[32,8], index: 11, kind: input, shape index: {}]
  %s12 = inlined_call_operand.vmem [shape: f32[10,32], index: 12, kind: input, shape index: {}]
  %s13 = inlined_call_operand.hbm [shape: f32[1,8], index: 13, kind: output, shape index: {}]
  %s14 = sld [smem:[#allocation0]]
  $region62: #{net3d_forward.1} parent=0
    _
  %s16 = ssub.s32 1, %s14
  %s17 = scalar_select 0, %s16, %s14
  $region1: #{net3d_forward.1} parent=0
    #allocation2 [shape = 'u8[512]{0}', space=vmem, size = 0x400, scoped, tag = 'output window, operand 0, single buffered']
    #allocation3 [shape = 's32[1]{0}', space=sflag, size = 0x4, scoped, tag = 'scoped memory for net3d_forward.1']
    %18 = vsyncpa [#allocation3], 0
    // Predicated region
    $region2: #{net3d_forward.1} parent=1 // pred_check
      _
    $region3: #{net3d_forward.1} parent=1 // pred_check_branch
      %20 = sbr.rel (0) target = $region5
    $region4: #{net3d_forward.1} parent=1 // pred_region
      _
    $region5: #{net3d_forward.1} parent=1 // pred_fallthru
      _
    // Predicated region
    $region6: #{net3d_forward.1} parent=1 // pred_check
      _
    $region7: #{net3d_forward.1} parent=1 // pred_check_branch
      %22 = sbr.rel (0) target = $region9
    $region8: #{net3d_forward.1} parent=1 // pred_region
      _
    $region9: #{net3d_forward.1} parent=1 // pred_fallthru
      _
    // Predicated region
    $region10: #{net3d_forward.1} parent=1 // pred_check
      _
    $region11: #{net3d_forward.1} parent=1 // pred_check_branch
      %24 = sbr.rel (0) target = $region13
    $region12: #{net3d_forward.1} parent=1 // pred_region
      _
    $region13: #{net3d_forward.1} parent=1 // pred_fallthru
      _
    // Predicated region
    $region14: #{net3d_forward.1} parent=1 // pred_check
      _
    $region15: #{net3d_forward.1} parent=1 // pred_check_branch
      %26 = sbr.rel (0) target = $region17
    $region16: #{net3d_forward.1} parent=1 // pred_region
      _
    $region17: #{net3d_forward.1} parent=1 // pred_fallthru
      _
    // Predicated region
    $region18: #{net3d_forward.1} parent=1 // pred_check
      _
    $region19: #{net3d_forward.1} parent=1 // pred_check_branch
      %28 = sbr.rel (0) target = $region21
    $region20: #{net3d_forward.1} parent=1 // pred_region
      _
    $region21: #{net3d_forward.1} parent=1 // pred_fallthru
      _
    // Predicated region
    $region22: #{net3d_forward.1} parent=1 // pred_check
      _
    $region23: #{net3d_forward.1} parent=1 // pred_check_branch
      %30 = sbr.rel (0) target = $region25
    $region24: #{net3d_forward.1} parent=1 // pred_region
      _
    $region25: #{net3d_forward.1} parent=1 // pred_fallthru
      _
    // Predicated region
    $region26: #{net3d_forward.1} parent=1 // pred_check
      _
    $region27: #{net3d_forward.1} parent=1 // pred_check_branch
      %32 = sbr.rel (0) target = $region29
    $region28: #{net3d_forward.1} parent=1 // pred_region
      _
    $region29: #{net3d_forward.1} parent=1 // pred_fallthru
      _
    // Predicated region
    $region30: #{net3d_forward.1} parent=1 // pred_check
      _
    $region31: #{net3d_forward.1} parent=1 // pred_check_branch
      %34 = sbr.rel (0) target = $region33
    $region32: #{net3d_forward.1} parent=1 // pred_region
      _
    $region33: #{net3d_forward.1} parent=1 // pred_fallthru
      _
    // Predicated region
    $region34: #{net3d_forward.1} parent=1 // pred_check
      _
    $region35: #{net3d_forward.1} parent=1 // pred_check_branch
      %36 = sbr.rel (0) target = $region37
    $region36: #{net3d_forward.1} parent=1 // pred_region
      _
    $region37: #{net3d_forward.1} parent=1 // pred_fallthru
      _
    // Predicated region
    $region38: #{net3d_forward.1} parent=1 // pred_check
      _
    $region39: #{net3d_forward.1} parent=1 // pred_check_branch
      %38 = sbr.rel (0) target = $region41
    $region40: #{net3d_forward.1} parent=1 // pred_region
      _
    $region41: #{net3d_forward.1} parent=1 // pred_fallthru
      _
    // Predicated region
    $region42: #{net3d_forward.1} parent=1 // pred_check
      _
    $region43: #{net3d_forward.1} parent=1 // pred_check_branch
      %40 = sbr.rel (0) target = $region45
    $region44: #{net3d_forward.1} parent=1 // pred_region
      _
    $region45: #{net3d_forward.1} parent=1 // pred_fallthru
      _
    // Predicated region
    $region46: #{net3d_forward.1} parent=1 // pred_check
      _
    $region47: #{net3d_forward.1} parent=1 // pred_check_branch
      %42 = sbr.rel (0) target = $region49
    $region48: #{net3d_forward.1} parent=1 // pred_region
      _
    $region49: #{net3d_forward.1} parent=1 // pred_fallthru
      _
    // Predicated region
    $region50: #{net3d_forward.1} parent=1 // pred_check
      _
    $region51: #{net3d_forward.1} parent=1 // pred_check_branch
      %44 = sbr.rel (0) target = $region53
    $region52: #{net3d_forward.1} parent=1 // pred_region
      _
    $region53: #{net3d_forward.1} parent=1 // pred_fallthru
      _
    %v46 = vld [vmem:[%s12] sm:$0xff]
    %v47 = vld [vmem:[%s12 + $0x8] sm:$0x3]
    %v48 = vld [vmem:[%s3] sm:$0xff]
    %v49 = vld [vmem:[%s0] sm:$0xff]
    %v50 = vld [vmem:[%s0 + $0x8] sm:$0xff]
    %v51 = vld [vmem:[%s4] sm:$0xf]
    %v52 = vld [vmem:[%s4 + $0x4] sm:$0xf]
    %v53 = vpack.c.bf16 %v50, %v49
    %v54 = vlaneseq
    %v55 = vshrl.u32 %v54, 7
    %v56 = vsub.s32 0, %v55
    %v57 = vrot.slane %v46, %v56
    %v60 = vunpack.c.l.b16 %v51
    %v61 = vunpack.c.l.b16 %v52
    %v62 = vpack.c.b16 %v61, %v60
    %vm64 = vcmask 130048
    %v66 = vsel %vm64, %v53, 0
    %68 = vmatprep.subr.bf16.mxu0 0
    %69 = vmatpush1.bf16.msra.mxu0 0
    %70 = vmatprep.subr.bf16.mxu0 0
    %71 = vmatpush1.bf16.msra.mxu0 0
    %72 = vmatprep.subr.bf16.mxu0 0
    %73 = vmatpush1.bf16.msra.mxu0 0
    %74 = vmatprep.subr.bf16.mxu0 0
    %75 = vmatpush1.bf16.msra.mxu0 0
    %76 = vmatprep.subr.bf16.mxu0 0
    %77 = vmatpush1.bf16.msra.mxu0 0
    %78 = vmatprep.subr.bf16.mxu0 0
    %79 = vmatpush1.bf16.msra.mxu0 0
    %80 = vmatprep.subr.bf16.mxu0 0
    %81 = vmatpush1.bf16.msra.mxu0 0
    %82 = vmatprep.subr.bf16.mxu0 0
    %83 = vmatpush1.bf16.msra.mxu0 %v62
    %84 = vmatprep.subr.bf16.mxu0 0
    %85 = vmatpush2.bf16.msra.mxu0 0
    %86 = vmatprep.subr.bf16.mxu0 0
    %87 = vmatpush2.bf16.msra.mxu0 0
    %88 = vmatprep.subr.bf16.mxu0 0
    %89 = vmatpush2.bf16.msra.mxu0 0
    %90 = vmatprep.subr.bf16.mxu0 0
    %91 = vmatpush2.bf16.msra.mxu0 0
    %92 = vmatprep.subr.bf16.mxu0 0
    %93 = vmatpush2.bf16.msra.mxu0 0
    %94 = vmatprep.subr.bf16.mxu0 0
    %95 = vmatpush2.bf16.msra.mxu0 0
    %96 = vmatprep.subr.bf16.mxu0 0
    %97 = vmatpush2.bf16.msra.mxu0 0
    %98 = vmatprep.subr.bf16.mxu0 0
    %99 = vmatpush2.bf16.msra.mxu0 0
    %100 = vmatprep.mubr.bf16.mxu0 0
    %101 = vmatmul.mubr.bf16.gmra.mxu0 %v66
    %v102 = vpop.f32.mrf.mxu0
    %v103 = vadd.f32 %v57, %v102
    %v104 = vpop.f32.mrf.mxu0
    %v105 = vpop.f32.mrf.mxu0
    %v106 = vadd.f32 %v57, %v105
    %v107 = vpop.f32.mrf.mxu0
    %108 = vdwg.mxu0
    %v109 = vmax.f32 %v103, 0.0
    %v110 = vmax.f32 %v106, 0.0
    %vm111 = vcmask 261120
    %v112 = vsel %vm111, %v109, 0.0
    %v113 = vsel %vm111, %v110, 0.0
    %v114 = vadd.f32 %v112, %v113
    %v115 = vrot.slane %v114, 4
    %v116 = vadd.f32 %v114, %v115
    %v117 = vrot.slane %v116, 2
    %v118 = vadd.f32 %v116, %v117
    %v119 = vrot.slane %v118, 1
    %v120 = vadd.f32 %v118, %v119
    %v121 = vrcp.pop 16.0
    %v122 = vmul.f32 %v120, %v121
    %v123 = vsub.f32 %v109, %v122
    %v124 = vsub.f32 %v110, %v122
    %v125 = vmul.f32 %v123, %v123
    %v126 = vmul.f32 %v124, %v124
    %v127 = vsel %vm111, %v125, 0.0
    %v128 = vsel %vm111, %v126, 0.0
    %v129 = vadd.f32 %v127, %v128
    %v130 = vrot.slane %v129, 4
    %v131 = vadd.f32 %v129, %v130
    %v132 = vrot.slane %v131, 2
    %v133 = vadd.f32 %v131, %v132
    %v134 = vrot.slane %v133, 1
    %v135 = vadd.f32 %v133, %v134
    %v136 = vmul.f32 %v135, %v121
    %v137 = vadd.f32 %v136, 1e-05
    %v138 = vrsqrt.pop %v137
    %v139 = vmul.f32 %v123, %v138
    %v140 = vmul.f32 %v124, %v138
    %v141 = vlaneseq
    %v142 = vshrl.u32 %v141, 7
    %v143 = vsub.s32 1, %v142
    %v144 = vrot.slane %v46, %v143
    %v145 = vmul.f32 %v139, %v144
    %v146 = vmul.f32 %v140, %v144
    %v147 = vlaneseq
    %v148 = vshrl.u32 %v147, 7
    %v149 = vsub.s32 2, %v148
    %v150 = vrot.slane %v46, %v149
    %v151 = vadd.f32 %v145, %v150
    %v152 = vadd.f32 %v146, %v150
    %v153 = vld [vmem:[%s5] sm:$0xf]
    %v154 = vld [vmem:[%s5 + $0x4] sm:$0xf]
    %v155 = vld [vmem:[%s5 + $0x8] sm:$0xf]
    %v156 = vld [vmem:[%s5 + $0xc] sm:$0xf]
    %v157 = vpack.c.bf16 %v152, %v151
    %v158 = vlaneseq
    %v159 = vshrl.u32 %v158, 7
    %v160 = vsub.s32 3, %v159
    %v161 = vrot.slane %v46, %v160
    %v166 = vunpack.c.l.b16 %v153
    %v167 = vunpack.c.l.b16 %v154
    %v168 = vunpack.c.l.b16 %v155
    %v169 = vunpack.c.l.b16 %v156
    %v170 = vpack.c.b16 %v167, %v166
    %v171 = vpack.c.b16 %v169, %v168
    %v175 = vsel %vm111, %v157, 0
    %177 = vmatprep.subr.bf16.mxu0 0
    %178 = vmatpush1.bf16.msra.mxu0 0
    %179 = vmatprep.subr.bf16.mxu0 0
    %180 = vmatpush1.bf16.msra.mxu0 0
    %181 = vmatprep.subr.bf16.mxu0 0
    %182 = vmatpush1.bf16.msra.mxu0 0
    %183 = vmatprep.subr.bf16.mxu0 0
    %184 = vmatpush1.bf16.msra.mxu0 0
    %185 = vmatprep.subr.bf16.mxu0 0
    %186 = vmatpush1.bf16.msra.mxu0 0
    %187 = vmatprep.subr.bf16.mxu0 0
    %188 = vmatpush1.bf16.msra.mxu0 0
    %189 = vmatprep.subr.bf16.mxu0 0
    %190 = vmatpush1.bf16.msra.mxu0 %v171
    %191 = vmatprep.subr.bf16.mxu0 0
    %192 = vmatpush1.bf16.msra.mxu0 %v170
    %193 = vmatprep.subr.bf16.mxu0 0
    %194 = vmatpush2.bf16.msra.mxu0 0
    %195 = vmatprep.subr.bf16.mxu0 0
    %196 = vmatpush2.bf16.msra.mxu0 0
    %197 = vmatprep.subr.bf16.mxu0 0
    %198 = vmatpush2.bf16.msra.mxu0 0
    %199 = vmatprep.subr.bf16.mxu0 0
    %200 = vmatpush2.bf16.msra.mxu0 0
    %201 = vmatprep.subr.bf16.mxu0 0
    %202 = vmatpush2.bf16.msra.mxu0 0
    %203 = vmatprep.subr.bf16.mxu0 0
    %204 = vmatpush2.bf16.msra.mxu0 0
    %205 = vmatprep.subr.bf16.mxu0 0
    %206 = vmatpush2.bf16.msra.mxu0 0
    %207 = vmatprep.subr.bf16.mxu0 0
    %208 = vmatpush2.bf16.msra.mxu0 0
    %209 = vmatprep.mubr.bf16.mxu0 0
    %210 = vmatmul.mubr.bf16.gmra.mxu0 %v175
    %v211 = vpop.f32.mrf.mxu0
    %v212 = vadd.f32 %v161, %v211
    %v213 = vpop.f32.mrf.mxu0
    %v214 = vpop.f32.mrf.mxu0
    %v215 = vadd.f32 %v161, %v214
    %v216 = vpop.f32.mrf.mxu0
    %217 = vdwg.mxu0
    %v218 = vmax.f32 %v212, 0.0
    %v219 = vmax.f32 %v215, 0.0
    %v220 = vxor.u32 %v218, 2147483648
    %v221 = vxor.u32 %v219, 2147483648
    %v222 = vmul.f32 %v220, 1.442695
    %v223 = vpow.pop %v222
    %v224 = vmul.f32 %v221, 1.442695
    %v225 = vpow.pop %v224
    %v226 = vadd.f32 %v223, 1.0
    %v227 = vadd.f32 %v225, 1.0
    %v228 = vrcp.pop %v226
    %v229 = vmul.f32 1.0, %v228
    %v230 = vrcp.pop %v227
    %v231 = vmul.f32 1.0, %v230
    %v232 = vmul.f32 %v218, %v229
    %v233 = vmul.f32 %v219, %v231
    %v234 = vxor.u32 %v232, 2147483648
    %v235 = vxor.u32 %v233, 2147483648
    %v236 = vmul.f32 %v234, 1.442695
    %v237 = vpow.pop %v236
    %v238 = vmul.f32 %v235, 1.442695
    %v239 = vpow.pop %v238
    %v240 = vadd.f32 %v237, 1.0
    %v241 = vadd.f32 %v239, 1.0
    %v242 = vrcp.pop %v240
    %v243 = vmul.f32 1.0, %v242
    %v244 = vrcp.pop %v241
    %v245 = vmul.f32 1.0, %v244
    %v246 = vmul.f32 %v232, %v243
    %v247 = vmul.f32 %v233, %v245
    %v248 = vld [vmem:[%s1] sm:$0xff]
    %v249 = vld [vmem:[%s1 + $0x8] sm:$0xff]
    %v250 = vlaneseq
    %v251 = vand.u32 %v250, 127
    %252 = vset.pattern.permute.xlu0 0
    %253 = vperm.xlu0 %252, %v248
    %v254 = vpop.permute.xlu0 %253
    %255 = vset.pattern.permute.xlu0 0
    %256 = vperm.xlu0 %255, %v249
    %v257 = vpop.permute.xlu0 %256
    %vm258 = vcmp.eq.s32.totalorder %v251, %v254
    %vm259 = vcmp.eq.s32.totalorder %v251, %v257
    %v260 = vadd.s32 %v248, 8
    %v261 = vadd.s32 %v249, 8
    %262 = vset.pattern.permute.xlu0 1
    %263 = vperm.xlu0 %262, %v260
    %v264 = vpop.permute.xlu0 %263
    %265 = vset.pattern.permute.xlu0 1
    %266 = vperm.xlu0 %265, %v261
    %v267 = vpop.permute.xlu0 %266
    %vm268 = vcmp.eq.s32.totalorder %v251, %v264
    %vm269 = vcmp.eq.s32.totalorder %v251, %v267
    %vm270 = vmor %vm258, %vm268
    %vm271 = vmor %vm259, %vm269
    %v272 = vsel %vm270, 1.0, 0.0
    %v273 = vsel %vm271, 1.0, 0.0
    %v274 = vpack.c.bf16 %v273, %v272
    %v275 = vlaneseq
    %v276 = vshrl.u32 %v275, 7
    %v277 = vld [vmem:[%s2] sm:$0x1]
    %v278 = vlaneseq
    %v279 = vshrl.u32 %v278, 7
    %v280 = vsub.s32 0, %v279
    %v281 = vrot.slane %v277, %v280
    %vm282 = vcmp.eq.s32.totalorder %v281, %v276
    %v283 = vsel %vm282, 1.0, 0.0
    %v284 = vpack.c.bf16 %v283, %v283
    %v285 = vld [vmem:[%s6] sm:$0xf]
    %v286 = vld [vmem:[%s6 + $0x4] sm:$0xf]
    %v287 = vld [vmem:[%s6 + $0x8] sm:$0xf]
    %v288 = vld [vmem:[%s6 + $0xc] sm:$0xf]
    %v289 = vld [vmem:[%s6 + $0x10] sm:$0xf]
    %v290 = vld [vmem:[%s6 + $0x14] sm:$0xf]
    %v291 = vld [vmem:[%s6 + $0x18] sm:$0xf]
    %v292 = vld [vmem:[%s6 + $0x1c] sm:$0xf]
    %v293 = vld [vmem:[%s6 + $0x20] sm:$0xf]
    %v294 = vld [vmem:[%s6 + $0x24] sm:$0xf]
    %v295 = vld [vmem:[%s6 + $0x28] sm:$0xf]
    %v296 = vld [vmem:[%s6 + $0x2c] sm:$0xf]
    %v297 = vld [vmem:[%s6 + $0x30] sm:$0xf]
    %v298 = vld [vmem:[%s6 + $0x34] sm:$0xf]
    %v299 = vld [vmem:[%s6 + $0x38] sm:$0xf]
    %v300 = vld [vmem:[%s6 + $0x3c] sm:$0xf]
    %v301 = vld [vmem:[%s6 + $0x40] sm:$0xf]
    %v302 = vld [vmem:[%s6 + $0x44] sm:$0xf]
    %v303 = vld [vmem:[%s6 + $0x48] sm:$0xf]
    %v304 = vld [vmem:[%s6 + $0x4c] sm:$0xf]
    %v305 = vld [vmem:[%s6 + $0x50] sm:$0xf]
    %v306 = vld [vmem:[%s6 + $0x54] sm:$0xf]
    %v307 = vld [vmem:[%s6 + $0x58] sm:$0xf]
    %v308 = vld [vmem:[%s6 + $0x5c] sm:$0xf]
    %v309 = vld [vmem:[%s7] sm:$0xff]
    %v310 = vld [vmem:[%s7 + $0x8] sm:$0x3]
    %v311 = vpack.c.bf16 %v48, %v48
    %v316 = vunpack.c.l.b16 %v285
    %v317 = vunpack.c.l.b16 %v286
    %v318 = vunpack.c.l.b16 %v287
    %v319 = vunpack.c.l.b16 %v288
    %v320 = vpack.c.b16 %v317, %v316
    %v321 = vpack.c.b16 %v319, %v318
    %v325 = vsel %vm111, %v311, 0
    %327 = vmatprep.subr.bf16.mxu0 0
    %328 = vmatpush1.bf16.msra.mxu0 0
    %329 = vmatprep.subr.bf16.mxu0 0
    %330 = vmatpush1.bf16.msra.mxu0 0
    %331 = vmatprep.subr.bf16.mxu0 0
    %332 = vmatpush1.bf16.msra.mxu0 0
    %333 = vmatprep.subr.bf16.mxu0 0
    %334 = vmatpush1.bf16.msra.mxu0 0
    %335 = vmatprep.subr.bf16.mxu0 0
    %336 = vmatpush1.bf16.msra.mxu0 0
    %337 = vmatprep.subr.bf16.mxu0 0
    %338 = vmatpush1.bf16.msra.mxu0 0
    %339 = vmatprep.subr.bf16.mxu0 0
    %340 = vmatpush1.bf16.msra.mxu0 %v321
    %341 = vmatprep.subr.bf16.mxu0 0
    %342 = vmatpush1.bf16.msra.mxu0 %v320
    %343 = vmatprep.subr.bf16.mxu0 0
    %344 = vmatpush2.bf16.msra.mxu0 0
    %345 = vmatprep.subr.bf16.mxu0 0
    %346 = vmatpush2.bf16.msra.mxu0 0
    %347 = vmatprep.subr.bf16.mxu0 0
    %348 = vmatpush2.bf16.msra.mxu0 0
    %349 = vmatprep.subr.bf16.mxu0 0
    %350 = vmatpush2.bf16.msra.mxu0 0
    %351 = vmatprep.subr.bf16.mxu0 0
    %352 = vmatpush2.bf16.msra.mxu0 0
    %353 = vmatprep.subr.bf16.mxu0 0
    %354 = vmatpush2.bf16.msra.mxu0 0
    %355 = vmatprep.subr.bf16.mxu0 0
    %356 = vmatpush2.bf16.msra.mxu0 0
    %357 = vmatprep.subr.bf16.mxu0 0
    %358 = vmatpush2.bf16.msra.mxu0 0
    %359 = vmatprep.mubr.bf16.mxu0 0
    %360 = vmatmul.mubr.bf16.gmra.mxu0 %v325
    %v361 = vpop.f32.mrf.mxu0
    %v362 = vadd.f32 0.0, %v361
    %v363 = vpop.f32.mrf.mxu0
    %v364 = vpop.f32.mrf.mxu0
    %v365 = vpop.f32.mrf.mxu0
    %366 = vdwg.mxu0
    %v371 = vunpack.c.l.b16 %v289
    %v372 = vunpack.c.l.b16 %v290
    %v373 = vunpack.c.l.b16 %v291
    %v374 = vunpack.c.l.b16 %v292
    %v375 = vpack.c.b16 %v372, %v371
    %v376 = vpack.c.b16 %v374, %v373
    %379 = vmatprep.subr.bf16.mxu0 0
    %380 = vmatpush1.bf16.msra.mxu0 0
    %381 = vmatprep.subr.bf16.mxu0 0
    %382 = vmatpush1.bf16.msra.mxu0 0
    %383 = vmatprep.subr.bf16.mxu0 0
    %384 = vmatpush1.bf16.msra.mxu0 0
    %385 = vmatprep.subr.bf16.mxu0 0
    %386 = vmatpush1.bf16.msra.mxu0 0
    %387 = vmatprep.subr.bf16.mxu0 0
    %388 = vmatpush1.bf16.msra.mxu0 0
    %389 = vmatprep.subr.bf16.mxu0 0
    %390 = vmatpush1.bf16.msra.mxu0 0
    %391 = vmatprep.subr.bf16.mxu0 0
    %392 = vmatpush1.bf16.msra.mxu0 %v376
    %393 = vmatprep.subr.bf16.mxu0 0
    %394 = vmatpush1.bf16.msra.mxu0 %v375
    %395 = vmatprep.subr.bf16.mxu0 0
    %396 = vmatpush2.bf16.msra.mxu0 0
    %397 = vmatprep.subr.bf16.mxu0 0
    %398 = vmatpush2.bf16.msra.mxu0 0
    %399 = vmatprep.subr.bf16.mxu0 0
    %400 = vmatpush2.bf16.msra.mxu0 0
    %401 = vmatprep.subr.bf16.mxu0 0
    %402 = vmatpush2.bf16.msra.mxu0 0
    %403 = vmatprep.subr.bf16.mxu0 0
    %404 = vmatpush2.bf16.msra.mxu0 0
    %405 = vmatprep.subr.bf16.mxu0 0
    %406 = vmatpush2.bf16.msra.mxu0 0
    %407 = vmatprep.subr.bf16.mxu0 0
    %408 = vmatpush2.bf16.msra.mxu0 0
    %409 = vmatprep.subr.bf16.mxu0 0
    %410 = vmatpush2.bf16.msra.mxu0 0
    %411 = vmatprep.mubr.bf16.mxu0 0
    %412 = vmatmul.mubr.bf16.gmra.mxu0 %v325
    %v413 = vpop.f32.mrf.mxu0
    %v414 = vadd.f32 0.0, %v413
    %v415 = vpop.f32.mrf.mxu0
    %v416 = vpop.f32.mrf.mxu0
    %v417 = vpop.f32.mrf.mxu0
    %418 = vdwg.mxu0
    %v419 = vpack.c.bf16 %v414, %v362
    %v420 = vpack.c.bf16 %v247, %v246
    %v425 = vunpack.c.l.b16 %v293
    %v426 = vunpack.c.l.b16 %v294
    %v427 = vunpack.c.l.b16 %v295
    %v428 = vunpack.c.l.b16 %v296
    %v429 = vpack.c.b16 %v426, %v425
    %v430 = vpack.c.b16 %v428, %v427
    %v434 = vsel %vm111, %v420, 0
    %436 = vmatprep.subr.bf16.mxu0 0
    %437 = vmatpush1.bf16.msra.mxu0 0
    %438 = vmatprep.subr.bf16.mxu0 0
    %439 = vmatpush1.bf16.msra.mxu0 0
    %440 = vmatprep.subr.bf16.mxu0 0
    %441 = vmatpush1.bf16.msra.mxu0 0
    %442 = vmatprep.subr.bf16.mxu0 0
    %443 = vmatpush1.bf16.msra.mxu0 0
    %444 = vmatprep.subr.bf16.mxu0 0
    %445 = vmatpush1.bf16.msra.mxu0 0
    %446 = vmatprep.subr.bf16.mxu0 0
    %447 = vmatpush1.bf16.msra.mxu0 0
    %448 = vmatprep.subr.bf16.mxu0 0
    %449 = vmatpush1.bf16.msra.mxu0 %v430
    %450 = vmatprep.subr.bf16.mxu0 0
    %451 = vmatpush1.bf16.msra.mxu0 %v429
    %452 = vmatprep.subr.bf16.mxu0 0
    %453 = vmatpush2.bf16.msra.mxu0 0
    %454 = vmatprep.subr.bf16.mxu0 0
    %455 = vmatpush2.bf16.msra.mxu0 0
    %456 = vmatprep.subr.bf16.mxu0 0
    %457 = vmatpush2.bf16.msra.mxu0 0
    %458 = vmatprep.subr.bf16.mxu0 0
    %459 = vmatpush2.bf16.msra.mxu0 0
    %460 = vmatprep.subr.bf16.mxu0 0
    %461 = vmatpush2.bf16.msra.mxu0 0
    %462 = vmatprep.subr.bf16.mxu0 0
    %463 = vmatpush2.bf16.msra.mxu0 0
    %464 = vmatprep.subr.bf16.mxu0 0
    %465 = vmatpush2.bf16.msra.mxu0 0
    %466 = vmatprep.subr.bf16.mxu0 0
    %467 = vmatpush2.bf16.msra.mxu0 0
    %468 = vmatprep.mubr.bf16.mxu0 0
    %469 = vmatmul.mubr.bf16.gmra.mxu0 %v434
    %v470 = vpop.f32.mrf.mxu0
    %v471 = vadd.f32 0.0, %v470
    %v472 = vpop.f32.mrf.mxu0
    %v473 = vpop.f32.mrf.mxu0
    %v474 = vadd.f32 0.0, %v473
    %v475 = vpop.f32.mrf.mxu0
    %476 = vdwg.mxu0
    %v478 = vsel %vm64, %v274, 0
    %480 = vmatprep.subr.bf16.mxu0 0
    %481 = vmatpush1.bf16.msra.mxu0 0
    %482 = vmatprep.subr.bf16.mxu0 0
    %483 = vmatpush1.bf16.msra.mxu0 0
    %484 = vmatprep.subr.bf16.mxu0 0
    %485 = vmatpush1.bf16.msra.mxu0 0
    %486 = vmatprep.subr.bf16.mxu0 0
    %487 = vmatpush1.bf16.msra.mxu0 0
    %488 = vmatprep.subr.bf16.mxu0 0
    %489 = vmatpush1.bf16.msra.mxu0 0
    %490 = vmatprep.subr.bf16.mxu0 0
    %491 = vmatpush1.bf16.msra.mxu0 0
    %492 = vmatprep.subr.bf16.mxu0 0
    %493 = vmatpush1.bf16.msra.mxu0 0
    %494 = vmatprep.subr.bf16.mxu0 0
    %495 = vmatpush1.bf16.msra.mxu0 %v419
    %496 = vmatprep.subr.bf16.mxu0 0
    %497 = vmatpush2.bf16.msra.mxu0 0
    %498 = vmatprep.subr.bf16.mxu0 0
    %499 = vmatpush2.bf16.msra.mxu0 0
    %500 = vmatprep.subr.bf16.mxu0 0
    %501 = vmatpush2.bf16.msra.mxu0 0
    %502 = vmatprep.subr.bf16.mxu0 0
    %503 = vmatpush2.bf16.msra.mxu0 0
    %504 = vmatprep.subr.bf16.mxu0 0
    %505 = vmatpush2.bf16.msra.mxu0 0
    %506 = vmatprep.subr.bf16.mxu0 0
    %507 = vmatpush2.bf16.msra.mxu0 0
    %508 = vmatprep.subr.bf16.mxu0 0
    %509 = vmatpush2.bf16.msra.mxu0 0
    %510 = vmatprep.subr.bf16.mxu0 0
    %511 = vmatpush2.bf16.msra.mxu0 0
    %512 = vmatprep.mubr.bf16.mxu0 0
    %513 = vmatmul.mubr.bf16.gmra.mxu0 %v478
    %v514 = vpop.f32.mrf.mxu0
    %v515 = vadd.f32 %v471, %v514
    %v516 = vpop.f32.mrf.mxu0
    %v517 = vpop.f32.mrf.mxu0
    %v518 = vadd.f32 %v474, %v517
    %v519 = vpop.f32.mrf.mxu0
    %520 = vdwg.mxu0
    %v521 = vlaneseq
    %v522 = vshrl.u32 %v521, 7
    %v523 = vsub.s32 0, %v522
    %v524 = vrot.slane %v309, %v523
    %v525 = vadd.f32 %v515, %v524
    %v526 = vadd.f32 %v518, %v524
    %v527 = vmax.f32 %v525, 0.0
    %v528 = vmax.f32 %v526, 0.0
    %v529 = vsel %vm111, %v527, 0.0
    %v530 = vsel %vm111, %v528, 0.0
    %v531 = vadd.f32 %v529, %v530
    %v532 = vrot.slane %v531, 4
    %v533 = vadd.f32 %v531, %v532
    %v534 = vrot.slane %v533, 2
    %v535 = vadd.f32 %v533, %v534
    %v536 = vrot.slane %v535, 1
    %v537 = vadd.f32 %v535, %v536
    %v538 = vmul.f32 %v537, %v121
    %v539 = vsub.f32 %v527, %v538
    %v540 = vsub.f32 %v528, %v538
    %v541 = vmul.f32 %v539, %v539
    %v542 = vmul.f32 %v540, %v540
    %v543 = vsel %vm111, %v541, 0.0
    %v544 = vsel %vm111, %v542, 0.0
    %v545 = vadd.f32 %v543, %v544
    %v546 = vrot.slane %v545, 4
    %v547 = vadd.f32 %v545, %v546
    %v548 = vrot.slane %v547, 2
    %v549 = vadd.f32 %v547, %v548
    %v550 = vrot.slane %v549, 1
    %v551 = vadd.f32 %v549, %v550
    %v552 = vmul.f32 %v551, %v121
    %v553 = vadd.f32 %v552, 1e-05
    %v554 = vrsqrt.pop %v553
    %v555 = vmul.f32 %v539, %v554
    %v556 = vmul.f32 %v540, %v554
    %v557 = vlaneseq
    %v558 = vshrl.u32 %v557, 7
    %v559 = vsub.s32 1, %v558
    %v560 = vrot.slane %v309, %v559
    %v561 = vmul.f32 %v555, %v560
    %v562 = vmul.f32 %v556, %v560
    %v563 = vlaneseq
    %v564 = vshrl.u32 %v563, 7
    %v565 = vsub.s32 2, %v564
    %v566 = vrot.slane %v309, %v565
    %v567 = vadd.f32 %v561, %v566
    %v568 = vadd.f32 %v562, %v566
    %v569 = vpack.c.bf16 %v568, %v567
    %v570 = vlaneseq
    %v571 = vshrl.u32 %v570, 7
    %v572 = vsub.s32 3, %v571
    %v573 = vrot.slane %v309, %v572
    %v578 = vunpack.c.l.b16 %v297
    %v579 = vunpack.c.l.b16 %v298
    %v580 = vunpack.c.l.b16 %v299
    %v581 = vunpack.c.l.b16 %v300
    %v582 = vpack.c.b16 %v579, %v578
    %v583 = vpack.c.b16 %v581, %v580
    %v587 = vsel %vm111, %v569, 0
    %589 = vmatprep.subr.bf16.mxu0 0
    %590 = vmatpush1.bf16.msra.mxu0 0
    %591 = vmatprep.subr.bf16.mxu0 0
    %592 = vmatpush1.bf16.msra.mxu0 0
    %593 = vmatprep.subr.bf16.mxu0 0
    %594 = vmatpush1.bf16.msra.mxu0 0
    %595 = vmatprep.subr.bf16.mxu0 0
    %596 = vmatpush1.bf16.msra.mxu0 0
    %597 = vmatprep.subr.bf16.mxu0 0
    %598 = vmatpush1.bf16.msra.mxu0 0
    %599 = vmatprep.subr.bf16.mxu0 0
    %600 = vmatpush1.bf16.msra.mxu0 0
    %601 = vmatprep.subr.bf16.mxu0 0
    %602 = vmatpush1.bf16.msra.mxu0 %v583
    %603 = vmatprep.subr.bf16.mxu0 0
    %604 = vmatpush1.bf16.msra.mxu0 %v582
    %605 = vmatprep.subr.bf16.mxu0 0
    %606 = vmatpush2.bf16.msra.mxu0 0
    %607 = vmatprep.subr.bf16.mxu0 0
    %608 = vmatpush2.bf16.msra.mxu0 0
    %609 = vmatprep.subr.bf16.mxu0 0
    %610 = vmatpush2.bf16.msra.mxu0 0
    %611 = vmatprep.subr.bf16.mxu0 0
    %612 = vmatpush2.bf16.msra.mxu0 0
    %613 = vmatprep.subr.bf16.mxu0 0
    %614 = vmatpush2.bf16.msra.mxu0 0
    %615 = vmatprep.subr.bf16.mxu0 0
    %616 = vmatpush2.bf16.msra.mxu0 0
    %617 = vmatprep.subr.bf16.mxu0 0
    %618 = vmatpush2.bf16.msra.mxu0 0
    %619 = vmatprep.subr.bf16.mxu0 0
    %620 = vmatpush2.bf16.msra.mxu0 0
    %621 = vmatprep.mubr.bf16.mxu0 0
    %622 = vmatmul.mubr.bf16.gmra.mxu0 %v587
    %v623 = vpop.f32.mrf.mxu0
    %v624 = vadd.f32 %v573, %v623
    %v625 = vpop.f32.mrf.mxu0
    %v626 = vpop.f32.mrf.mxu0
    %v627 = vadd.f32 %v573, %v626
    %v628 = vpop.f32.mrf.mxu0
    %629 = vdwg.mxu0
    %v630 = vmax.f32 %v624, 0.0
    %v631 = vmax.f32 %v627, 0.0
    %v632 = vxor.u32 %v630, 2147483648
    %v633 = vxor.u32 %v631, 2147483648
    %v634 = vmul.f32 %v632, 1.442695
    %v635 = vpow.pop %v634
    %v636 = vmul.f32 %v633, 1.442695
    %v637 = vpow.pop %v636
    %v638 = vadd.f32 %v635, 1.0
    %v639 = vadd.f32 %v637, 1.0
    %v640 = vrcp.pop %v638
    %v641 = vmul.f32 1.0, %v640
    %v642 = vrcp.pop %v639
    %v643 = vmul.f32 1.0, %v642
    %v644 = vmul.f32 %v630, %v641
    %v645 = vmul.f32 %v631, %v643
    %v646 = vadd.f32 %v246, %v644
    %v647 = vadd.f32 %v247, %v645
    %v648 = vlaneseq
    %v649 = vshrl.u32 %v648, 7
    %v650 = vsub.s32 4, %v649
    %v651 = vrot.slane %v309, %v650
    %v652 = vmul.f32 %v644, %v651
    %v653 = vmul.f32 %v645, %v651
    %v654 = vsel %vm111, %v652, 0.0
    %655 = vadd.xlane.f32.xlu0 %v654
    %v656 = vpop.xlane.xlu0 %655
    %v657 = vsel %vm111, %v653, 0.0
    %658 = vadd.xlane.f32.xlu0 %v657
    %v659 = vpop.xlane.xlu0 %658
    %v660 = vlaneseq
    %v661 = vshrl.u32 %v660, 7
    %v662 = vsub.s32 5, %v661
    %v663 = vrot.slane %v309, %v662
    %v664 = vadd.f32 %v656, %v663
    %v665 = vadd.f32 %v659, %v663
    %v666 = vxor.u32 %v664, 2147483648
    %v667 = vxor.u32 %v665, 2147483648
    %v668 = vmul.f32 %v666, 1.442695
    %v669 = vpow.pop %v668
    %v670 = vmul.f32 %v667, 1.442695
    %v671 = vpow.pop %v670
    %v672 = vadd.f32 %v669, 1.0
    %v673 = vadd.f32 %v671, 1.0
    %v674 = vrcp.pop %v672
    %v675 = vmul.f32 1.0, %v674
    %v676 = vrcp.pop %v673
    %v677 = vmul.f32 1.0, %v676
    %679 = vset.pattern.permute.xlu0 0
    %680 = vperm.xlu0 %679, %v675
    %v681 = vpop.permute.xlu0 %680
    %684 = vset.pattern.permute.xlu0 0
    %685 = vperm.xlu0 %684, %v677
    %v686 = vpop.permute.xlu0 %685
    %v688 = vmul.f32 %v644, %v681
    %v689 = vmul.f32 %v645, %v686
    %v690 = vpack.c.bf16 %v689, %v688
    %v692 = vsel %vm64, %v284, 0
    %694 = vmatprep.subr.bf16.mxu0 0
    %695 = vmatpush1.bf16.msra.mxu0 0
    %696 = vmatprep.subr.bf16.mxu0 0
    %697 = vmatpush1.bf16.msra.mxu0 0
    %698 = vmatprep.subr.bf16.mxu0 0
    %699 = vmatpush1.bf16.msra.mxu0 0
    %700 = vmatprep.subr.bf16.mxu0 0
    %701 = vmatpush1.bf16.msra.mxu0 0
    %702 = vmatprep.subr.bf16.mxu0 0
    %703 = vmatpush1.bf16.msra.mxu0 0
    %704 = vmatprep.subr.bf16.mxu0 0
    %705 = vmatpush1.bf16.msra.mxu0 0
    %706 = vmatprep.subr.bf16.mxu0 0
    %707 = vmatpush1.bf16.msra.mxu0 0
    %708 = vmatprep.subr.bf16.mxu0 0
    %709 = vmatpush1.bf16.msra.mxu0 %v690
    %710 = vmatprep.subr.bf16.mxu0 0
    %711 = vmatpush2.bf16.msra.mxu0 0
    %712 = vmatprep.subr.bf16.mxu0 0
    %713 = vmatpush2.bf16.msra.mxu0 0
    %714 = vmatprep.subr.bf16.mxu0 0
    %715 = vmatpush2.bf16.msra.mxu0 0
    %716 = vmatprep.subr.bf16.mxu0 0
    %717 = vmatpush2.bf16.msra.mxu0 0
    %718 = vmatprep.subr.bf16.mxu0 0
    %719 = vmatpush2.bf16.msra.mxu0 0
    %720 = vmatprep.subr.bf16.mxu0 0
    %721 = vmatpush2.bf16.msra.mxu0 0
    %722 = vmatprep.subr.bf16.mxu0 0
    %723 = vmatpush2.bf16.msra.mxu0 0
    %724 = vmatprep.subr.bf16.mxu0 0
    %725 = vmatpush2.bf16.msra.mxu0 0
    %726 = vmatprep.mubr.bf16.mxu0 0
    %727 = vmatmul.mubr.bf16.gmra.mxu0 %v692
    %v728 = vpop.f32.mrf.mxu0
    %v729 = vadd.f32 %v48, %v728
    %v730 = vpop.f32.mrf.mxu0
    %v731 = vpop.f32.mrf.mxu0
    %v732 = vpop.f32.mrf.mxu0
    %733 = vdwg.mxu0
    %v734 = vpack.c.bf16 %v729, %v729
    %v735 = vlaneseq
    %v736 = vshrl.u32 %v735, 7
    %v737 = vsub.s32 6, %v736
    %v738 = vrot.slane %v309, %v737
    %v743 = vunpack.c.l.b16 %v301
    %v744 = vunpack.c.l.b16 %v302
    %v745 = vunpack.c.l.b16 %v303
    %v746 = vunpack.c.l.b16 %v304
    %v747 = vpack.c.b16 %v744, %v743
    %v748 = vpack.c.b16 %v746, %v745
    %v752 = vsel %vm111, %v734, 0
    %754 = vmatprep.subr.bf16.mxu0 0
    %755 = vmatpush1.bf16.msra.mxu0 0
    %756 = vmatprep.subr.bf16.mxu0 0
    %757 = vmatpush1.bf16.msra.mxu0 0
    %758 = vmatprep.subr.bf16.mxu0 0
    %759 = vmatpush1.bf16.msra.mxu0 0
    %760 = vmatprep.subr.bf16.mxu0 0
    %761 = vmatpush1.bf16.msra.mxu0 0
    %762 = vmatprep.subr.bf16.mxu0 0
    %763 = vmatpush1.bf16.msra.mxu0 0
    %764 = vmatprep.subr.bf16.mxu0 0
    %765 = vmatpush1.bf16.msra.mxu0 0
    %766 = vmatprep.subr.bf16.mxu0 0
    %767 = vmatpush1.bf16.msra.mxu0 %v748
    %768 = vmatprep.subr.bf16.mxu0 0
    %769 = vmatpush1.bf16.msra.mxu0 %v747
    %770 = vmatprep.subr.bf16.mxu0 0
    %771 = vmatpush2.bf16.msra.mxu0 0
    %772 = vmatprep.subr.bf16.mxu0 0
    %773 = vmatpush2.bf16.msra.mxu0 0
    %774 = vmatprep.subr.bf16.mxu0 0
    %775 = vmatpush2.bf16.msra.mxu0 0
    %776 = vmatprep.subr.bf16.mxu0 0
    %777 = vmatpush2.bf16.msra.mxu0 0
    %778 = vmatprep.subr.bf16.mxu0 0
    %779 = vmatpush2.bf16.msra.mxu0 0
    %780 = vmatprep.subr.bf16.mxu0 0
    %781 = vmatpush2.bf16.msra.mxu0 0
    %782 = vmatprep.subr.bf16.mxu0 0
    %783 = vmatpush2.bf16.msra.mxu0 0
    %784 = vmatprep.subr.bf16.mxu0 0
    %785 = vmatpush2.bf16.msra.mxu0 0
    %786 = vmatprep.mubr.bf16.mxu0 0
    %787 = vmatmul.mubr.bf16.gmra.mxu0 %v752
    %v788 = vpop.f32.mrf.mxu0
    %v789 = vadd.f32 %v738, %v788
    %v790 = vpop.f32.mrf.mxu0
    %v791 = vpop.f32.mrf.mxu0
    %v792 = vpop.f32.mrf.mxu0
    %793 = vdwg.mxu0
    %v794 = vmax.f32 %v789, 0.0
    %v795 = vsel %vm111, %v794, 0.0
    %v796 = vrot.slane %v795, 4
    %v797 = vadd.f32 %v795, %v796
    %v798 = vrot.slane %v797, 2
    %v799 = vadd.f32 %v797, %v798
    %v800 = vrot.slane %v799, 1
    %v801 = vadd.f32 %v799, %v800
    %v802 = vrcp.pop 8.0
    %v803 = vmul.f32 %v801, %v802
    %v804 = vsub.f32 %v794, %v803
    %v805 = vmul.f32 %v804, %v804
    %v806 = vsel %vm111, %v805, 0.0
    %v807 = vrot.slane %v806, 4
    %v808 = vadd.f32 %v806, %v807
    %v809 = vrot.slane %v808, 2
    %v810 = vadd.f32 %v808, %v809
    %v811 = vrot.slane %v810, 1
    %v812 = vadd.f32 %v810, %v811
    %v813 = vmul.f32 %v812, %v802
    %v814 = vadd.f32 %v813, 1e-05
    %v815 = vrsqrt.pop %v814
    %v816 = vmul.f32 %v804, %v815
    %v817 = vlaneseq
    %v818 = vshrl.u32 %v817, 7
    %v819 = vsub.s32 7, %v818
    %v820 = vrot.slane %v309, %v819
    %v821 = vmul.f32 %v816, %v820
    %v822 = vlaneseq
    %v823 = vshrl.u32 %v822, 7
    %v824 = vsub.s32 0, %v823
    %v825 = vrot.slane %v310, %v824
    %v826 = vadd.f32 %v821, %v825
    %v827 = vpack.c.bf16 %v826, %v826
    %v828 = vlaneseq
    %v829 = vshrl.u32 %v828, 7
    %v830 = vsub.s32 1, %v829
    %v831 = vrot.slane %v310, %v830
    %v836 = vunpack.c.l.b16 %v305
    %v837 = vunpack.c.l.b16 %v306
    %v838 = vunpack.c.l.b16 %v307
    %v839 = vunpack.c.l.b16 %v308
    %v840 = vpack.c.b16 %v837, %v836
    %v841 = vpack.c.b16 %v839, %v838
    %v845 = vsel %vm111, %v827, 0
    %847 = vmatprep.subr.bf16.mxu0 0
    %848 = vmatpush1.bf16.msra.mxu0 0
    %849 = vmatprep.subr.bf16.mxu0 0
    %850 = vmatpush1.bf16.msra.mxu0 0
    %851 = vmatprep.subr.bf16.mxu0 0
    %852 = vmatpush1.bf16.msra.mxu0 0
    %853 = vmatprep.subr.bf16.mxu0 0
    %854 = vmatpush1.bf16.msra.mxu0 0
    %855 = vmatprep.subr.bf16.mxu0 0
    %856 = vmatpush1.bf16.msra.mxu0 0
    %857 = vmatprep.subr.bf16.mxu0 0
    %858 = vmatpush1.bf16.msra.mxu0 0
    %859 = vmatprep.subr.bf16.mxu0 0
    %860 = vmatpush1.bf16.msra.mxu0 %v841
    %861 = vmatprep.subr.bf16.mxu0 0
    %862 = vmatpush1.bf16.msra.mxu0 %v840
    %863 = vmatprep.subr.bf16.mxu0 0
    %864 = vmatpush2.bf16.msra.mxu0 0
    %865 = vmatprep.subr.bf16.mxu0 0
    %866 = vmatpush2.bf16.msra.mxu0 0
    %867 = vmatprep.subr.bf16.mxu0 0
    %868 = vmatpush2.bf16.msra.mxu0 0
    %869 = vmatprep.subr.bf16.mxu0 0
    %870 = vmatpush2.bf16.msra.mxu0 0
    %871 = vmatprep.subr.bf16.mxu0 0
    %872 = vmatpush2.bf16.msra.mxu0 0
    %873 = vmatprep.subr.bf16.mxu0 0
    %874 = vmatpush2.bf16.msra.mxu0 0
    %875 = vmatprep.subr.bf16.mxu0 0
    %876 = vmatpush2.bf16.msra.mxu0 0
    %877 = vmatprep.subr.bf16.mxu0 0
    %878 = vmatpush2.bf16.msra.mxu0 0
    %879 = vmatprep.mubr.bf16.mxu0 0
    %880 = vmatmul.mubr.bf16.gmra.mxu0 %v845
    %v881 = vpop.f32.mrf.mxu0
    %v882 = vadd.f32 %v831, %v881
    %v883 = vpop.f32.mrf.mxu0
    %v884 = vpop.f32.mrf.mxu0
    %v885 = vpop.f32.mrf.mxu0
    %886 = vdwg.mxu0
    %v887 = vmax.f32 %v882, 0.0
    %v888 = vadd.f32 %v887, %v48
    %s889 = scalar_lea.vmem %s6, 96
    %v890 = vld [vmem:[%s889] sm:$0xf]
    %v891 = vld [vmem:[%s889 + $0x4] sm:$0xf]
    %v892 = vld [vmem:[%s889 + $0x8] sm:$0xf]
    %v893 = vld [vmem:[%s889 + $0xc] sm:$0xf]
    %v894 = vld [vmem:[%s889 + $0x10] sm:$0xf]
    %v895 = vld [vmem:[%s889 + $0x14] sm:$0xf]
    %v896 = vld [vmem:[%s889 + $0x18] sm:$0xf]
    %v897 = vld [vmem:[%s889 + $0x1c] sm:$0xf]
    %v898 = vld [vmem:[%s889 + $0x20] sm:$0xf]
    %v899 = vld [vmem:[%s889 + $0x24] sm:$0xf]
    %v900 = vld [vmem:[%s889 + $0x28] sm:$0xf]
    %v901 = vld [vmem:[%s889 + $0x2c] sm:$0xf]
    %v902 = vld [vmem:[%s889 + $0x30] sm:$0xf]
    %v903 = vld [vmem:[%s889 + $0x34] sm:$0xf]
    %v904 = vld [vmem:[%s889 + $0x38] sm:$0xf]
    %v905 = vld [vmem:[%s889 + $0x3c] sm:$0xf]
    %v906 = vld [vmem:[%s889 + $0x40] sm:$0xf]
    %v907 = vld [vmem:[%s889 + $0x44] sm:$0xf]
    %v908 = vld [vmem:[%s889 + $0x48] sm:$0xf]
    %v909 = vld [vmem:[%s889 + $0x4c] sm:$0xf]
    %v910 = vld [vmem:[%s889 + $0x50] sm:$0xf]
    %v911 = vld [vmem:[%s889 + $0x54] sm:$0xf]
    %v912 = vld [vmem:[%s889 + $0x58] sm:$0xf]
    %v913 = vld [vmem:[%s889 + $0x5c] sm:$0xf]
    %s914 = scalar_lea.vmem %s7, 16
    %v915 = vld [vmem:[%s914] sm:$0xff]
    %v916 = vld [vmem:[%s914 + $0x8] sm:$0x3]
    %v917 = vpack.c.bf16 %v888, %v888
    %v922 = vunpack.c.l.b16 %v890
    %v923 = vunpack.c.l.b16 %v891
    %v924 = vunpack.c.l.b16 %v892
    %v925 = vunpack.c.l.b16 %v893
    %v926 = vpack.c.b16 %v923, %v922
    %v927 = vpack.c.b16 %v925, %v924
    %v931 = vsel %vm111, %v917, 0
    %933 = vmatprep.subr.bf16.mxu0 0
    %934 = vmatpush1.bf16.msra.mxu0 0
    %935 = vmatprep.subr.bf16.mxu0 0
    %936 = vmatpush1.bf16.msra.mxu0 0
    %937 = vmatprep.subr.bf16.mxu0 0
    %938 = vmatpush1.bf16.msra.mxu0 0
    %939 = vmatprep.subr.bf16.mxu0 0
    %940 = vmatpush1.bf16.msra.mxu0 0
    %941 = vmatprep.subr.bf16.mxu0 0
    %942 = vmatpush1.bf16.msra.mxu0 0
    %943 = vmatprep.subr.bf16.mxu0 0
    %944 = vmatpush1.bf16.msra.mxu0 0
    %945 = vmatprep.subr.bf16.mxu0 0
    %946 = vmatpush1.bf16.msra.mxu0 %v927
    %947 = vmatprep.subr.bf16.mxu0 0
    %948 = vmatpush1.bf16.msra.mxu0 %v926
    %949 = vmatprep.subr.bf16.mxu0 0
    %950 = vmatpush2.bf16.msra.mxu0 0
    %951 = vmatprep.subr.bf16.mxu0 0
    %952 = vmatpush2.bf16.msra.mxu0 0
    %953 = vmatprep.subr.bf16.mxu0 0
    %954 = vmatpush2.bf16.msra.mxu0 0
    %955 = vmatprep.subr.bf16.mxu0 0
    %956 = vmatpush2.bf16.msra.mxu0 0
    %957 = vmatprep.subr.bf16.mxu0 0
    %958 = vmatpush2.bf16.msra.mxu0 0
    %959 = vmatprep.subr.bf16.mxu0 0
    %960 = vmatpush2.bf16.msra.mxu0 0
    %961 = vmatprep.subr.bf16.mxu0 0
    %962 = vmatpush2.bf16.msra.mxu0 0
    %963 = vmatprep.subr.bf16.mxu0 0
    %964 = vmatpush2.bf16.msra.mxu0 0
    %965 = vmatprep.mubr.bf16.mxu0 0
    %966 = vmatmul.mubr.bf16.gmra.mxu0 %v931
    %v967 = vpop.f32.mrf.mxu0
    %v968 = vadd.f32 0.0, %v967
    %v969 = vpop.f32.mrf.mxu0
    %v970 = vpop.f32.mrf.mxu0
    %v971 = vpop.f32.mrf.mxu0
    %972 = vdwg.mxu0
    %v977 = vunpack.c.l.b16 %v894
    %v978 = vunpack.c.l.b16 %v895
    %v979 = vunpack.c.l.b16 %v896
    %v980 = vunpack.c.l.b16 %v897
    %v981 = vpack.c.b16 %v978, %v977
    %v982 = vpack.c.b16 %v980, %v979
    %985 = vmatprep.subr.bf16.mxu0 0
    %986 = vmatpush1.bf16.msra.mxu0 0
    %987 = vmatprep.subr.bf16.mxu0 0
    %988 = vmatpush1.bf16.msra.mxu0 0
    %989 = vmatprep.subr.bf16.mxu0 0
    %990 = vmatpush1.bf16.msra.mxu0 0
    %991 = vmatprep.subr.bf16.mxu0 0
    %992 = vmatpush1.bf16.msra.mxu0 0
    %993 = vmatprep.subr.bf16.mxu0 0
    %994 = vmatpush1.bf16.msra.mxu0 0
    %995 = vmatprep.subr.bf16.mxu0 0
    %996 = vmatpush1.bf16.msra.mxu0 0
    %997 = vmatprep.subr.bf16.mxu0 0
    %998 = vmatpush1.bf16.msra.mxu0 %v982
    %999 = vmatprep.subr.bf16.mxu0 0
    %1000 = vmatpush1.bf16.msra.mxu0 %v981
    %1001 = vmatprep.subr.bf16.mxu0 0
    %1002 = vmatpush2.bf16.msra.mxu0 0
    %1003 = vmatprep.subr.bf16.mxu0 0
    %1004 = vmatpush2.bf16.msra.mxu0 0
    %1005 = vmatprep.subr.bf16.mxu0 0
    %1006 = vmatpush2.bf16.msra.mxu0 0
    %1007 = vmatprep.subr.bf16.mxu0 0
    %1008 = vmatpush2.bf16.msra.mxu0 0
    %1009 = vmatprep.subr.bf16.mxu0 0
    %1010 = vmatpush2.bf16.msra.mxu0 0
    %1011 = vmatprep.subr.bf16.mxu0 0
    %1012 = vmatpush2.bf16.msra.mxu0 0
    %1013 = vmatprep.subr.bf16.mxu0 0
    %1014 = vmatpush2.bf16.msra.mxu0 0
    %1015 = vmatprep.subr.bf16.mxu0 0
    %1016 = vmatpush2.bf16.msra.mxu0 0
    %1017 = vmatprep.mubr.bf16.mxu0 0
    %1018 = vmatmul.mubr.bf16.gmra.mxu0 %v931
    %v1019 = vpop.f32.mrf.mxu0
    %v1020 = vadd.f32 0.0, %v1019
    %v1021 = vpop.f32.mrf.mxu0
    %v1022 = vpop.f32.mrf.mxu0
    %v1023 = vpop.f32.mrf.mxu0
    %1024 = vdwg.mxu0
    %v1025 = vpack.c.bf16 %v1020, %v968
    %v1026 = vpack.c.bf16 %v647, %v646
    %v1031 = vunpack.c.l.b16 %v898
    %v1032 = vunpack.c.l.b16 %v899
    %v1033 = vunpack.c.l.b16 %v900
    %v1034 = vunpack.c.l.b16 %v901
    %v1035 = vpack.c.b16 %v1032, %v1031
    %v1036 = vpack.c.b16 %v1034, %v1033
    %v1040 = vsel %vm111, %v1026, 0
    %1042 = vmatprep.subr.bf16.mxu0 0
    %1043 = vmatpush1.bf16.msra.mxu0 0
    %1044 = vmatprep.subr.bf16.mxu0 0
    %1045 = vmatpush1.bf16.msra.mxu0 0
    %1046 = vmatprep.subr.bf16.mxu0 0
    %1047 = vmatpush1.bf16.msra.mxu0 0
    %1048 = vmatprep.subr.bf16.mxu0 0
    %1049 = vmatpush1.bf16.msra.mxu0 0
    %1050 = vmatprep.subr.bf16.mxu0 0
    %1051 = vmatpush1.bf16.msra.mxu0 0
    %1052 = vmatprep.subr.bf16.mxu0 0
    %1053 = vmatpush1.bf16.msra.mxu0 0
    %1054 = vmatprep.subr.bf16.mxu0 0
    %1055 = vmatpush1.bf16.msra.mxu0 %v1036
    %1056 = vmatprep.subr.bf16.mxu0 0
    %1057 = vmatpush1.bf16.msra.mxu0 %v1035
    %1058 = vmatprep.subr.bf16.mxu0 0
    %1059 = vmatpush2.bf16.msra.mxu0 0
    %1060 = vmatprep.subr.bf16.mxu0 0
    %1061 = vmatpush2.bf16.msra.mxu0 0
    %1062 = vmatprep.subr.bf16.mxu0 0
    %1063 = vmatpush2.bf16.msra.mxu0 0
    %1064 = vmatprep.subr.bf16.mxu0 0
    %1065 = vmatpush2.bf16.msra.mxu0 0
    %1066 = vmatprep.subr.bf16.mxu0 0
    %1067 = vmatpush2.bf16.msra.mxu0 0
    %1068 = vmatprep.subr.bf16.mxu0 0
    %1069 = vmatpush2.bf16.msra.mxu0 0
    %1070 = vmatprep.subr.bf16.mxu0 0
    %1071 = vmatpush2.bf16.msra.mxu0 0
    %1072 = vmatprep.subr.bf16.mxu0 0
    %1073 = vmatpush2.bf16.msra.mxu0 0
    %1074 = vmatprep.mubr.bf16.mxu0 0
    %1075 = vmatmul.mubr.bf16.gmra.mxu0 %v1040
    %v1076 = vpop.f32.mrf.mxu0
    %v1077 = vadd.f32 0.0, %v1076
    %v1078 = vpop.f32.mrf.mxu0
    %v1079 = vpop.f32.mrf.mxu0
    %v1080 = vadd.f32 0.0, %v1079
    %v1081 = vpop.f32.mrf.mxu0
    %1082 = vdwg.mxu0
    %1083 = vmatprep.subr.bf16.mxu0 0
    %1084 = vmatpush1.bf16.msra.mxu0 0
    %1085 = vmatprep.subr.bf16.mxu0 0
    %1086 = vmatpush1.bf16.msra.mxu0 0
    %1087 = vmatprep.subr.bf16.mxu0 0
    %1088 = vmatpush1.bf16.msra.mxu0 0
    %1089 = vmatprep.subr.bf16.mxu0 0
    %1090 = vmatpush1.bf16.msra.mxu0 0
    %1091 = vmatprep.subr.bf16.mxu0 0
    %1092 = vmatpush1.bf16.msra.mxu0 0
    %1093 = vmatprep.subr.bf16.mxu0 0
    %1094 = vmatpush1.bf16.msra.mxu0 0
    %1095 = vmatprep.subr.bf16.mxu0 0
    %1096 = vmatpush1.bf16.msra.mxu0 0
    %1097 = vmatprep.subr.bf16.mxu0 0
    %1098 = vmatpush1.bf16.msra.mxu0 %v1025
    %1099 = vmatprep.subr.bf16.mxu0 0
    %1100 = vmatpush2.bf16.msra.mxu0 0
    %1101 = vmatprep.subr.bf16.mxu0 0
    %1102 = vmatpush2.bf16.msra.mxu0 0
    %1103 = vmatprep.subr.bf16.mxu0 0
    %1104 = vmatpush2.bf16.msra.mxu0 0
    %1105 = vmatprep.subr.bf16.mxu0 0
    %1106 = vmatpush2.bf16.msra.mxu0 0
    %1107 = vmatprep.subr.bf16.mxu0 0
    %1108 = vmatpush2.bf16.msra.mxu0 0
    %1109 = vmatprep.subr.bf16.mxu0 0
    %1110 = vmatpush2.bf16.msra.mxu0 0
    %1111 = vmatprep.subr.bf16.mxu0 0
    %1112 = vmatpush2.bf16.msra.mxu0 0
    %1113 = vmatprep.subr.bf16.mxu0 0
    %1114 = vmatpush2.bf16.msra.mxu0 0
    %1115 = vmatprep.mubr.bf16.mxu0 0
    %1116 = vmatmul.mubr.bf16.gmra.mxu0 %v478
    %v1117 = vpop.f32.mrf.mxu0
    %v1118 = vadd.f32 %v1077, %v1117
    %v1119 = vpop.f32.mrf.mxu0
    %v1120 = vpop.f32.mrf.mxu0
    %v1121 = vadd.f32 %v1080, %v1120
    %v1122 = vpop.f32.mrf.mxu0
    %1123 = vdwg.mxu0
    %v1124 = vlaneseq
    %v1125 = vshrl.u32 %v1124, 7
    %v1126 = vsub.s32 0, %v1125
    %v1127 = vrot.slane %v915, %v1126
    %v1128 = vadd.f32 %v1118, %v1127
    %v1129 = vadd.f32 %v1121, %v1127
    %v1130 = vmax.f32 %v1128, 0.0
    %v1131 = vmax.f32 %v1129, 0.0
    %v1132 = vsel %vm111, %v1130, 0.0
    %v1133 = vsel %vm111, %v1131, 0.0
    %v1134 = vadd.f32 %v1132, %v1133
    %v1135 = vrot.slane %v1134, 4
    %v1136 = vadd.f32 %v1134, %v1135
    %v1137 = vrot.slane %v1136, 2
    %v1138 = vadd.f32 %v1136, %v1137
    %v1139 = vrot.slane %v1138, 1
    %v1140 = vadd.f32 %v1138, %v1139
    %v1141 = vmul.f32 %v1140, %v121
    %v1142 = vsub.f32 %v1130, %v1141
    %v1143 = vsub.f32 %v1131, %v1141
    %v1144 = vmul.f32 %v1142, %v1142
    %v1145 = vmul.f32 %v1143, %v1143
    %v1146 = vsel %vm111, %v1144, 0.0
    %v1147 = vsel %vm111, %v1145, 0.0
    %v1148 = vadd.f32 %v1146, %v1147
    %v1149 = vrot.slane %v1148, 4
    %v1150 = vadd.f32 %v1148, %v1149
    %v1151 = vrot.slane %v1150, 2
    %v1152 = vadd.f32 %v1150, %v1151
    %v1153 = vrot.slane %v1152, 1
    %v1154 = vadd.f32 %v1152, %v1153
    %v1155 = vmul.f32 %v1154, %v121
    %v1156 = vadd.f32 %v1155, 1e-05
    %v1157 = vrsqrt.pop %v1156
    %v1158 = vmul.f32 %v1142, %v1157
    %v1159 = vmul.f32 %v1143, %v1157
    %v1160 = vlaneseq
    %v1161 = vshrl.u32 %v1160, 7
    %v1162 = vsub.s32 1, %v1161
    %v1163 = vrot.slane %v915, %v1162
    %v1164 = vmul.f32 %v1158, %v1163
    %v1165 = vmul.f32 %v1159, %v1163
    %v1166 = vlaneseq
    %v1167 = vshrl.u32 %v1166, 7
    %v1168 = vsub.s32 2, %v1167
    %v1169 = vrot.slane %v915, %v1168
    %v1170 = vadd.f32 %v1164, %v1169
    %v1171 = vadd.f32 %v1165, %v1169
    %v1172 = vpack.c.bf16 %v1171, %v1170
    %v1173 = vlaneseq
    %v1174 = vshrl.u32 %v1173, 7
    %v1175 = vsub.s32 3, %v1174
    %v1176 = vrot.slane %v915, %v1175
    %v1181 = vunpack.c.l.b16 %v902
    %v1182 = vunpack.c.l.b16 %v903
    %v1183 = vunpack.c.l.b16 %v904
    %v1184 = vunpack.c.l.b16 %v905
    %v1185 = vpack.c.b16 %v1182, %v1181
    %v1186 = vpack.c.b16 %v1184, %v1183
    %v1190 = vsel %vm111, %v1172, 0
    %1192 = vmatprep.subr.bf16.mxu0 0
    %1193 = vmatpush1.bf16.msra.mxu0 0
    %1194 = vmatprep.subr.bf16.mxu0 0
    %1195 = vmatpush1.bf16.msra.mxu0 0
    %1196 = vmatprep.subr.bf16.mxu0 0
    %1197 = vmatpush1.bf16.msra.mxu0 0
    %1198 = vmatprep.subr.bf16.mxu0 0
    %1199 = vmatpush1.bf16.msra.mxu0 0
    %1200 = vmatprep.subr.bf16.mxu0 0
    %1201 = vmatpush1.bf16.msra.mxu0 0
    %1202 = vmatprep.subr.bf16.mxu0 0
    %1203 = vmatpush1.bf16.msra.mxu0 0
    %1204 = vmatprep.subr.bf16.mxu0 0
    %1205 = vmatpush1.bf16.msra.mxu0 %v1186
    %1206 = vmatprep.subr.bf16.mxu0 0
    %1207 = vmatpush1.bf16.msra.mxu0 %v1185
    %1208 = vmatprep.subr.bf16.mxu0 0
    %1209 = vmatpush2.bf16.msra.mxu0 0
    %1210 = vmatprep.subr.bf16.mxu0 0
    %1211 = vmatpush2.bf16.msra.mxu0 0
    %1212 = vmatprep.subr.bf16.mxu0 0
    %1213 = vmatpush2.bf16.msra.mxu0 0
    %1214 = vmatprep.subr.bf16.mxu0 0
    %1215 = vmatpush2.bf16.msra.mxu0 0
    %1216 = vmatprep.subr.bf16.mxu0 0
    %1217 = vmatpush2.bf16.msra.mxu0 0
    %1218 = vmatprep.subr.bf16.mxu0 0
    %1219 = vmatpush2.bf16.msra.mxu0 0
    %1220 = vmatprep.subr.bf16.mxu0 0
    %1221 = vmatpush2.bf16.msra.mxu0 0
    %1222 = vmatprep.subr.bf16.mxu0 0
    %1223 = vmatpush2.bf16.msra.mxu0 0
    %1224 = vmatprep.mubr.bf16.mxu0 0
    %1225 = vmatmul.mubr.bf16.gmra.mxu0 %v1190
    %v1226 = vpop.f32.mrf.mxu0
    %v1227 = vadd.f32 %v1176, %v1226
    %v1228 = vpop.f32.mrf.mxu0
    %v1229 = vpop.f32.mrf.mxu0
    %v1230 = vadd.f32 %v1176, %v1229
    %v1231 = vpop.f32.mrf.mxu0
    %1232 = vdwg.mxu0
    %v1233 = vmax.f32 %v1227, 0.0
    %v1234 = vmax.f32 %v1230, 0.0
    %v1235 = vxor.u32 %v1233, 2147483648
    %v1236 = vxor.u32 %v1234, 2147483648
    %v1237 = vmul.f32 %v1235, 1.442695
    %v1238 = vpow.pop %v1237
    %v1239 = vmul.f32 %v1236, 1.442695
    %v1240 = vpow.pop %v1239
    %v1241 = vadd.f32 %v1238, 1.0
    %v1242 = vadd.f32 %v1240, 1.0
    %v1243 = vrcp.pop %v1241
    %v1244 = vmul.f32 1.0, %v1243
    %v1245 = vrcp.pop %v1242
    %v1246 = vmul.f32 1.0, %v1245
    %v1247 = vmul.f32 %v1233, %v1244
    %v1248 = vmul.f32 %v1234, %v1246
    %v1249 = vadd.f32 %v646, %v1247
    %v1250 = vadd.f32 %v647, %v1248
    %v1251 = vlaneseq
    %v1252 = vshrl.u32 %v1251, 7
    %v1253 = vsub.s32 4, %v1252
    %v1254 = vrot.slane %v915, %v1253
    %v1255 = vmul.f32 %v1247, %v1254
    %v1256 = vmul.f32 %v1248, %v1254
    %v1257 = vsel %vm111, %v1255, 0.0
    %1258 = vadd.xlane.f32.xlu0 %v1257
    %v1259 = vpop.xlane.xlu0 %1258
    %v1260 = vsel %vm111, %v1256, 0.0
    %1261 = vadd.xlane.f32.xlu0 %v1260
    %v1262 = vpop.xlane.xlu0 %1261
    %v1263 = vlaneseq
    %v1264 = vshrl.u32 %v1263, 7
    %v1265 = vsub.s32 5, %v1264
    %v1266 = vrot.slane %v915, %v1265
    %v1267 = vadd.f32 %v1259, %v1266
    %v1268 = vadd.f32 %v1262, %v1266
    %v1269 = vxor.u32 %v1267, 2147483648
    %v1270 = vxor.u32 %v1268, 2147483648
    %v1271 = vmul.f32 %v1269, 1.442695
    %v1272 = vpow.pop %v1271
    %v1273 = vmul.f32 %v1270, 1.442695
    %v1274 = vpow.pop %v1273
    %v1275 = vadd.f32 %v1272, 1.0
    %v1276 = vadd.f32 %v1274, 1.0
    %v1277 = vrcp.pop %v1275
    %v1278 = vmul.f32 1.0, %v1277
    %v1279 = vrcp.pop %v1276
    %v1280 = vmul.f32 1.0, %v1279
    %1282 = vset.pattern.permute.xlu0 0
    %1283 = vperm.xlu0 %1282, %v1278
    %v1284 = vpop.permute.xlu0 %1283
    %1287 = vset.pattern.permute.xlu0 0
    %1288 = vperm.xlu0 %1287, %v1280
    %v1289 = vpop.permute.xlu0 %1288
    %v1291 = vmul.f32 %v1247, %v1284
    %v1292 = vmul.f32 %v1248, %v1289
    %v1293 = vpack.c.bf16 %v1292, %v1291
    %1294 = vmatprep.subr.bf16.mxu0 0
    %1295 = vmatpush1.bf16.msra.mxu0 0
    %1296 = vmatprep.subr.bf16.mxu0 0
    %1297 = vmatpush1.bf16.msra.mxu0 0
    %1298 = vmatprep.subr.bf16.mxu0 0
    %1299 = vmatpush1.bf16.msra.mxu0 0
    %1300 = vmatprep.subr.bf16.mxu0 0
    %1301 = vmatpush1.bf16.msra.mxu0 0
    %1302 = vmatprep.subr.bf16.mxu0 0
    %1303 = vmatpush1.bf16.msra.mxu0 0
    %1304 = vmatprep.subr.bf16.mxu0 0
    %1305 = vmatpush1.bf16.msra.mxu0 0
    %1306 = vmatprep.subr.bf16.mxu0 0
    %1307 = vmatpush1.bf16.msra.mxu0 0
    %1308 = vmatprep.subr.bf16.mxu0 0
    %1309 = vmatpush1.bf16.msra.mxu0 %v1293
    %1310 = vmatprep.subr.bf16.mxu0 0
    %1311 = vmatpush2.bf16.msra.mxu0 0
    %1312 = vmatprep.subr.bf16.mxu0 0
    %1313 = vmatpush2.bf16.msra.mxu0 0
    %1314 = vmatprep.subr.bf16.mxu0 0
    %1315 = vmatpush2.bf16.msra.mxu0 0
    %1316 = vmatprep.subr.bf16.mxu0 0
    %1317 = vmatpush2.bf16.msra.mxu0 0
    %1318 = vmatprep.subr.bf16.mxu0 0
    %1319 = vmatpush2.bf16.msra.mxu0 0
    %1320 = vmatprep.subr.bf16.mxu0 0
    %1321 = vmatpush2.bf16.msra.mxu0 0
    %1322 = vmatprep.subr.bf16.mxu0 0
    %1323 = vmatpush2.bf16.msra.mxu0 0
    %1324 = vmatprep.subr.bf16.mxu0 0
    %1325 = vmatpush2.bf16.msra.mxu0 0
    %1326 = vmatprep.mubr.bf16.mxu0 0
    %1327 = vmatmul.mubr.bf16.gmra.mxu0 %v692
    %v1328 = vpop.f32.mrf.mxu0
    %v1329 = vadd.f32 %v888, %v1328
    %v1330 = vpop.f32.mrf.mxu0
    %v1331 = vpop.f32.mrf.mxu0
    %v1332 = vpop.f32.mrf.mxu0
    %1333 = vdwg.mxu0
    %v1334 = vpack.c.bf16 %v1329, %v1329
    %v1335 = vlaneseq
    %v1336 = vshrl.u32 %v1335, 7
    %v1337 = vsub.s32 6, %v1336
    %v1338 = vrot.slane %v915, %v1337
    %v1343 = vunpack.c.l.b16 %v906
    %v1344 = vunpack.c.l.b16 %v907
    %v1345 = vunpack.c.l.b16 %v908
    %v1346 = vunpack.c.l.b16 %v909
    %v1347 = vpack.c.b16 %v1344, %v1343
    %v1348 = vpack.c.b16 %v1346, %v1345
    %v1352 = vsel %vm111, %v1334, 0
    %1354 = vmatprep.subr.bf16.mxu0 0
    %1355 = vmatpush1.bf16.msra.mxu0 0
    %1356 = vmatprep.subr.bf16.mxu0 0
    %1357 = vmatpush1.bf16.msra.mxu0 0
    %1358 = vmatprep.subr.bf16.mxu0 0
    %1359 = vmatpush1.bf16.msra.mxu0 0
    %1360 = vmatprep.subr.bf16.mxu0 0
    %1361 = vmatpush1.bf16.msra.mxu0 0
    %1362 = vmatprep.subr.bf16.mxu0 0
    %1363 = vmatpush1.bf16.msra.mxu0 0
    %1364 = vmatprep.subr.bf16.mxu0 0
    %1365 = vmatpush1.bf16.msra.mxu0 0
    %1366 = vmatprep.subr.bf16.mxu0 0
    %1367 = vmatpush1.bf16.msra.mxu0 %v1348
    %1368 = vmatprep.subr.bf16.mxu0 0
    %1369 = vmatpush1.bf16.msra.mxu0 %v1347
    %1370 = vmatprep.subr.bf16.mxu0 0
    %1371 = vmatpush2.bf16.msra.mxu0 0
    %1372 = vmatprep.subr.bf16.mxu0 0
    %1373 = vmatpush2.bf16.msra.mxu0 0
    %1374 = vmatprep.subr.bf16.mxu0 0
    %1375 = vmatpush2.bf16.msra.mxu0 0
    %1376 = vmatprep.subr.bf16.mxu0 0
    %1377 = vmatpush2.bf16.msra.mxu0 0
    %1378 = vmatprep.subr.bf16.mxu0 0
    %1379 = vmatpush2.bf16.msra.mxu0 0
    %1380 = vmatprep.subr.bf16.mxu0 0
    %1381 = vmatpush2.bf16.msra.mxu0 0
    %1382 = vmatprep.subr.bf16.mxu0 0
    %1383 = vmatpush2.bf16.msra.mxu0 0
    %1384 = vmatprep.subr.bf16.mxu0 0
    %1385 = vmatpush2.bf16.msra.mxu0 0
    %1386 = vmatprep.mubr.bf16.mxu0 0
    %1387 = vmatmul.mubr.bf16.gmra.mxu0 %v1352
    %v1388 = vpop.f32.mrf.mxu0
    %v1389 = vadd.f32 %v1338, %v1388
    %v1390 = vpop.f32.mrf.mxu0
    %v1391 = vpop.f32.mrf.mxu0
    %v1392 = vpop.f32.mrf.mxu0
    %1393 = vdwg.mxu0
    %v1394 = vmax.f32 %v1389, 0.0
    %v1395 = vsel %vm111, %v1394, 0.0
    %v1396 = vrot.slane %v1395, 4
    %v1397 = vadd.f32 %v1395, %v1396
    %v1398 = vrot.slane %v1397, 2
    %v1399 = vadd.f32 %v1397, %v1398
    %v1400 = vrot.slane %v1399, 1
    %v1401 = vadd.f32 %v1399, %v1400
    %v1402 = vmul.f32 %v1401, %v802
    %v1403 = vsub.f32 %v1394, %v1402
    %v1404 = vmul.f32 %v1403, %v1403
    %v1405 = vsel %vm111, %v1404, 0.0
    %v1406 = vrot.slane %v1405, 4
    %v1407 = vadd.f32 %v1405, %v1406
    %v1408 = vrot.slane %v1407, 2
    %v1409 = vadd.f32 %v1407, %v1408
    %v1410 = vrot.slane %v1409, 1
    %v1411 = vadd.f32 %v1409, %v1410
    %v1412 = vmul.f32 %v1411, %v802
    %v1413 = vadd.f32 %v1412, 1e-05
    %v1414 = vrsqrt.pop %v1413
    %v1415 = vmul.f32 %v1403, %v1414
    %v1416 = vlaneseq
    %v1417 = vshrl.u32 %v1416, 7
    %v1418 = vsub.s32 7, %v1417
    %v1419 = vrot.slane %v915, %v1418
    %v1420 = vmul.f32 %v1415, %v1419
    %v1421 = vlaneseq
    %v1422 = vshrl.u32 %v1421, 7
    %v1423 = vsub.s32 0, %v1422
    %v1424 = vrot.slane %v916, %v1423
    %v1425 = vadd.f32 %v1420, %v1424
    %v1426 = vpack.c.bf16 %v1425, %v1425
    %v1427 = vlaneseq
    %v1428 = vshrl.u32 %v1427, 7
    %v1429 = vsub.s32 1, %v1428
    %v1430 = vrot.slane %v916, %v1429
    %v1435 = vunpack.c.l.b16 %v910
    %v1436 = vunpack.c.l.b16 %v911
    %v1437 = vunpack.c.l.b16 %v912
    %v1438 = vunpack.c.l.b16 %v913
    %v1439 = vpack.c.b16 %v1436, %v1435
    %v1440 = vpack.c.b16 %v1438, %v1437
    %v1444 = vsel %vm111, %v1426, 0
    %1446 = vmatprep.subr.bf16.mxu0 0
    %1447 = vmatpush1.bf16.msra.mxu0 0
    %1448 = vmatprep.subr.bf16.mxu0 0
    %1449 = vmatpush1.bf16.msra.mxu0 0
    %1450 = vmatprep.subr.bf16.mxu0 0
    %1451 = vmatpush1.bf16.msra.mxu0 0
    %1452 = vmatprep.subr.bf16.mxu0 0
    %1453 = vmatpush1.bf16.msra.mxu0 0
    %1454 = vmatprep.subr.bf16.mxu0 0
    %1455 = vmatpush1.bf16.msra.mxu0 0
    %1456 = vmatprep.subr.bf16.mxu0 0
    %1457 = vmatpush1.bf16.msra.mxu0 0
    %1458 = vmatprep.subr.bf16.mxu0 0
    %1459 = vmatpush1.bf16.msra.mxu0 %v1440
    %1460 = vmatprep.subr.bf16.mxu0 0
    %1461 = vmatpush1.bf16.msra.mxu0 %v1439
    %1462 = vmatprep.subr.bf16.mxu0 0
    %1463 = vmatpush2.bf16.msra.mxu0 0
    %1464 = vmatprep.subr.bf16.mxu0 0
    %1465 = vmatpush2.bf16.msra.mxu0 0
    %1466 = vmatprep.subr.bf16.mxu0 0
    %1467 = vmatpush2.bf16.msra.mxu0 0
    %1468 = vmatprep.subr.bf16.mxu0 0
    %1469 = vmatpush2.bf16.msra.mxu0 0
    %1470 = vmatprep.subr.bf16.mxu0 0
    %1471 = vmatpush2.bf16.msra.mxu0 0
    %1472 = vmatprep.subr.bf16.mxu0 0
    %1473 = vmatpush2.bf16.msra.mxu0 0
    %1474 = vmatprep.subr.bf16.mxu0 0
    %1475 = vmatpush2.bf16.msra.mxu0 0
    %1476 = vmatprep.subr.bf16.mxu0 0
    %1477 = vmatpush2.bf16.msra.mxu0 0
    %1478 = vmatprep.mubr.bf16.mxu0 0
    %1479 = vmatmul.mubr.bf16.gmra.mxu0 %v1444
    %v1480 = vpop.f32.mrf.mxu0
    %v1481 = vadd.f32 %v1430, %v1480
    %v1482 = vpop.f32.mrf.mxu0
    %v1483 = vpop.f32.mrf.mxu0
    %v1484 = vpop.f32.mrf.mxu0
    %1485 = vdwg.mxu0
    %v1486 = vmax.f32 %v1481, 0.0
    %v1487 = vadd.f32 %v1486, %v888
    %s1488 = scalar_lea.vmem %s6, 192
    %v1489 = vld [vmem:[%s1488] sm:$0xf]
    %v1490 = vld [vmem:[%s1488 + $0x4] sm:$0xf]
    %v1491 = vld [vmem:[%s1488 + $0x8] sm:$0xf]
    %v1492 = vld [vmem:[%s1488 + $0xc] sm:$0xf]
    %v1493 = vld [vmem:[%s1488 + $0x10] sm:$0xf]
    %v1494 = vld [vmem:[%s1488 + $0x14] sm:$0xf]
    %v1495 = vld [vmem:[%s1488 + $0x18] sm:$0xf]
    %v1496 = vld [vmem:[%s1488 + $0x1c] sm:$0xf]
    %v1497 = vld [vmem:[%s1488 + $0x20] sm:$0xf]
    %v1498 = vld [vmem:[%s1488 + $0x24] sm:$0xf]
    %v1499 = vld [vmem:[%s1488 + $0x28] sm:$0xf]
    %v1500 = vld [vmem:[%s1488 + $0x2c] sm:$0xf]
    %v1501 = vld [vmem:[%s1488 + $0x30] sm:$0xf]
    %v1502 = vld [vmem:[%s1488 + $0x34] sm:$0xf]
    %v1503 = vld [vmem:[%s1488 + $0x38] sm:$0xf]
    %v1504 = vld [vmem:[%s1488 + $0x3c] sm:$0xf]
    %v1505 = vld [vmem:[%s1488 + $0x40] sm:$0xf]
    %v1506 = vld [vmem:[%s1488 + $0x44] sm:$0xf]
    %v1507 = vld [vmem:[%s1488 + $0x48] sm:$0xf]
    %v1508 = vld [vmem:[%s1488 + $0x4c] sm:$0xf]
    %v1509 = vld [vmem:[%s1488 + $0x50] sm:$0xf]
    %v1510 = vld [vmem:[%s1488 + $0x54] sm:$0xf]
    %v1511 = vld [vmem:[%s1488 + $0x58] sm:$0xf]
    %v1512 = vld [vmem:[%s1488 + $0x5c] sm:$0xf]
    %s1513 = scalar_lea.vmem %s7, 32
    %v1514 = vld [vmem:[%s1513] sm:$0xff]
    %v1515 = vld [vmem:[%s1513 + $0x8] sm:$0x3]
    %v1516 = vpack.c.bf16 %v1487, %v1487
    %v1521 = vunpack.c.l.b16 %v1489
    %v1522 = vunpack.c.l.b16 %v1490
    %v1523 = vunpack.c.l.b16 %v1491
    %v1524 = vunpack.c.l.b16 %v1492
    %v1525 = vpack.c.b16 %v1522, %v1521
    %v1526 = vpack.c.b16 %v1524, %v1523
    %v1530 = vsel %vm111, %v1516, 0
    %1532 = vmatprep.subr.bf16.mxu0 0
    %1533 = vmatpush1.bf16.msra.mxu0 0
    %1534 = vmatprep.subr.bf16.mxu0 0
    %1535 = vmatpush1.bf16.msra.mxu0 0
    %1536 = vmatprep.subr.bf16.mxu0 0
    %1537 = vmatpush1.bf16.msra.mxu0 0
    %1538 = vmatprep.subr.bf16.mxu0 0
    %1539 = vmatpush1.bf16.msra.mxu0 0
    %1540 = vmatprep.subr.bf16.mxu0 0
    %1541 = vmatpush1.bf16.msra.mxu0 0
    %1542 = vmatprep.subr.bf16.mxu0 0
    %1543 = vmatpush1.bf16.msra.mxu0 0
    %1544 = vmatprep.subr.bf16.mxu0 0
    %1545 = vmatpush1.bf16.msra.mxu0 %v1526
    %1546 = vmatprep.subr.bf16.mxu0 0
    %1547 = vmatpush1.bf16.msra.mxu0 %v1525
    %1548 = vmatprep.subr.bf16.mxu0 0
    %1549 = vmatpush2.bf16.msra.mxu0 0
    %1550 = vmatprep.subr.bf16.mxu0 0
    %1551 = vmatpush2.bf16.msra.mxu0 0
    %1552 = vmatprep.subr.bf16.mxu0 0
    %1553 = vmatpush2.bf16.msra.mxu0 0
    %1554 = vmatprep.subr.bf16.mxu0 0
    %1555 = vmatpush2.bf16.msra.mxu0 0
    %1556 = vmatprep.subr.bf16.mxu0 0
    %1557 = vmatpush2.bf16.msra.mxu0 0
    %1558 = vmatprep.subr.bf16.mxu0 0
    %1559 = vmatpush2.bf16.msra.mxu0 0
    %1560 = vmatprep.subr.bf16.mxu0 0
    %1561 = vmatpush2.bf16.msra.mxu0 0
    %1562 = vmatprep.subr.bf16.mxu0 0
    %1563 = vmatpush2.bf16.msra.mxu0 0
    %1564 = vmatprep.mubr.bf16.mxu0 0
    %1565 = vmatmul.mubr.bf16.gmra.mxu0 %v1530
    %v1566 = vpop.f32.mrf.mxu0
    %v1567 = vadd.f32 0.0, %v1566
    %v1568 = vpop.f32.mrf.mxu0
    %v1569 = vpop.f32.mrf.mxu0
    %v1570 = vpop.f32.mrf.mxu0
    %1571 = vdwg.mxu0
    %v1576 = vunpack.c.l.b16 %v1493
    %v1577 = vunpack.c.l.b16 %v1494
    %v1578 = vunpack.c.l.b16 %v1495
    %v1579 = vunpack.c.l.b16 %v1496
    %v1580 = vpack.c.b16 %v1577, %v1576
    %v1581 = vpack.c.b16 %v1579, %v1578
    %1584 = vmatprep.subr.bf16.mxu0 0
    %1585 = vmatpush1.bf16.msra.mxu0 0
    %1586 = vmatprep.subr.bf16.mxu0 0
    %1587 = vmatpush1.bf16.msra.mxu0 0
    %1588 = vmatprep.subr.bf16.mxu0 0
    %1589 = vmatpush1.bf16.msra.mxu0 0
    %1590 = vmatprep.subr.bf16.mxu0 0
    %1591 = vmatpush1.bf16.msra.mxu0 0
    %1592 = vmatprep.subr.bf16.mxu0 0
    %1593 = vmatpush1.bf16.msra.mxu0 0
    %1594 = vmatprep.subr.bf16.mxu0 0
    %1595 = vmatpush1.bf16.msra.mxu0 0
    %1596 = vmatprep.subr.bf16.mxu0 0
    %1597 = vmatpush1.bf16.msra.mxu0 %v1581
    %1598 = vmatprep.subr.bf16.mxu0 0
    %1599 = vmatpush1.bf16.msra.mxu0 %v1580
    %1600 = vmatprep.subr.bf16.mxu0 0
    %1601 = vmatpush2.bf16.msra.mxu0 0
    %1602 = vmatprep.subr.bf16.mxu0 0
    %1603 = vmatpush2.bf16.msra.mxu0 0
    %1604 = vmatprep.subr.bf16.mxu0 0
    %1605 = vmatpush2.bf16.msra.mxu0 0
    %1606 = vmatprep.subr.bf16.mxu0 0
    %1607 = vmatpush2.bf16.msra.mxu0 0
    %1608 = vmatprep.subr.bf16.mxu0 0
    %1609 = vmatpush2.bf16.msra.mxu0 0
    %1610 = vmatprep.subr.bf16.mxu0 0
    %1611 = vmatpush2.bf16.msra.mxu0 0
    %1612 = vmatprep.subr.bf16.mxu0 0
    %1613 = vmatpush2.bf16.msra.mxu0 0
    %1614 = vmatprep.subr.bf16.mxu0 0
    %1615 = vmatpush2.bf16.msra.mxu0 0
    %1616 = vmatprep.mubr.bf16.mxu0 0
    %1617 = vmatmul.mubr.bf16.gmra.mxu0 %v1530
    %v1618 = vpop.f32.mrf.mxu0
    %v1619 = vadd.f32 0.0, %v1618
    %v1620 = vpop.f32.mrf.mxu0
    %v1621 = vpop.f32.mrf.mxu0
    %v1622 = vpop.f32.mrf.mxu0
    %1623 = vdwg.mxu0
    %v1624 = vpack.c.bf16 %v1619, %v1567
    %v1625 = vpack.c.bf16 %v1250, %v1249
    %v1630 = vunpack.c.l.b16 %v1497
    %v1631 = vunpack.c.l.b16 %v1498
    %v1632 = vunpack.c.l.b16 %v1499
    %v1633 = vunpack.c.l.b16 %v1500
    %v1634 = vpack.c.b16 %v1631, %v1630
    %v1635 = vpack.c.b16 %v1633, %v1632
    %v1639 = vsel %vm111, %v1625, 0
    %1641 = vmatprep.subr.bf16.mxu0 0
    %1642 = vmatpush1.bf16.msra.mxu0 0
    %1643 = vmatprep.subr.bf16.mxu0 0
    %1644 = vmatpush1.bf16.msra.mxu0 0
    %1645 = vmatprep.subr.bf16.mxu0 0
    %1646 = vmatpush1.bf16.msra.mxu0 0
    %1647 = vmatprep.subr.bf16.mxu0 0
    %1648 = vmatpush1.bf16.msra.mxu0 0
    %1649 = vmatprep.subr.bf16.mxu0 0
    %1650 = vmatpush1.bf16.msra.mxu0 0
    %1651 = vmatprep.subr.bf16.mxu0 0
    %1652 = vmatpush1.bf16.msra.mxu0 0
    %1653 = vmatprep.subr.bf16.mxu0 0
    %1654 = vmatpush1.bf16.msra.mxu0 %v1635
    %1655 = vmatprep.subr.bf16.mxu0 0
    %1656 = vmatpush1.bf16.msra.mxu0 %v1634
    %1657 = vmatprep.subr.bf16.mxu0 0
    %1658 = vmatpush2.bf16.msra.mxu0 0
    %1659 = vmatprep.subr.bf16.mxu0 0
    %1660 = vmatpush2.bf16.msra.mxu0 0
    %1661 = vmatprep.subr.bf16.mxu0 0
    %1662 = vmatpush2.bf16.msra.mxu0 0
    %1663 = vmatprep.subr.bf16.mxu0 0
    %1664 = vmatpush2.bf16.msra.mxu0 0
    %1665 = vmatprep.subr.bf16.mxu0 0
    %1666 = vmatpush2.bf16.msra.mxu0 0
    %1667 = vmatprep.subr.bf16.mxu0 0
    %1668 = vmatpush2.bf16.msra.mxu0 0
    %1669 = vmatprep.subr.bf16.mxu0 0
    %1670 = vmatpush2.bf16.msra.mxu0 0
    %1671 = vmatprep.subr.bf16.mxu0 0
    %1672 = vmatpush2.bf16.msra.mxu0 0
    %1673 = vmatprep.mubr.bf16.mxu0 0
    %1674 = vmatmul.mubr.bf16.gmra.mxu0 %v1639
    %v1675 = vpop.f32.mrf.mxu0
    %v1676 = vadd.f32 0.0, %v1675
    %v1677 = vpop.f32.mrf.mxu0
    %v1678 = vpop.f32.mrf.mxu0
    %v1679 = vadd.f32 0.0, %v1678
    %v1680 = vpop.f32.mrf.mxu0
    %1681 = vdwg.mxu0
    %1682 = vmatprep.subr.bf16.mxu0 0
    %1683 = vmatpush1.bf16.msra.mxu0 0
    %1684 = vmatprep.subr.bf16.mxu0 0
    %1685 = vmatpush1.bf16.msra.mxu0 0
    %1686 = vmatprep.subr.bf16.mxu0 0
    %1687 = vmatpush1.bf16.msra.mxu0 0
    %1688 = vmatprep.subr.bf16.mxu0 0
    %1689 = vmatpush1.bf16.msra.mxu0 0
    %1690 = vmatprep.subr.bf16.mxu0 0
    %1691 = vmatpush1.bf16.msra.mxu0 0
    %1692 = vmatprep.subr.bf16.mxu0 0
    %1693 = vmatpush1.bf16.msra.mxu0 0
    %1694 = vmatprep.subr.bf16.mxu0 0
    %1695 = vmatpush1.bf16.msra.mxu0 0
    %1696 = vmatprep.subr.bf16.mxu0 0
    %1697 = vmatpush1.bf16.msra.mxu0 %v1624
    %1698 = vmatprep.subr.bf16.mxu0 0
    %1699 = vmatpush2.bf16.msra.mxu0 0
    %1700 = vmatprep.subr.bf16.mxu0 0
    %1701 = vmatpush2.bf16.msra.mxu0 0
    %1702 = vmatprep.subr.bf16.mxu0 0
    %1703 = vmatpush2.bf16.msra.mxu0 0
    %1704 = vmatprep.subr.bf16.mxu0 0
    %1705 = vmatpush2.bf16.msra.mxu0 0
    %1706 = vmatprep.subr.bf16.mxu0 0
    %1707 = vmatpush2.bf16.msra.mxu0 0
    %1708 = vmatprep.subr.bf16.mxu0 0
    %1709 = vmatpush2.bf16.msra.mxu0 0
    %1710 = vmatprep.subr.bf16.mxu0 0
    %1711 = vmatpush2.bf16.msra.mxu0 0
    %1712 = vmatprep.subr.bf16.mxu0 0
    %1713 = vmatpush2.bf16.msra.mxu0 0
    %1714 = vmatprep.mubr.bf16.mxu0 0
    %1715 = vmatmul.mubr.bf16.gmra.mxu0 %v478
    %v1716 = vpop.f32.mrf.mxu0
    %v1717 = vadd.f32 %v1676, %v1716
    %v1718 = vpop.f32.mrf.mxu0
    %v1719 = vpop.f32.mrf.mxu0
    %v1720 = vadd.f32 %v1679, %v1719
    %v1721 = vpop.f32.mrf.mxu0
    %1722 = vdwg.mxu0
    %v1723 = vlaneseq
    %v1724 = vshrl.u32 %v1723, 7
    %v1725 = vsub.s32 0, %v1724
    %v1726 = vrot.slane %v1514, %v1725
    %v1727 = vadd.f32 %v1717, %v1726
    %v1728 = vadd.f32 %v1720, %v1726
    %v1729 = vmax.f32 %v1727, 0.0
    %v1730 = vmax.f32 %v1728, 0.0
    %v1731 = vsel %vm111, %v1729, 0.0
    %v1732 = vsel %vm111, %v1730, 0.0
    %v1733 = vadd.f32 %v1731, %v1732
    %v1734 = vrot.slane %v1733, 4
    %v1735 = vadd.f32 %v1733, %v1734
    %v1736 = vrot.slane %v1735, 2
    %v1737 = vadd.f32 %v1735, %v1736
    %v1738 = vrot.slane %v1737, 1
    %v1739 = vadd.f32 %v1737, %v1738
    %v1740 = vmul.f32 %v1739, %v121
    %v1741 = vsub.f32 %v1729, %v1740
    %v1742 = vsub.f32 %v1730, %v1740
    %v1743 = vmul.f32 %v1741, %v1741
    %v1744 = vmul.f32 %v1742, %v1742
    %v1745 = vsel %vm111, %v1743, 0.0
    %v1746 = vsel %vm111, %v1744, 0.0
    %v1747 = vadd.f32 %v1745, %v1746
    %v1748 = vrot.slane %v1747, 4
    %v1749 = vadd.f32 %v1747, %v1748
    %v1750 = vrot.slane %v1749, 2
    %v1751 = vadd.f32 %v1749, %v1750
    %v1752 = vrot.slane %v1751, 1
    %v1753 = vadd.f32 %v1751, %v1752
    %v1754 = vmul.f32 %v1753, %v121
    %v1755 = vadd.f32 %v1754, 1e-05
    %v1756 = vrsqrt.pop %v1755
    %v1757 = vmul.f32 %v1741, %v1756
    %v1758 = vmul.f32 %v1742, %v1756
    %v1759 = vlaneseq
    %v1760 = vshrl.u32 %v1759, 7
    %v1761 = vsub.s32 1, %v1760
    %v1762 = vrot.slane %v1514, %v1761
    %v1763 = vmul.f32 %v1757, %v1762
    %v1764 = vmul.f32 %v1758, %v1762
    %v1765 = vlaneseq
    %v1766 = vshrl.u32 %v1765, 7
    %v1767 = vsub.s32 2, %v1766
    %v1768 = vrot.slane %v1514, %v1767
    %v1769 = vadd.f32 %v1763, %v1768
    %v1770 = vadd.f32 %v1764, %v1768
    %v1771 = vpack.c.bf16 %v1770, %v1769
    %v1772 = vlaneseq
    %v1773 = vshrl.u32 %v1772, 7
    %v1774 = vsub.s32 3, %v1773
    %v1775 = vrot.slane %v1514, %v1774
    %v1780 = vunpack.c.l.b16 %v1501
    %v1781 = vunpack.c.l.b16 %v1502
    %v1782 = vunpack.c.l.b16 %v1503
    %v1783 = vunpack.c.l.b16 %v1504
    %v1784 = vpack.c.b16 %v1781, %v1780
    %v1785 = vpack.c.b16 %v1783, %v1782
    %v1789 = vsel %vm111, %v1771, 0
    %1791 = vmatprep.subr.bf16.mxu0 0
    %1792 = vmatpush1.bf16.msra.mxu0 0
    %1793 = vmatprep.subr.bf16.mxu0 0
    %1794 = vmatpush1.bf16.msra.mxu0 0
    %1795 = vmatprep.subr.bf16.mxu0 0
    %1796 = vmatpush1.bf16.msra.mxu0 0
    %1797 = vmatprep.subr.bf16.mxu0 0
    %1798 = vmatpush1.bf16.msra.mxu0 0
    %1799 = vmatprep.subr.bf16.mxu0 0
    %1800 = vmatpush1.bf16.msra.mxu0 0
    %1801 = vmatprep.subr.bf16.mxu0 0
    %1802 = vmatpush1.bf16.msra.mxu0 0
    %1803 = vmatprep.subr.bf16.mxu0 0
    %1804 = vmatpush1.bf16.msra.mxu0 %v1785
    %1805 = vmatprep.subr.bf16.mxu0 0
    %1806 = vmatpush1.bf16.msra.mxu0 %v1784
    %1807 = vmatprep.subr.bf16.mxu0 0
    %1808 = vmatpush2.bf16.msra.mxu0 0
    %1809 = vmatprep.subr.bf16.mxu0 0
    %1810 = vmatpush2.bf16.msra.mxu0 0
    %1811 = vmatprep.subr.bf16.mxu0 0
    %1812 = vmatpush2.bf16.msra.mxu0 0
    %1813 = vmatprep.subr.bf16.mxu0 0
    %1814 = vmatpush2.bf16.msra.mxu0 0
    %1815 = vmatprep.subr.bf16.mxu0 0
    %1816 = vmatpush2.bf16.msra.mxu0 0
    %1817 = vmatprep.subr.bf16.mxu0 0
    %1818 = vmatpush2.bf16.msra.mxu0 0
    %1819 = vmatprep.subr.bf16.mxu0 0
    %1820 = vmatpush2.bf16.msra.mxu0 0
    %1821 = vmatprep.subr.bf16.mxu0 0
    %1822 = vmatpush2.bf16.msra.mxu0 0
    %1823 = vmatprep.mubr.bf16.mxu0 0
    %1824 = vmatmul.mubr.bf16.gmra.mxu0 %v1789
    %v1825 = vpop.f32.mrf.mxu0
    %v1826 = vadd.f32 %v1775, %v1825
    %v1827 = vpop.f32.mrf.mxu0
    %v1828 = vpop.f32.mrf.mxu0
    %v1829 = vadd.f32 %v1775, %v1828
    %v1830 = vpop.f32.mrf.mxu0
    %1831 = vdwg.mxu0
    %v1832 = vmax.f32 %v1826, 0.0
    %v1833 = vmax.f32 %v1829, 0.0
    %v1834 = vxor.u32 %v1832, 2147483648
    %v1835 = vxor.u32 %v1833, 2147483648
    %v1836 = vmul.f32 %v1834, 1.442695
    %v1837 = vpow.pop %v1836
    %v1838 = vmul.f32 %v1835, 1.442695
    %v1839 = vpow.pop %v1838
    %v1840 = vadd.f32 %v1837, 1.0
    %v1841 = vadd.f32 %v1839, 1.0
    %v1842 = vrcp.pop %v1840
    %v1843 = vmul.f32 1.0, %v1842
    %v1844 = vrcp.pop %v1841
    %v1845 = vmul.f32 1.0, %v1844
    %v1846 = vmul.f32 %v1832, %v1843
    %v1847 = vmul.f32 %v1833, %v1845
    %v1848 = vadd.f32 %v1249, %v1846
    %v1849 = vadd.f32 %v1250, %v1847
    %v1850 = vlaneseq
    %v1851 = vshrl.u32 %v1850, 7
    %v1852 = vsub.s32 4, %v1851
    %v1853 = vrot.slane %v1514, %v1852
    %v1854 = vmul.f32 %v1846, %v1853
    %v1855 = vmul.f32 %v1847, %v1853
    %v1856 = vsel %vm111, %v1854, 0.0
    %1857 = vadd.xlane.f32.xlu0 %v1856
    %v1858 = vpop.xlane.xlu0 %1857
    %v1859 = vsel %vm111, %v1855, 0.0
    %1860 = vadd.xlane.f32.xlu0 %v1859
    %v1861 = vpop.xlane.xlu0 %1860
    %v1862 = vlaneseq
    %v1863 = vshrl.u32 %v1862, 7
    %v1864 = vsub.s32 5, %v1863
    %v1865 = vrot.slane %v1514, %v1864
    %v1866 = vadd.f32 %v1858, %v1865
    %v1867 = vadd.f32 %v1861, %v1865
    %v1868 = vxor.u32 %v1866, 2147483648
    %v1869 = vxor.u32 %v1867, 2147483648
    %v1870 = vmul.f32 %v1868, 1.442695
    %v1871 = vpow.pop %v1870
    %v1872 = vmul.f32 %v1869, 1.442695
    %v1873 = vpow.pop %v1872
    %v1874 = vadd.f32 %v1871, 1.0
    %v1875 = vadd.f32 %v1873, 1.0
    %v1876 = vrcp.pop %v1874
    %v1877 = vmul.f32 1.0, %v1876
    %v1878 = vrcp.pop %v1875
    %v1879 = vmul.f32 1.0, %v1878
    %1881 = vset.pattern.permute.xlu0 0
    %1882 = vperm.xlu0 %1881, %v1877
    %v1883 = vpop.permute.xlu0 %1882
    %1886 = vset.pattern.permute.xlu0 0
    %1887 = vperm.xlu0 %1886, %v1879
    %v1888 = vpop.permute.xlu0 %1887
    %v1890 = vmul.f32 %v1846, %v1883
    %v1891 = vmul.f32 %v1847, %v1888
    %v1892 = vpack.c.bf16 %v1891, %v1890
    %1893 = vmatprep.subr.bf16.mxu0 0
    %1894 = vmatpush1.bf16.msra.mxu0 0
    %1895 = vmatprep.subr.bf16.mxu0 0
    %1896 = vmatpush1.bf16.msra.mxu0 0
    %1897 = vmatprep.subr.bf16.mxu0 0
    %1898 = vmatpush1.bf16.msra.mxu0 0
    %1899 = vmatprep.subr.bf16.mxu0 0
    %1900 = vmatpush1.bf16.msra.mxu0 0
    %1901 = vmatprep.subr.bf16.mxu0 0
    %1902 = vmatpush1.bf16.msra.mxu0 0
    %1903 = vmatprep.subr.bf16.mxu0 0
    %1904 = vmatpush1.bf16.msra.mxu0 0
    %1905 = vmatprep.subr.bf16.mxu0 0
    %1906 = vmatpush1.bf16.msra.mxu0 0
    %1907 = vmatprep.subr.bf16.mxu0 0
    %1908 = vmatpush1.bf16.msra.mxu0 %v1892
    %1909 = vmatprep.subr.bf16.mxu0 0
    %1910 = vmatpush2.bf16.msra.mxu0 0
    %1911 = vmatprep.subr.bf16.mxu0 0
    %1912 = vmatpush2.bf16.msra.mxu0 0
    %1913 = vmatprep.subr.bf16.mxu0 0
    %1914 = vmatpush2.bf16.msra.mxu0 0
    %1915 = vmatprep.subr.bf16.mxu0 0
    %1916 = vmatpush2.bf16.msra.mxu0 0
    %1917 = vmatprep.subr.bf16.mxu0 0
    %1918 = vmatpush2.bf16.msra.mxu0 0
    %1919 = vmatprep.subr.bf16.mxu0 0
    %1920 = vmatpush2.bf16.msra.mxu0 0
    %1921 = vmatprep.subr.bf16.mxu0 0
    %1922 = vmatpush2.bf16.msra.mxu0 0
    %1923 = vmatprep.subr.bf16.mxu0 0
    %1924 = vmatpush2.bf16.msra.mxu0 0
    %1925 = vmatprep.mubr.bf16.mxu0 0
    %1926 = vmatmul.mubr.bf16.gmra.mxu0 %v692
    %v1927 = vpop.f32.mrf.mxu0
    %v1928 = vadd.f32 %v1487, %v1927
    %v1929 = vpop.f32.mrf.mxu0
    %v1930 = vpop.f32.mrf.mxu0
    %v1931 = vpop.f32.mrf.mxu0
    %1932 = vdwg.mxu0
    %v1933 = vpack.c.bf16 %v1928, %v1928
    %v1934 = vlaneseq
    %v1935 = vshrl.u32 %v1934, 7
    %v1936 = vsub.s32 6, %v1935
    %v1937 = vrot.slane %v1514, %v1936
    %v1942 = vunpack.c.l.b16 %v1505
    %v1943 = vunpack.c.l.b16 %v1506
    %v1944 = vunpack.c.l.b16 %v1507
    %v1945 = vunpack.c.l.b16 %v1508
    %v1946 = vpack.c.b16 %v1943, %v1942
    %v1947 = vpack.c.b16 %v1945, %v1944
    %v1951 = vsel %vm111, %v1933, 0
    %1953 = vmatprep.subr.bf16.mxu0 0
    %1954 = vmatpush1.bf16.msra.mxu0 0
    %1955 = vmatprep.subr.bf16.mxu0 0
    %1956 = vmatpush1.bf16.msra.mxu0 0
    %1957 = vmatprep.subr.bf16.mxu0 0
    %1958 = vmatpush1.bf16.msra.mxu0 0
    %1959 = vmatprep.subr.bf16.mxu0 0
    %1960 = vmatpush1.bf16.msra.mxu0 0
    %1961 = vmatprep.subr.bf16.mxu0 0
    %1962 = vmatpush1.bf16.msra.mxu0 0
    %1963 = vmatprep.subr.bf16.mxu0 0
    %1964 = vmatpush1.bf16.msra.mxu0 0
    %1965 = vmatprep.subr.bf16.mxu0 0
    %1966 = vmatpush1.bf16.msra.mxu0 %v1947
    %1967 = vmatprep.subr.bf16.mxu0 0
    %1968 = vmatpush1.bf16.msra.mxu0 %v1946
    %1969 = vmatprep.subr.bf16.mxu0 0
    %1970 = vmatpush2.bf16.msra.mxu0 0
    %1971 = vmatprep.subr.bf16.mxu0 0
    %1972 = vmatpush2.bf16.msra.mxu0 0
    %1973 = vmatprep.subr.bf16.mxu0 0
    %1974 = vmatpush2.bf16.msra.mxu0 0
    %1975 = vmatprep.subr.bf16.mxu0 0
    %1976 = vmatpush2.bf16.msra.mxu0 0
    %1977 = vmatprep.subr.bf16.mxu0 0
    %1978 = vmatpush2.bf16.msra.mxu0 0
    %1979 = vmatprep.subr.bf16.mxu0 0
    %1980 = vmatpush2.bf16.msra.mxu0 0
    %1981 = vmatprep.subr.bf16.mxu0 0
    %1982 = vmatpush2.bf16.msra.mxu0 0
    %1983 = vmatprep.subr.bf16.mxu0 0
    %1984 = vmatpush2.bf16.msra.mxu0 0
    %1985 = vmatprep.mubr.bf16.mxu0 0
    %1986 = vmatmul.mubr.bf16.gmra.mxu0 %v1951
    %v1987 = vpop.f32.mrf.mxu0
    %v1988 = vadd.f32 %v1937, %v1987
    %v1989 = vpop.f32.mrf.mxu0
    %v1990 = vpop.f32.mrf.mxu0
    %v1991 = vpop.f32.mrf.mxu0
    %1992 = vdwg.mxu0
    %v1993 = vmax.f32 %v1988, 0.0
    %v1994 = vsel %vm111, %v1993, 0.0
    %v1995 = vrot.slane %v1994, 4
    %v1996 = vadd.f32 %v1994, %v1995
    %v1997 = vrot.slane %v1996, 2
    %v1998 = vadd.f32 %v1996, %v1997
    %v1999 = vrot.slane %v1998, 1
    %v2000 = vadd.f32 %v1998, %v1999
    %v2001 = vmul.f32 %v2000, %v802
    %v2002 = vsub.f32 %v1993, %v2001
    %v2003 = vmul.f32 %v2002, %v2002
    %v2004 = vsel %vm111, %v2003, 0.0
    %v2005 = vrot.slane %v2004, 4
    %v2006 = vadd.f32 %v2004, %v2005
    %v2007 = vrot.slane %v2006, 2
    %v2008 = vadd.f32 %v2006, %v2007
    %v2009 = vrot.slane %v2008, 1
    %v2010 = vadd.f32 %v2008, %v2009
    %v2011 = vmul.f32 %v2010, %v802
    %v2012 = vadd.f32 %v2011, 1e-05
    %v2013 = vrsqrt.pop %v2012
    %v2014 = vmul.f32 %v2002, %v2013
    %v2015 = vlaneseq
    %v2016 = vshrl.u32 %v2015, 7
    %v2017 = vsub.s32 7, %v2016
    %v2018 = vrot.slane %v1514, %v2017
    %v2019 = vmul.f32 %v2014, %v2018
    %v2020 = vlaneseq
    %v2021 = vshrl.u32 %v2020, 7
    %v2022 = vsub.s32 0, %v2021
    %v2023 = vrot.slane %v1515, %v2022
    %v2024 = vadd.f32 %v2019, %v2023
    %v2025 = vpack.c.bf16 %v2024, %v2024
    %v2026 = vlaneseq
    %v2027 = vshrl.u32 %v2026, 7
    %v2028 = vsub.s32 1, %v2027
    %v2029 = vrot.slane %v1515, %v2028
    %v2034 = vunpack.c.l.b16 %v1509
    %v2035 = vunpack.c.l.b16 %v1510
    %v2036 = vunpack.c.l.b16 %v1511
    %v2037 = vunpack.c.l.b16 %v1512
    %v2038 = vpack.c.b16 %v2035, %v2034
    %v2039 = vpack.c.b16 %v2037, %v2036
    %v2043 = vsel %vm111, %v2025, 0
    %2045 = vmatprep.subr.bf16.mxu0 0
    %2046 = vmatpush1.bf16.msra.mxu0 0
    %2047 = vmatprep.subr.bf16.mxu0 0
    %2048 = vmatpush1.bf16.msra.mxu0 0
    %2049 = vmatprep.subr.bf16.mxu0 0
    %2050 = vmatpush1.bf16.msra.mxu0 0
    %2051 = vmatprep.subr.bf16.mxu0 0
    %2052 = vmatpush1.bf16.msra.mxu0 0
    %2053 = vmatprep.subr.bf16.mxu0 0
    %2054 = vmatpush1.bf16.msra.mxu0 0
    %2055 = vmatprep.subr.bf16.mxu0 0
    %2056 = vmatpush1.bf16.msra.mxu0 0
    %2057 = vmatprep.subr.bf16.mxu0 0
    %2058 = vmatpush1.bf16.msra.mxu0 %v2039
    %2059 = vmatprep.subr.bf16.mxu0 0
    %2060 = vmatpush1.bf16.msra.mxu0 %v2038
    %2061 = vmatprep.subr.bf16.mxu0 0
    %2062 = vmatpush2.bf16.msra.mxu0 0
    %2063 = vmatprep.subr.bf16.mxu0 0
    %2064 = vmatpush2.bf16.msra.mxu0 0
    %2065 = vmatprep.subr.bf16.mxu0 0
    %2066 = vmatpush2.bf16.msra.mxu0 0
    %2067 = vmatprep.subr.bf16.mxu0 0
    %2068 = vmatpush2.bf16.msra.mxu0 0
    %2069 = vmatprep.subr.bf16.mxu0 0
    %2070 = vmatpush2.bf16.msra.mxu0 0
    %2071 = vmatprep.subr.bf16.mxu0 0
    %2072 = vmatpush2.bf16.msra.mxu0 0
    %2073 = vmatprep.subr.bf16.mxu0 0
    %2074 = vmatpush2.bf16.msra.mxu0 0
    %2075 = vmatprep.subr.bf16.mxu0 0
    %2076 = vmatpush2.bf16.msra.mxu0 0
    %2077 = vmatprep.mubr.bf16.mxu0 0
    %2078 = vmatmul.mubr.bf16.gmra.mxu0 %v2043
    %v2079 = vpop.f32.mrf.mxu0
    %v2080 = vadd.f32 %v2029, %v2079
    %v2081 = vpop.f32.mrf.mxu0
    %v2082 = vpop.f32.mrf.mxu0
    %v2083 = vpop.f32.mrf.mxu0
    %2084 = vdwg.mxu0
    %v2085 = vmax.f32 %v2080, 0.0
    %v2086 = vadd.f32 %v2085, %v1487
    %s2087 = scalar_lea.vmem %s6, 288
    %v2088 = vld [vmem:[%s2087] sm:$0xf]
    %v2089 = vld [vmem:[%s2087 + $0x4] sm:$0xf]
    %v2090 = vld [vmem:[%s2087 + $0x8] sm:$0xf]
    %v2091 = vld [vmem:[%s2087 + $0xc] sm:$0xf]
    %v2092 = vld [vmem:[%s2087 + $0x10] sm:$0xf]
    %v2093 = vld [vmem:[%s2087 + $0x14] sm:$0xf]
    %v2094 = vld [vmem:[%s2087 + $0x18] sm:$0xf]
    %v2095 = vld [vmem:[%s2087 + $0x1c] sm:$0xf]
    %v2096 = vld [vmem:[%s2087 + $0x20] sm:$0xf]
    %v2097 = vld [vmem:[%s2087 + $0x24] sm:$0xf]
    %v2098 = vld [vmem:[%s2087 + $0x28] sm:$0xf]
    %v2099 = vld [vmem:[%s2087 + $0x2c] sm:$0xf]
    %v2100 = vld [vmem:[%s2087 + $0x30] sm:$0xf]
    %v2101 = vld [vmem:[%s2087 + $0x34] sm:$0xf]
    %v2102 = vld [vmem:[%s2087 + $0x38] sm:$0xf]
    %v2103 = vld [vmem:[%s2087 + $0x3c] sm:$0xf]
    %v2104 = vld [vmem:[%s2087 + $0x40] sm:$0xf]
    %v2105 = vld [vmem:[%s2087 + $0x44] sm:$0xf]
    %v2106 = vld [vmem:[%s2087 + $0x48] sm:$0xf]
    %v2107 = vld [vmem:[%s2087 + $0x4c] sm:$0xf]
    %v2108 = vld [vmem:[%s2087 + $0x50] sm:$0xf]
    %v2109 = vld [vmem:[%s2087 + $0x54] sm:$0xf]
    %v2110 = vld [vmem:[%s2087 + $0x58] sm:$0xf]
    %v2111 = vld [vmem:[%s2087 + $0x5c] sm:$0xf]
    %s2112 = scalar_lea.vmem %s7, 48
    %v2113 = vld [vmem:[%s2112] sm:$0xff]
    %v2114 = vld [vmem:[%s2112 + $0x8] sm:$0x3]
    %v2115 = vpack.c.bf16 %v2086, %v2086
    %v2120 = vunpack.c.l.b16 %v2088
    %v2121 = vunpack.c.l.b16 %v2089
    %v2122 = vunpack.c.l.b16 %v2090
    %v2123 = vunpack.c.l.b16 %v2091
    %v2124 = vpack.c.b16 %v2121, %v2120
    %v2125 = vpack.c.b16 %v2123, %v2122
    %v2129 = vsel %vm111, %v2115, 0
    %2131 = vmatprep.subr.bf16.mxu0 0
    %2132 = vmatpush1.bf16.msra.mxu0 0
    %2133 = vmatprep.subr.bf16.mxu0 0
    %2134 = vmatpush1.bf16.msra.mxu0 0
    %2135 = vmatprep.subr.bf16.mxu0 0
    %2136 = vmatpush1.bf16.msra.mxu0 0
    %2137 = vmatprep.subr.bf16.mxu0 0
    %2138 = vmatpush1.bf16.msra.mxu0 0
    %2139 = vmatprep.subr.bf16.mxu0 0
    %2140 = vmatpush1.bf16.msra.mxu0 0
    %2141 = vmatprep.subr.bf16.mxu0 0
    %2142 = vmatpush1.bf16.msra.mxu0 0
    %2143 = vmatprep.subr.bf16.mxu0 0
    %2144 = vmatpush1.bf16.msra.mxu0 %v2125
    %2145 = vmatprep.subr.bf16.mxu0 0
    %2146 = vmatpush1.bf16.msra.mxu0 %v2124
    %2147 = vmatprep.subr.bf16.mxu0 0
    %2148 = vmatpush2.bf16.msra.mxu0 0
    %2149 = vmatprep.subr.bf16.mxu0 0
    %2150 = vmatpush2.bf16.msra.mxu0 0
    %2151 = vmatprep.subr.bf16.mxu0 0
    %2152 = vmatpush2.bf16.msra.mxu0 0
    %2153 = vmatprep.subr.bf16.mxu0 0
    %2154 = vmatpush2.bf16.msra.mxu0 0
    %2155 = vmatprep.subr.bf16.mxu0 0
    %2156 = vmatpush2.bf16.msra.mxu0 0
    %2157 = vmatprep.subr.bf16.mxu0 0
    %2158 = vmatpush2.bf16.msra.mxu0 0
    %2159 = vmatprep.subr.bf16.mxu0 0
    %2160 = vmatpush2.bf16.msra.mxu0 0
    %2161 = vmatprep.subr.bf16.mxu0 0
    %2162 = vmatpush2.bf16.msra.mxu0 0
    %2163 = vmatprep.mubr.bf16.mxu0 0
    %2164 = vmatmul.mubr.bf16.gmra.mxu0 %v2129
    %v2165 = vpop.f32.mrf.mxu0
    %v2166 = vadd.f32 0.0, %v2165
    %v2167 = vpop.f32.mrf.mxu0
    %v2168 = vpop.f32.mrf.mxu0
    %v2169 = vpop.f32.mrf.mxu0
    %2170 = vdwg.mxu0
    %v2175 = vunpack.c.l.b16 %v2092
    %v2176 = vunpack.c.l.b16 %v2093
    %v2177 = vunpack.c.l.b16 %v2094
    %v2178 = vunpack.c.l.b16 %v2095
    %v2179 = vpack.c.b16 %v2176, %v2175
    %v2180 = vpack.c.b16 %v2178, %v2177
    %2183 = vmatprep.subr.bf16.mxu0 0
    %2184 = vmatpush1.bf16.msra.mxu0 0
    %2185 = vmatprep.subr.bf16.mxu0 0
    %2186 = vmatpush1.bf16.msra.mxu0 0
    %2187 = vmatprep.subr.bf16.mxu0 0
    %2188 = vmatpush1.bf16.msra.mxu0 0
    %2189 = vmatprep.subr.bf16.mxu0 0
    %2190 = vmatpush1.bf16.msra.mxu0 0
    %2191 = vmatprep.subr.bf16.mxu0 0
    %2192 = vmatpush1.bf16.msra.mxu0 0
    %2193 = vmatprep.subr.bf16.mxu0 0
    %2194 = vmatpush1.bf16.msra.mxu0 0
    %2195 = vmatprep.subr.bf16.mxu0 0
    %2196 = vmatpush1.bf16.msra.mxu0 %v2180
    %2197 = vmatprep.subr.bf16.mxu0 0
    %2198 = vmatpush1.bf16.msra.mxu0 %v2179
    %2199 = vmatprep.subr.bf16.mxu0 0
    %2200 = vmatpush2.bf16.msra.mxu0 0
    %2201 = vmatprep.subr.bf16.mxu0 0
    %2202 = vmatpush2.bf16.msra.mxu0 0
    %2203 = vmatprep.subr.bf16.mxu0 0
    %2204 = vmatpush2.bf16.msra.mxu0 0
    %2205 = vmatprep.subr.bf16.mxu0 0
    %2206 = vmatpush2.bf16.msra.mxu0 0
    %2207 = vmatprep.subr.bf16.mxu0 0
    %2208 = vmatpush2.bf16.msra.mxu0 0
    %2209 = vmatprep.subr.bf16.mxu0 0
    %2210 = vmatpush2.bf16.msra.mxu0 0
    %2211 = vmatprep.subr.bf16.mxu0 0
    %2212 = vmatpush2.bf16.msra.mxu0 0
    %2213 = vmatprep.subr.bf16.mxu0 0
    %2214 = vmatpush2.bf16.msra.mxu0 0
    %2215 = vmatprep.mubr.bf16.mxu0 0
    %2216 = vmatmul.mubr.bf16.gmra.mxu0 %v2129
    %v2217 = vpop.f32.mrf.mxu0
    %v2218 = vadd.f32 0.0, %v2217
    %v2219 = vpop.f32.mrf.mxu0
    %v2220 = vpop.f32.mrf.mxu0
    %v2221 = vpop.f32.mrf.mxu0
    %2222 = vdwg.mxu0
    %v2223 = vpack.c.bf16 %v2218, %v2166
    %v2224 = vpack.c.bf16 %v1849, %v1848
    %v2229 = vunpack.c.l.b16 %v2096
    %v2230 = vunpack.c.l.b16 %v2097
    %v2231 = vunpack.c.l.b16 %v2098
    %v2232 = vunpack.c.l.b16 %v2099
    %v2233 = vpack.c.b16 %v2230, %v2229
    %v2234 = vpack.c.b16 %v2232, %v2231
    %v2238 = vsel %vm111, %v2224, 0
    %2240 = vmatprep.subr.bf16.mxu0 0
    %2241 = vmatpush1.bf16.msra.mxu0 0
    %2242 = vmatprep.subr.bf16.mxu0 0
    %2243 = vmatpush1.bf16.msra.mxu0 0
    %2244 = vmatprep.subr.bf16.mxu0 0
    %2245 = vmatpush1.bf16.msra.mxu0 0
    %2246 = vmatprep.subr.bf16.mxu0 0
    %2247 = vmatpush1.bf16.msra.mxu0 0
    %2248 = vmatprep.subr.bf16.mxu0 0
    %2249 = vmatpush1.bf16.msra.mxu0 0
    %2250 = vmatprep.subr.bf16.mxu0 0
    %2251 = vmatpush1.bf16.msra.mxu0 0
    %2252 = vmatprep.subr.bf16.mxu0 0
    %2253 = vmatpush1.bf16.msra.mxu0 %v2234
    %2254 = vmatprep.subr.bf16.mxu0 0
    %2255 = vmatpush1.bf16.msra.mxu0 %v2233
    %2256 = vmatprep.subr.bf16.mxu0 0
    %2257 = vmatpush2.bf16.msra.mxu0 0
    %2258 = vmatprep.subr.bf16.mxu0 0
    %2259 = vmatpush2.bf16.msra.mxu0 0
    %2260 = vmatprep.subr.bf16.mxu0 0
    %2261 = vmatpush2.bf16.msra.mxu0 0
    %2262 = vmatprep.subr.bf16.mxu0 0
    %2263 = vmatpush2.bf16.msra.mxu0 0
    %2264 = vmatprep.subr.bf16.mxu0 0
    %2265 = vmatpush2.bf16.msra.mxu0 0
    %2266 = vmatprep.subr.bf16.mxu0 0
    %2267 = vmatpush2.bf16.msra.mxu0 0
    %2268 = vmatprep.subr.bf16.mxu0 0
    %2269 = vmatpush2.bf16.msra.mxu0 0
    %2270 = vmatprep.subr.bf16.mxu0 0
    %2271 = vmatpush2.bf16.msra.mxu0 0
    %2272 = vmatprep.mubr.bf16.mxu0 0
    %2273 = vmatmul.mubr.bf16.gmra.mxu0 %v2238
    %v2274 = vpop.f32.mrf.mxu0
    %v2275 = vadd.f32 0.0, %v2274
    %v2276 = vpop.f32.mrf.mxu0
    %v2277 = vpop.f32.mrf.mxu0
    %v2278 = vadd.f32 0.0, %v2277
    %v2279 = vpop.f32.mrf.mxu0
    %2280 = vdwg.mxu0
    %2281 = vmatprep.subr.bf16.mxu0 0
    %2282 = vmatpush1.bf16.msra.mxu0 0
    %2283 = vmatprep.subr.bf16.mxu0 0
    %2284 = vmatpush1.bf16.msra.mxu0 0
    %2285 = vmatprep.subr.bf16.mxu0 0
    %2286 = vmatpush1.bf16.msra.mxu0 0
    %2287 = vmatprep.subr.bf16.mxu0 0
    %2288 = vmatpush1.bf16.msra.mxu0 0
    %2289 = vmatprep.subr.bf16.mxu0 0
    %2290 = vmatpush1.bf16.msra.mxu0 0
    %2291 = vmatprep.subr.bf16.mxu0 0
    %2292 = vmatpush1.bf16.msra.mxu0 0
    %2293 = vmatprep.subr.bf16.mxu0 0
    %2294 = vmatpush1.bf16.msra.mxu0 0
    %2295 = vmatprep.subr.bf16.mxu0 0
    %2296 = vmatpush1.bf16.msra.mxu0 %v2223
    %2297 = vmatprep.subr.bf16.mxu0 0
    %2298 = vmatpush2.bf16.msra.mxu0 0
    %2299 = vmatprep.subr.bf16.mxu0 0
    %2300 = vmatpush2.bf16.msra.mxu0 0
    %2301 = vmatprep.subr.bf16.mxu0 0
    %2302 = vmatpush2.bf16.msra.mxu0 0
    %2303 = vmatprep.subr.bf16.mxu0 0
    %2304 = vmatpush2.bf16.msra.mxu0 0
    %2305 = vmatprep.subr.bf16.mxu0 0
    %2306 = vmatpush2.bf16.msra.mxu0 0
    %2307 = vmatprep.subr.bf16.mxu0 0
    %2308 = vmatpush2.bf16.msra.mxu0 0
    %2309 = vmatprep.subr.bf16.mxu0 0
    %2310 = vmatpush2.bf16.msra.mxu0 0
    %2311 = vmatprep.subr.bf16.mxu0 0
    %2312 = vmatpush2.bf16.msra.mxu0 0
    %2313 = vmatprep.mubr.bf16.mxu0 0
    %2314 = vmatmul.mubr.bf16.gmra.mxu0 %v478
    %v2315 = vpop.f32.mrf.mxu0
    %v2316 = vadd.f32 %v2275, %v2315
    %v2317 = vpop.f32.mrf.mxu0
    %v2318 = vpop.f32.mrf.mxu0
    %v2319 = vadd.f32 %v2278, %v2318
    %v2320 = vpop.f32.mrf.mxu0
    %2321 = vdwg.mxu0
    %v2322 = vlaneseq
    %v2323 = vshrl.u32 %v2322, 7
    %v2324 = vsub.s32 0, %v2323
    %v2325 = vrot.slane %v2113, %v2324
    %v2326 = vadd.f32 %v2316, %v2325
    %v2327 = vadd.f32 %v2319, %v2325
    %v2328 = vmax.f32 %v2326, 0.0
    %v2329 = vmax.f32 %v2327, 0.0
    %v2330 = vsel %vm111, %v2328, 0.0
    %v2331 = vsel %vm111, %v2329, 0.0
    %v2332 = vadd.f32 %v2330, %v2331
    %v2333 = vrot.slane %v2332, 4
    %v2334 = vadd.f32 %v2332, %v2333
    %v2335 = vrot.slane %v2334, 2
    %v2336 = vadd.f32 %v2334, %v2335
    %v2337 = vrot.slane %v2336, 1
    %v2338 = vadd.f32 %v2336, %v2337
    %v2339 = vmul.f32 %v2338, %v121
    %v2340 = vsub.f32 %v2328, %v2339
    %v2341 = vsub.f32 %v2329, %v2339
    %v2342 = vmul.f32 %v2340, %v2340
    %v2343 = vmul.f32 %v2341, %v2341
    %v2344 = vsel %vm111, %v2342, 0.0
    %v2345 = vsel %vm111, %v2343, 0.0
    %v2346 = vadd.f32 %v2344, %v2345
    %v2347 = vrot.slane %v2346, 4
    %v2348 = vadd.f32 %v2346, %v2347
    %v2349 = vrot.slane %v2348, 2
    %v2350 = vadd.f32 %v2348, %v2349
    %v2351 = vrot.slane %v2350, 1
    %v2352 = vadd.f32 %v2350, %v2351
    %v2353 = vmul.f32 %v2352, %v121
    %v2354 = vadd.f32 %v2353, 1e-05
    %v2355 = vrsqrt.pop %v2354
    %v2356 = vmul.f32 %v2340, %v2355
    %v2357 = vmul.f32 %v2341, %v2355
    %v2358 = vlaneseq
    %v2359 = vshrl.u32 %v2358, 7
    %v2360 = vsub.s32 1, %v2359
    %v2361 = vrot.slane %v2113, %v2360
    %v2362 = vmul.f32 %v2356, %v2361
    %v2363 = vmul.f32 %v2357, %v2361
    %v2364 = vlaneseq
    %v2365 = vshrl.u32 %v2364, 7
    %v2366 = vsub.s32 2, %v2365
    %v2367 = vrot.slane %v2113, %v2366
    %v2368 = vadd.f32 %v2362, %v2367
    %v2369 = vadd.f32 %v2363, %v2367
    %v2370 = vpack.c.bf16 %v2369, %v2368
    %v2371 = vlaneseq
    %v2372 = vshrl.u32 %v2371, 7
    %v2373 = vsub.s32 3, %v2372
    %v2374 = vrot.slane %v2113, %v2373
    %v2379 = vunpack.c.l.b16 %v2100
    %v2380 = vunpack.c.l.b16 %v2101
    %v2381 = vunpack.c.l.b16 %v2102
    %v2382 = vunpack.c.l.b16 %v2103
    %v2383 = vpack.c.b16 %v2380, %v2379
    %v2384 = vpack.c.b16 %v2382, %v2381
    %v2388 = vsel %vm111, %v2370, 0
    %2390 = vmatprep.subr.bf16.mxu0 0
    %2391 = vmatpush1.bf16.msra.mxu0 0
    %2392 = vmatprep.subr.bf16.mxu0 0
    %2393 = vmatpush1.bf16.msra.mxu0 0
    %2394 = vmatprep.subr.bf16.mxu0 0
    %2395 = vmatpush1.bf16.msra.mxu0 0
    %2396 = vmatprep.subr.bf16.mxu0 0
    %2397 = vmatpush1.bf16.msra.mxu0 0
    %2398 = vmatprep.subr.bf16.mxu0 0
    %2399 = vmatpush1.bf16.msra.mxu0 0
    %2400 = vmatprep.subr.bf16.mxu0 0
    %2401 = vmatpush1.bf16.msra.mxu0 0
    %2402 = vmatprep.subr.bf16.mxu0 0
    %2403 = vmatpush1.bf16.msra.mxu0 %v2384
    %2404 = vmatprep.subr.bf16.mxu0 0
    %2405 = vmatpush1.bf16.msra.mxu0 %v2383
    %2406 = vmatprep.subr.bf16.mxu0 0
    %2407 = vmatpush2.bf16.msra.mxu0 0
    %2408 = vmatprep.subr.bf16.mxu0 0
    %2409 = vmatpush2.bf16.msra.mxu0 0
    %2410 = vmatprep.subr.bf16.mxu0 0
    %2411 = vmatpush2.bf16.msra.mxu0 0
    %2412 = vmatprep.subr.bf16.mxu0 0
    %2413 = vmatpush2.bf16.msra.mxu0 0
    %2414 = vmatprep.subr.bf16.mxu0 0
    %2415 = vmatpush2.bf16.msra.mxu0 0
    %2416 = vmatprep.subr.bf16.mxu0 0
    %2417 = vmatpush2.bf16.msra.mxu0 0
    %2418 = vmatprep.subr.bf16.mxu0 0
    %2419 = vmatpush2.bf16.msra.mxu0 0
    %2420 = vmatprep.subr.bf16.mxu0 0
    %2421 = vmatpush2.bf16.msra.mxu0 0
    %2422 = vmatprep.mubr.bf16.mxu0 0
    %2423 = vmatmul.mubr.bf16.gmra.mxu0 %v2388
    %v2424 = vpop.f32.mrf.mxu0
    %v2425 = vadd.f32 %v2374, %v2424
    %v2426 = vpop.f32.mrf.mxu0
    %v2427 = vpop.f32.mrf.mxu0
    %v2428 = vadd.f32 %v2374, %v2427
    %v2429 = vpop.f32.mrf.mxu0
    %2430 = vdwg.mxu0
    %v2431 = vmax.f32 %v2425, 0.0
    %v2432 = vmax.f32 %v2428, 0.0
    %v2433 = vxor.u32 %v2431, 2147483648
    %v2434 = vxor.u32 %v2432, 2147483648
    %v2435 = vmul.f32 %v2433, 1.442695
    %v2436 = vpow.pop %v2435
    %v2437 = vmul.f32 %v2434, 1.442695
    %v2438 = vpow.pop %v2437
    %v2439 = vadd.f32 %v2436, 1.0
    %v2440 = vadd.f32 %v2438, 1.0
    %v2441 = vrcp.pop %v2439
    %v2442 = vmul.f32 1.0, %v2441
    %v2443 = vrcp.pop %v2440
    %v2444 = vmul.f32 1.0, %v2443
    %v2445 = vmul.f32 %v2431, %v2442
    %v2446 = vmul.f32 %v2432, %v2444
    %v2447 = vlaneseq
    %v2448 = vshrl.u32 %v2447, 7
    %v2449 = vsub.s32 4, %v2448
    %v2450 = vrot.slane %v2113, %v2449
    %v2451 = vmul.f32 %v2445, %v2450
    %v2452 = vmul.f32 %v2446, %v2450
    %v2453 = vsel %vm111, %v2451, 0.0
    %2454 = vadd.xlane.f32.xlu0 %v2453
    %v2455 = vpop.xlane.xlu0 %2454
    %v2456 = vsel %vm111, %v2452, 0.0
    %2457 = vadd.xlane.f32.xlu0 %v2456
    %v2458 = vpop.xlane.xlu0 %2457
    %v2459 = vlaneseq
    %v2460 = vshrl.u32 %v2459, 7
    %v2461 = vsub.s32 5, %v2460
    %v2462 = vrot.slane %v2113, %v2461
    %v2463 = vadd.f32 %v2455, %v2462
    %v2464 = vadd.f32 %v2458, %v2462
    %v2465 = vxor.u32 %v2463, 2147483648
    %v2466 = vxor.u32 %v2464, 2147483648
    %v2467 = vmul.f32 %v2465, 1.442695
    %v2468 = vpow.pop %v2467
    %v2469 = vmul.f32 %v2466, 1.442695
    %v2470 = vpow.pop %v2469
    %v2471 = vadd.f32 %v2468, 1.0
    %v2472 = vadd.f32 %v2470, 1.0
    %v2473 = vrcp.pop %v2471
    %v2474 = vmul.f32 1.0, %v2473
    %v2475 = vrcp.pop %v2472
    %v2476 = vmul.f32 1.0, %v2475
    %2478 = vset.pattern.permute.xlu0 0
    %2479 = vperm.xlu0 %2478, %v2474
    %v2480 = vpop.permute.xlu0 %2479
    %2483 = vset.pattern.permute.xlu0 0
    %2484 = vperm.xlu0 %2483, %v2476
    %v2485 = vpop.permute.xlu0 %2484
    %v2487 = vmul.f32 %v2445, %v2480
    %v2488 = vmul.f32 %v2446, %v2485
    %v2489 = vpack.c.bf16 %v2488, %v2487
    %2490 = vmatprep.subr.bf16.mxu0 0
    %2491 = vmatpush1.bf16.msra.mxu0 0
    %2492 = vmatprep.subr.bf16.mxu0 0
    %2493 = vmatpush1.bf16.msra.mxu0 0
    %2494 = vmatprep.subr.bf16.mxu0 0
    %2495 = vmatpush1.bf16.msra.mxu0 0
    %2496 = vmatprep.subr.bf16.mxu0 0
    %2497 = vmatpush1.bf16.msra.mxu0 0
    %2498 = vmatprep.subr.bf16.mxu0 0
    %2499 = vmatpush1.bf16.msra.mxu0 0
    %2500 = vmatprep.subr.bf16.mxu0 0
    %2501 = vmatpush1.bf16.msra.mxu0 0
    %2502 = vmatprep.subr.bf16.mxu0 0
    %2503 = vmatpush1.bf16.msra.mxu0 0
    %2504 = vmatprep.subr.bf16.mxu0 0
    %2505 = vmatpush1.bf16.msra.mxu0 %v2489
    %2506 = vmatprep.subr.bf16.mxu0 0
    %2507 = vmatpush2.bf16.msra.mxu0 0
    %2508 = vmatprep.subr.bf16.mxu0 0
    %2509 = vmatpush2.bf16.msra.mxu0 0
    %2510 = vmatprep.subr.bf16.mxu0 0
    %2511 = vmatpush2.bf16.msra.mxu0 0
    %2512 = vmatprep.subr.bf16.mxu0 0
    %2513 = vmatpush2.bf16.msra.mxu0 0
    %2514 = vmatprep.subr.bf16.mxu0 0
    %2515 = vmatpush2.bf16.msra.mxu0 0
    %2516 = vmatprep.subr.bf16.mxu0 0
    %2517 = vmatpush2.bf16.msra.mxu0 0
    %2518 = vmatprep.subr.bf16.mxu0 0
    %2519 = vmatpush2.bf16.msra.mxu0 0
    %2520 = vmatprep.subr.bf16.mxu0 0
    %2521 = vmatpush2.bf16.msra.mxu0 0
    %2522 = vmatprep.mubr.bf16.mxu0 0
    %2523 = vmatmul.mubr.bf16.gmra.mxu0 %v692
    %v2524 = vpop.f32.mrf.mxu0
    %v2525 = vadd.f32 %v2086, %v2524
    %v2526 = vpop.f32.mrf.mxu0
    %v2527 = vpop.f32.mrf.mxu0
    %v2528 = vpop.f32.mrf.mxu0
    %2529 = vdwg.mxu0
    %v2530 = vpack.c.bf16 %v2525, %v2525
    %v2531 = vlaneseq
    %v2532 = vshrl.u32 %v2531, 7
    %v2533 = vsub.s32 6, %v2532
    %v2534 = vrot.slane %v2113, %v2533
    %v2539 = vunpack.c.l.b16 %v2104
    %v2540 = vunpack.c.l.b16 %v2105
    %v2541 = vunpack.c.l.b16 %v2106
    %v2542 = vunpack.c.l.b16 %v2107
    %v2543 = vpack.c.b16 %v2540, %v2539
    %v2544 = vpack.c.b16 %v2542, %v2541
    %v2548 = vsel %vm111, %v2530, 0
    %2550 = vmatprep.subr.bf16.mxu0 0
    %2551 = vmatpush1.bf16.msra.mxu0 0
    %2552 = vmatprep.subr.bf16.mxu0 0
    %2553 = vmatpush1.bf16.msra.mxu0 0
    %2554 = vmatprep.subr.bf16.mxu0 0
    %2555 = vmatpush1.bf16.msra.mxu0 0
    %2556 = vmatprep.subr.bf16.mxu0 0
    %2557 = vmatpush1.bf16.msra.mxu0 0
    %2558 = vmatprep.subr.bf16.mxu0 0
    %2559 = vmatpush1.bf16.msra.mxu0 0
    %2560 = vmatprep.subr.bf16.mxu0 0
    %2561 = vmatpush1.bf16.msra.mxu0 0
    %2562 = vmatprep.subr.bf16.mxu0 0
    %2563 = vmatpush1.bf16.msra.mxu0 %v2544
    %2564 = vmatprep.subr.bf16.mxu0 0
    %2565 = vmatpush1.bf16.msra.mxu0 %v2543
    %2566 = vmatprep.subr.bf16.mxu0 0
    %2567 = vmatpush2.bf16.msra.mxu0 0
    %2568 = vmatprep.subr.bf16.mxu0 0
    %2569 = vmatpush2.bf16.msra.mxu0 0
    %2570 = vmatprep.subr.bf16.mxu0 0
    %2571 = vmatpush2.bf16.msra.mxu0 0
    %2572 = vmatprep.subr.bf16.mxu0 0
    %2573 = vmatpush2.bf16.msra.mxu0 0
    %2574 = vmatprep.subr.bf16.mxu0 0
    %2575 = vmatpush2.bf16.msra.mxu0 0
    %2576 = vmatprep.subr.bf16.mxu0 0
    %2577 = vmatpush2.bf16.msra.mxu0 0
    %2578 = vmatprep.subr.bf16.mxu0 0
    %2579 = vmatpush2.bf16.msra.mxu0 0
    %2580 = vmatprep.subr.bf16.mxu0 0
    %2581 = vmatpush2.bf16.msra.mxu0 0
    %2582 = vmatprep.mubr.bf16.mxu0 0
    %2583 = vmatmul.mubr.bf16.gmra.mxu0 %v2548
    %v2584 = vpop.f32.mrf.mxu0
    %v2585 = vadd.f32 %v2534, %v2584
    %v2586 = vpop.f32.mrf.mxu0
    %v2587 = vpop.f32.mrf.mxu0
    %v2588 = vpop.f32.mrf.mxu0
    %2589 = vdwg.mxu0
    %v2590 = vmax.f32 %v2585, 0.0
    %v2591 = vsel %vm111, %v2590, 0.0
    %v2592 = vrot.slane %v2591, 4
    %v2593 = vadd.f32 %v2591, %v2592
    %v2594 = vrot.slane %v2593, 2
    %v2595 = vadd.f32 %v2593, %v2594
    %v2596 = vrot.slane %v2595, 1
    %v2597 = vadd.f32 %v2595, %v2596
    %v2598 = vmul.f32 %v2597, %v802
    %v2599 = vsub.f32 %v2590, %v2598
    %v2600 = vmul.f32 %v2599, %v2599
    %v2601 = vsel %vm111, %v2600, 0.0
    %v2602 = vrot.slane %v2601, 4
    %v2603 = vadd.f32 %v2601, %v2602
    %v2604 = vrot.slane %v2603, 2
    %v2605 = vadd.f32 %v2603, %v2604
    %v2606 = vrot.slane %v2605, 1
    %v2607 = vadd.f32 %v2605, %v2606
    %v2608 = vmul.f32 %v2607, %v802
    %v2609 = vadd.f32 %v2608, 1e-05
    %v2610 = vrsqrt.pop %v2609
    %v2611 = vmul.f32 %v2599, %v2610
    %v2612 = vlaneseq
    %v2613 = vshrl.u32 %v2612, 7
    %v2614 = vsub.s32 7, %v2613
    %v2615 = vrot.slane %v2113, %v2614
    %v2616 = vmul.f32 %v2611, %v2615
    %v2617 = vlaneseq
    %v2618 = vshrl.u32 %v2617, 7
    %v2619 = vsub.s32 0, %v2618
    %v2620 = vrot.slane %v2114, %v2619
    %v2621 = vadd.f32 %v2616, %v2620
    %v2622 = vpack.c.bf16 %v2621, %v2621
    %v2623 = vlaneseq
    %v2624 = vshrl.u32 %v2623, 7
    %v2625 = vsub.s32 1, %v2624
    %v2626 = vrot.slane %v2114, %v2625
    %v2631 = vunpack.c.l.b16 %v2108
    %v2632 = vunpack.c.l.b16 %v2109
    %v2633 = vunpack.c.l.b16 %v2110
    %v2634 = vunpack.c.l.b16 %v2111
    %v2635 = vpack.c.b16 %v2632, %v2631
    %v2636 = vpack.c.b16 %v2634, %v2633
    %v2640 = vsel %vm111, %v2622, 0
    %2642 = vmatprep.subr.bf16.mxu0 0
    %2643 = vmatpush1.bf16.msra.mxu0 0
    %2644 = vmatprep.subr.bf16.mxu0 0
    %2645 = vmatpush1.bf16.msra.mxu0 0
    %2646 = vmatprep.subr.bf16.mxu0 0
    %2647 = vmatpush1.bf16.msra.mxu0 0
    %2648 = vmatprep.subr.bf16.mxu0 0
    %2649 = vmatpush1.bf16.msra.mxu0 0
    %2650 = vmatprep.subr.bf16.mxu0 0
    %2651 = vmatpush1.bf16.msra.mxu0 0
    %2652 = vmatprep.subr.bf16.mxu0 0
    %2653 = vmatpush1.bf16.msra.mxu0 0
    %2654 = vmatprep.subr.bf16.mxu0 0
    %2655 = vmatpush1.bf16.msra.mxu0 %v2636
    %2656 = vmatprep.subr.bf16.mxu0 0
    %2657 = vmatpush1.bf16.msra.mxu0 %v2635
    %2658 = vmatprep.subr.bf16.mxu0 0
    %2659 = vmatpush2.bf16.msra.mxu0 0
    %2660 = vmatprep.subr.bf16.mxu0 0
    %2661 = vmatpush2.bf16.msra.mxu0 0
    %2662 = vmatprep.subr.bf16.mxu0 0
    %2663 = vmatpush2.bf16.msra.mxu0 0
    %2664 = vmatprep.subr.bf16.mxu0 0
    %2665 = vmatpush2.bf16.msra.mxu0 0
    %2666 = vmatprep.subr.bf16.mxu0 0
    %2667 = vmatpush2.bf16.msra.mxu0 0
    %2668 = vmatprep.subr.bf16.mxu0 0
    %2669 = vmatpush2.bf16.msra.mxu0 0
    %2670 = vmatprep.subr.bf16.mxu0 0
    %2671 = vmatpush2.bf16.msra.mxu0 0
    %2672 = vmatprep.subr.bf16.mxu0 0
    %2673 = vmatpush2.bf16.msra.mxu0 0
    %2674 = vmatprep.mubr.bf16.mxu0 0
    %2675 = vmatmul.mubr.bf16.gmra.mxu0 %v2640
    %v2676 = vpop.f32.mrf.mxu0
    %v2677 = vadd.f32 %v2626, %v2676
    %v2678 = vpop.f32.mrf.mxu0
    %v2679 = vpop.f32.mrf.mxu0
    %v2680 = vpop.f32.mrf.mxu0
    %2681 = vdwg.mxu0
    %v2682 = vmax.f32 %v2677, 0.0
    %v2683 = vadd.f32 %v2682, %v2086
    %v2684 = vld [vmem:[%s8] sm:$0xf]
    %v2685 = vld [vmem:[%s8 + $0x4] sm:$0xf]
    %v2686 = vld [vmem:[%s8 + $0x8] sm:$0xf]
    %v2687 = vld [vmem:[%s8 + $0xc] sm:$0xf]
    %v2688 = vpack.c.bf16 %v2683, %v2683
    %v2689 = vlaneseq
    %v2690 = vshrl.u32 %v2689, 7
    %v2691 = vsub.s32 4, %v2690
    %v2692 = vrot.slane %v46, %v2691
    %v2697 = vunpack.c.l.b16 %v2684
    %v2698 = vunpack.c.l.b16 %v2685
    %v2699 = vunpack.c.l.b16 %v2686
    %v2700 = vunpack.c.l.b16 %v2687
    %v2701 = vpack.c.b16 %v2698, %v2697
    %v2702 = vpack.c.b16 %v2700, %v2699
    %v2706 = vsel %vm111, %v2688, 0
    %2708 = vmatprep.subr.bf16.mxu0 0
    %2709 = vmatpush1.bf16.msra.mxu0 0
    %2710 = vmatprep.subr.bf16.mxu0 0
    %2711 = vmatpush1.bf16.msra.mxu0 0
    %2712 = vmatprep.subr.bf16.mxu0 0
    %2713 = vmatpush1.bf16.msra.mxu0 0
    %2714 = vmatprep.subr.bf16.mxu0 0
    %2715 = vmatpush1.bf16.msra.mxu0 0
    %2716 = vmatprep.subr.bf16.mxu0 0
    %2717 = vmatpush1.bf16.msra.mxu0 0
    %2718 = vmatprep.subr.bf16.mxu0 0
    %2719 = vmatpush1.bf16.msra.mxu0 0
    %2720 = vmatprep.subr.bf16.mxu0 0
    %2721 = vmatpush1.bf16.msra.mxu0 %v2702
    %2722 = vmatprep.subr.bf16.mxu0 0
    %2723 = vmatpush1.bf16.msra.mxu0 %v2701
    %2724 = vmatprep.subr.bf16.mxu0 0
    %2725 = vmatpush2.bf16.msra.mxu0 0
    %2726 = vmatprep.subr.bf16.mxu0 0
    %2727 = vmatpush2.bf16.msra.mxu0 0
    %2728 = vmatprep.subr.bf16.mxu0 0
    %2729 = vmatpush2.bf16.msra.mxu0 0
    %2730 = vmatprep.subr.bf16.mxu0 0
    %2731 = vmatpush2.bf16.msra.mxu0 0
    %2732 = vmatprep.subr.bf16.mxu0 0
    %2733 = vmatpush2.bf16.msra.mxu0 0
    %2734 = vmatprep.subr.bf16.mxu0 0
    %2735 = vmatpush2.bf16.msra.mxu0 0
    %2736 = vmatprep.subr.bf16.mxu0 0
    %2737 = vmatpush2.bf16.msra.mxu0 0
    %2738 = vmatprep.subr.bf16.mxu0 0
    %2739 = vmatpush2.bf16.msra.mxu0 0
    %2740 = vmatprep.mubr.bf16.mxu0 0
    %2741 = vmatmul.mubr.bf16.gmra.mxu0 %v2706
    %v2742 = vpop.f32.mrf.mxu0
    %v2743 = vadd.f32 %v2692, %v2742
    %v2744 = vpop.f32.mrf.mxu0
    %v2745 = vpop.f32.mrf.mxu0
    %v2746 = vpop.f32.mrf.mxu0
    %2747 = vdwg.mxu0
    %v2748 = vmax.f32 %v2743, 0.0
    %v2749 = vsel %vm111, %v2748, 0.0
    %v2750 = vrot.slane %v2749, 4
    %v2751 = vadd.f32 %v2749, %v2750
    %v2752 = vrot.slane %v2751, 2
    %v2753 = vadd.f32 %v2751, %v2752
    %v2754 = vrot.slane %v2753, 1
    %v2755 = vadd.f32 %v2753, %v2754
    %v2756 = vmul.f32 %v2755, %v802
    %v2757 = vsub.f32 %v2748, %v2756
    %v2758 = vmul.f32 %v2757, %v2757
    %v2759 = vsel %vm111, %v2758, 0.0
    %v2760 = vrot.slane %v2759, 4
    %v2761 = vadd.f32 %v2759, %v2760
    %v2762 = vrot.slane %v2761, 2
    %v2763 = vadd.f32 %v2761, %v2762
    %v2764 = vrot.slane %v2763, 1
    %v2765 = vadd.f32 %v2763, %v2764
    %v2766 = vmul.f32 %v2765, %v802
    %v2767 = vadd.f32 %v2766, 1e-05
    %v2768 = vrsqrt.pop %v2767
    %v2769 = vmul.f32 %v2757, %v2768
    %v2770 = vlaneseq
    %v2771 = vshrl.u32 %v2770, 7
    %v2772 = vsub.s32 5, %v2771
    %v2773 = vrot.slane %v46, %v2772
    %v2774 = vmul.f32 %v2769, %v2773
    %v2775 = vlaneseq
    %v2776 = vshrl.u32 %v2775, 7
    %v2777 = vsub.s32 6, %v2776
    %v2778 = vrot.slane %v46, %v2777
    %v2779 = vadd.f32 %v2774, %v2778
    %v2780 = vld [vmem:[%s9] sm:$0xf]
    %v2781 = vld [vmem:[%s9 + $0x4] sm:$0xf]
    %v2782 = vld [vmem:[%s9 + $0x8] sm:$0xf]
    %v2783 = vld [vmem:[%s9 + $0xc] sm:$0xf]
    %v2784 = vpack.c.bf16 %v2779, %v2779
    %v2785 = vlaneseq
    %v2786 = vshrl.u32 %v2785, 7
    %v2787 = vsub.s32 7, %v2786
    %v2788 = vrot.slane %v46, %v2787
    %v2793 = vunpack.c.l.b16 %v2780
    %v2794 = vunpack.c.l.b16 %v2781
    %v2795 = vunpack.c.l.b16 %v2782
    %v2796 = vunpack.c.l.b16 %v2783
    %v2797 = vpack.c.b16 %v2794, %v2793
    %v2798 = vpack.c.b16 %v2796, %v2795
    %v2802 = vsel %vm111, %v2784, 0
    %2804 = vmatprep.subr.bf16.mxu0 0
    %2805 = vmatpush1.bf16.msra.mxu0 0
    %2806 = vmatprep.subr.bf16.mxu0 0
    %2807 = vmatpush1.bf16.msra.mxu0 0
    %2808 = vmatprep.subr.bf16.mxu0 0
    %2809 = vmatpush1.bf16.msra.mxu0 0
    %2810 = vmatprep.subr.bf16.mxu0 0
    %2811 = vmatpush1.bf16.msra.mxu0 0
    %2812 = vmatprep.subr.bf16.mxu0 0
    %2813 = vmatpush1.bf16.msra.mxu0 0
    %2814 = vmatprep.subr.bf16.mxu0 0
    %2815 = vmatpush1.bf16.msra.mxu0 0
    %2816 = vmatprep.subr.bf16.mxu0 0
    %2817 = vmatpush1.bf16.msra.mxu0 %v2798
    %2818 = vmatprep.subr.bf16.mxu0 0
    %2819 = vmatpush1.bf16.msra.mxu0 %v2797
    %2820 = vmatprep.subr.bf16.mxu0 0
    %2821 = vmatpush2.bf16.msra.mxu0 0
    %2822 = vmatprep.subr.bf16.mxu0 0
    %2823 = vmatpush2.bf16.msra.mxu0 0
    %2824 = vmatprep.subr.bf16.mxu0 0
    %2825 = vmatpush2.bf16.msra.mxu0 0
    %2826 = vmatprep.subr.bf16.mxu0 0
    %2827 = vmatpush2.bf16.msra.mxu0 0
    %2828 = vmatprep.subr.bf16.mxu0 0
    %2829 = vmatpush2.bf16.msra.mxu0 0
    %2830 = vmatprep.subr.bf16.mxu0 0
    %2831 = vmatpush2.bf16.msra.mxu0 0
    %2832 = vmatprep.subr.bf16.mxu0 0
    %2833 = vmatpush2.bf16.msra.mxu0 0
    %2834 = vmatprep.subr.bf16.mxu0 0
    %2835 = vmatpush2.bf16.msra.mxu0 0
    %2836 = vmatprep.mubr.bf16.mxu0 0
    %2837 = vmatmul.mubr.bf16.gmra.mxu0 %v2802
    %v2838 = vpop.f32.mrf.mxu0
    %v2839 = vadd.f32 %v2788, %v2838
    %v2840 = vpop.f32.mrf.mxu0
    %v2841 = vpop.f32.mrf.mxu0
    %v2842 = vpop.f32.mrf.mxu0
    %2843 = vdwg.mxu0
    %v2844 = vmax.f32 %v2839, 0.0
    %v2845 = vsel %vm111, %v2844, 0.0
    %v2846 = vrot.slane %v2845, 4
    %v2847 = vadd.f32 %v2845, %v2846
    %v2848 = vrot.slane %v2847, 2
    %v2849 = vadd.f32 %v2847, %v2848
    %v2850 = vrot.slane %v2849, 1
    %v2851 = vadd.f32 %v2849, %v2850
    %v2852 = vmul.f32 %v2851, 0.125
    %2854 = vrot.lane.b32.xlu0 %v2852, 32
    %v2855 = vpop.permute.xlu0 %2854
    %v2857 = vsel %vm111, %v2851, %v2855
    %v2858 = vld [vmem:[%s10] sm:$0xf]
    %v2859 = vld [vmem:[%s10 + $0x4] sm:$0xf]
    %v2860 = vld [vmem:[%s10 + $0x8] sm:$0xf]
    %v2861 = vld [vmem:[%s10 + $0xc] sm:$0xf]
    %v2862 = vld [vmem:[%s10 + $0x10] sm:$0xf]
    %v2863 = vld [vmem:[%s10 + $0x14] sm:$0xf]
    %v2864 = vld [vmem:[%s10 + $0x18] sm:$0xf]
    %v2865 = vld [vmem:[%s10 + $0x1c] sm:$0xf]
    %v2866 = vpack.c.bf16 %v2857, %v2857
    %v2875 = vunpack.c.l.b16 %v2858
    %v2876 = vunpack.c.l.b16 %v2859
    %v2877 = vunpack.c.l.b16 %v2860
    %v2878 = vunpack.c.l.b16 %v2861
    %v2879 = vunpack.c.l.b16 %v2862
    %v2880 = vunpack.c.l.b16 %v2863
    %v2881 = vunpack.c.l.b16 %v2864
    %v2882 = vunpack.c.l.b16 %v2865
    %v2883 = vpack.c.b16 %v2876, %v2875
    %v2884 = vpack.c.b16 %v2878, %v2877
    %v2885 = vpack.c.b16 %v2880, %v2879
    %v2886 = vpack.c.b16 %v2882, %v2881
    %vm2891 = vcmask 523264
    %v2893 = vsel %vm2891, %v2866, 0
    %2895 = vmatprep.subr.bf16.mxu0 0
    %2896 = vmatpush1.bf16.msra.mxu0 0
    %2897 = vmatprep.subr.bf16.mxu0 0
    %2898 = vmatpush1.bf16.msra.mxu0 0
    %2899 = vmatprep.subr.bf16.mxu0 0
    %2900 = vmatpush1.bf16.msra.mxu0 0
    %2901 = vmatprep.subr.bf16.mxu0 0
    %2902 = vmatpush1.bf16.msra.mxu0 0
    %2903 = vmatprep.subr.bf16.mxu0 0
    %2904 = vmatpush1.bf16.msra.mxu0 %v2886
    %2905 = vmatprep.subr.bf16.mxu0 0
    %2906 = vmatpush1.bf16.msra.mxu0 %v2885
    %2907 = vmatprep.subr.bf16.mxu0 0
    %2908 = vmatpush1.bf16.msra.mxu0 %v2884
    %2909 = vmatprep.subr.bf16.mxu0 0
    %2910 = vmatpush1.bf16.msra.mxu0 %v2883
    %2911 = vmatprep.subr.bf16.mxu0 0
    %2912 = vmatpush2.bf16.msra.mxu0 0
    %2913 = vmatprep.subr.bf16.mxu0 0
    %2914 = vmatpush2.bf16.msra.mxu0 0
    %2915 = vmatprep.subr.bf16.mxu0 0
    %2916 = vmatpush2.bf16.msra.mxu0 0
    %2917 = vmatprep.subr.bf16.mxu0 0
    %2918 = vmatpush2.bf16.msra.mxu0 0
    %2919 = vmatprep.subr.bf16.mxu0 0
    %2920 = vmatpush2.bf16.msra.mxu0 0
    %2921 = vmatprep.subr.bf16.mxu0 0
    %2922 = vmatpush2.bf16.msra.mxu0 0
    %2923 = vmatprep.subr.bf16.mxu0 0
    %2924 = vmatpush2.bf16.msra.mxu0 0
    %2925 = vmatprep.subr.bf16.mxu0 0
    %2926 = vmatpush2.bf16.msra.mxu0 0
    %2927 = vmatprep.mubr.bf16.mxu0 0
    %2928 = vmatmul.mubr.bf16.gmra.mxu0 %v2893
    %v2929 = vpop.f32.mrf.mxu0
    %v2930 = vadd.f32 %v47, %v2929
    %v2931 = vpop.f32.mrf.mxu0
    %v2932 = vpop.f32.mrf.mxu0
    %v2933 = vpop.f32.mrf.mxu0
    %2934 = vdwg.mxu0
    %v2935 = vmax.f32 %v2930, 0.0
    %v2936 = vld [vmem:[%s11] sm:$0xf]
    %v2937 = vld [vmem:[%s11 + $0x4] sm:$0xf]
    %v2938 = vld [vmem:[%s11 + $0x8] sm:$0xf]
    %v2939 = vld [vmem:[%s11 + $0xc] sm:$0xf]
    %v2940 = vpack.c.bf16 %v2935, %v2935
    %v2945 = vunpack.c.l.b16 %v2936
    %v2946 = vunpack.c.l.b16 %v2937
    %v2947 = vunpack.c.l.b16 %v2938
    %v2948 = vunpack.c.l.b16 %v2939
    %v2949 = vpack.c.b16 %v2946, %v2945
    %v2950 = vpack.c.b16 %v2948, %v2947
    %v2954 = vrot.slane %v47, 1
    %v2957 = vsel %vm111, %v2940, 0
    %2959 = vmatprep.subr.bf16.mxu0 0
    %2960 = vmatpush1.bf16.msra.mxu0 0
    %2961 = vmatprep.subr.bf16.mxu0 0
    %2962 = vmatpush1.bf16.msra.mxu0 0
    %2963 = vmatprep.subr.bf16.mxu0 0
    %2964 = vmatpush1.bf16.msra.mxu0 0
    %2965 = vmatprep.subr.bf16.mxu0 0
    %2966 = vmatpush1.bf16.msra.mxu0 0
    %2967 = vmatprep.subr.bf16.mxu0 0
    %2968 = vmatpush1.bf16.msra.mxu0 0
    %2969 = vmatprep.subr.bf16.mxu0 0
    %2970 = vmatpush1.bf16.msra.mxu0 0
    %2971 = vmatprep.subr.bf16.mxu0 0
    %2972 = vmatpush1.bf16.msra.mxu0 %v2950
    %2973 = vmatprep.subr.bf16.mxu0 0
    %2974 = vmatpush1.bf16.msra.mxu0 %v2949
    %2975 = vmatprep.subr.bf16.mxu0 0
    %2976 = vmatpush2.bf16.msra.mxu0 0
    %2977 = vmatprep.subr.bf16.mxu0 0
    %2978 = vmatpush2.bf16.msra.mxu0 0
    %2979 = vmatprep.subr.bf16.mxu0 0
    %2980 = vmatpush2.bf16.msra.mxu0 0
    %2981 = vmatprep.subr.bf16.mxu0 0
    %2982 = vmatpush2.bf16.msra.mxu0 0
    %2983 = vmatprep.subr.bf16.mxu0 0
    %2984 = vmatpush2.bf16.msra.mxu0 0
    %2985 = vmatprep.subr.bf16.mxu0 0
    %2986 = vmatpush2.bf16.msra.mxu0 0
    %2987 = vmatprep.subr.bf16.mxu0 0
    %2988 = vmatpush2.bf16.msra.mxu0 0
    %2989 = vmatprep.subr.bf16.mxu0 0
    %2990 = vmatpush2.bf16.msra.mxu0 0
    %2991 = vmatprep.mubr.bf16.mxu0 0
    %2992 = vmatmul.mubr.bf16.gmra.mxu0 %v2957
    %v2993 = vpop.f32.mrf.mxu0
    %v2994 = vadd.f32 %v2954, %v2993
    %v2995 = vpop.f32.mrf.mxu0
    %v2996 = vpop.f32.mrf.mxu0
    %v2997 = vpop.f32.mrf.mxu0
    %2998 = vdwg.mxu0
    %v2999 = vmax.f32 %v2994, 0.0
    %vm3000 = vcmask 57344
    %3001 = vst.msk [vmem:[#allocation2] sm:$0x1] %vm3000, %v2999
    // Predicated region
    $region54: #{net3d_forward.1} parent=1 // pred_check
      _
    $region55: #{net3d_forward.1} parent=1 // pred_check_branch
      %3003 = sbr.rel (0) target = $region57
    $region56: #{net3d_forward.1} parent=1 // pred_region
      %s3005 = ssub.s32 16, 16
      %3006 = vsyncadd [#allocation3], %s3005
      %s3008 = sshll.u32 [#allocation2], 4
      %s3009 = int_to_ptr.vmem [resolvable:$true] %s3008
      %3011 = dma.vmem_to_hbm [thread:$0]  %s3009, 16, %s13, [#allocation3]
    $region57: #{net3d_forward.1} parent=1 // pred_fallthru
      _
    // Predicated region
    $region58: #{net3d_forward.1} parent=1 // pred_check
      _
    $region59: #{net3d_forward.1} parent=1 // pred_check_branch
      %3013 = sbr.rel (0) target = $region61
    $region60: #{net3d_forward.1} parent=1 // pred_region
      %3014 = dma.done [#allocation3], 16
    $region61: #{net3d_forward.1} parent=1 // pred_fallthru
      _
    %3015 = vsyncpa [#allocation3], 1

</llo_original>
